<compile_context>
chip_gen: v7x
topology: tpu7x:2x2x1
jax: 0.10.0
libtpu: 0.0.40
codegen_flags: <defaults>
</compile_context>

<pallas_src>
import math

import jax
import jax.numpy as jnp
from jax.experimental import pallas as pl
from jax.experimental.pallas import tpu as pltpu

EPS = 1e-5
LANE = 128


def _round_up(x, m):
    return (x + m - 1) // m * m


def _tile_stats(y, rows):
    """Per-tile, per-channel [sum, centered M2] rows for a (rows, C) f32 tile."""
    ssum = jnp.sum(y, axis=0, keepdims=True)
    mu = ssum * (1.0 / rows)
    m2 = jnp.sum(jnp.square(y - mu), axis=0, keepdims=True)
    return [ssum, m2]


def basic_block_forward(x_nchw, params, stride):
    """Pallas forward of BasicBlock (training-mode BN, weight=1 / bias=0)."""
    assert stride in (1, 2), "ResNet BasicBlock uses stride 1 or 2"
    s = int(stride)

    x = jnp.transpose(x_nchw, (0, 2, 3, 1)).astype(jnp.float32)      # NHWC
    N, H, W, Cin = x.shape
    P = params["w1"].shape[0]
    has_proj = (s != 1) or (Cin != P)

    Cp = _round_up(Cin, LANE)          # lane-dense input channels
    Op = _round_up(P, LANE)            # lane-dense output channels
    Ho = (H + 2 - 3) // s + 1
    Wo = (W + 2 - 3) // s + 1
    Hs = (3 - 1) // s + Ho             # per-phase rows needed by the 3x3 taps
    Ws = (3 - 1) // s + Wo
    m_tile = Ho * Wo                   # BN rows produced per grid step
    M = N * m_tile                     # total BN population per channel

    # ------------- wrapper-side layout prep (cheap, size preserving) ---------
    xc = jnp.pad(x, ((0, 0), (0, 0), (0, 0), (0, Cp - Cin)))
    xp = jnp.pad(xc, ((0, 0), (1, Hs * s - H - 1), (1, Ws * s - W - 1), (0, 0)))
    # Phase split so every conv tap becomes a contiguous static slice:
    #   xr[n, (a*s+b)*Hs + h2, w2, c] == xp[n, h2*s + a, w2*s + b, c]
    xr = (xp.reshape(N, Hs, s, Ws, s, Cp)
            .transpose(0, 2, 4, 1, 3, 5)
            .reshape(N, s * s * Hs, Ws, Cp))

    def flat_w(w, ci_pad, co_pad):     # (O, I, kh, kw) -> (kh*kw, ci_pad, co_pad) bf16
        o, i, kh, kw = w.shape
        wf = jnp.transpose(w, (2, 3, 1, 0))
        wf = jnp.pad(wf, ((0, 0), (0, 0), (0, ci_pad - i), (0, co_pad - o)))
        return wf.reshape(kh * kw, ci_pad, co_pad).astype(jnp.bfloat16)

    w1f = flat_w(params["w1"], Cp, Op)                         # (9, Cp, Op)
    w2f = flat_w(params["w2"], Op, Op)                         # (9, Op, Op)
    wscf = flat_w(params["wsc"], Cp, Op)[0] if has_proj else None   # (Cp, Op)

    cparams = pltpu.CompilerParams(
        dimension_semantics=("parallel",),        # batch axis -> v7x megacore
        vmem_limit_bytes=32 * 1024 * 1024,
    )
    tile_spec = pl.BlockSpec((1, Ho, Wo, Op), lambda n: (n, 0, 0, 0))

    # ------------- pass 1: conv1 (+ 1x1 projection) + BN partial stats -------
    def conv1_kernel(xr_ref, w1_ref, *rest):
        if has_proj:
            wsc_ref, y1_ref, ysc_ref, st_ref = rest
        else:
            y1_ref, st_ref = rest
        acc = jnp.zeros((m_tile, Op), jnp.float32)
        center = None
        for i in range(3):
            for j in range(3):
                ph = (i % s) * s + (j % s)
                r0 = ph * Hs + i // s
                xs = xr_ref[0, pl.ds(r0, Ho), pl.ds(j // s, Wo), :]
                xs = xs.reshape(m_tile, Cp).astype(jnp.bfloat16)   # bf16 MXU operand
                acc = acc + jnp.dot(xs, w1_ref[i * 3 + j],
                                    preferred_element_type=jnp.float32)
                if i == 1 and j == 1:
                    center = xs            # == x at the strided output positions
        y1_ref[0] = acc.reshape(Ho, Wo, Op)
        rows = _tile_stats(acc, m_tile)
        if has_proj:
            ysc = jnp.dot(center, wsc_ref[...], preferred_element_type=jnp.float32)
            ysc_ref[0] = ysc.reshape(Ho, Wo, Op)
            rows = rows + _tile_stats(ysc, m_tile)
        st_ref[0] = jnp.concatenate(rows, axis=0)

    n_st1 = 4 if has_proj else 2
    a_in_specs = [pl.BlockSpec((1, s * s * Hs, Ws, Cp), lambda n: (n, 0, 0, 0)),
                  pl.BlockSpec((9, Cp, Op), lambda n: (0, 0, 0))]
    a_inputs = [xr, w1f]
    if has_proj:
        a_in_specs.append(pl.BlockSpec((Cp, Op), lambda n: (0, 0)))
        a_inputs.append(wscf)
    a_out_specs = ([tile_spec] + ([tile_spec] if has_proj else [])
                   + [pl.BlockSpec((1, n_st1, Op), lambda n: (n, 0, 0))])
    a_out_shape = ([jax.ShapeDtypeStruct((N, Ho, Wo, Op), jnp.float32)]
                   + ([jax.ShapeDtypeStruct((N, Ho, Wo, Op), jnp.float32)] if has_proj else [])
                   + [jax.ShapeDtypeStruct((N, n_st1, Op), jnp.float32)])

    a_res = pl.pallas_call(
        conv1_kernel, grid=(N,),
        in_specs=a_in_specs, out_specs=a_out_specs, out_shape=a_out_shape,
        compiler_params=cparams,
    )(*a_inputs)
    if has_proj:
        y1, ysc, st1 = a_res
    else:
        y1, st1 = a_res

    # ------------- global BN stats: tiny Welford-style merge (plain JAX) -----
    def bn_scale_shift(sum_rows, m2_rows):
        mean_t = sum_rows / float(m_tile)                        # per-tile means
        mean = jnp.sum(sum_rows, axis=0) / float(M)
        m2 = (jnp.sum(m2_rows, axis=0)
              + float(m_tile) * jnp.sum(jnp.square(mean_t - mean[None, :]), axis=0))
        var = m2 / float(M)                                      # biased, like PyTorch BN
        scale = jax.lax.rsqrt(var + EPS)
        return jnp.stack([scale, -mean * scale], axis=0)         # (2, Op) f32

    g1 = bn_scale_shift(st1[:, 0, :], st1[:, 1, :])
    gsc = bn_scale_shift(st1[:, 2, :], st1[:, 3, :]) if has_proj else None

    # ------------- pass 2: bn1+ReLU fused with conv2 + BN2 partial stats -----
    def conv2_kernel(y1_ref, g1_ref, w2_ref, y2_ref, st_ref, o1pad_ref):
        g = g1_ref[...]
        scale = g[0:1, :].reshape(1, 1, Op)
        shift = g[1:2, :].reshape(1, 1, Op)
        o1 = jnp.maximum(y1_ref[0] * scale + shift, 0.0)
        o1pad_ref[...] = jnp.zeros_like(o1pad_ref)       # zero halo (conv2 pad=1)
        o1pad_ref[pl.ds(1, Ho), pl.ds(1, Wo), :] = o1
        acc = jnp.zeros((m_tile, Op), jnp.float32)
        for i in range(3):
            for j in range(3):
                xs = o1pad_ref[pl.ds(i, Ho), pl.ds(j, Wo), :]
                xs = xs.reshape(m_tile, Op).astype(jnp.bfloat16)
                acc = acc + jnp.dot(xs, w2_ref[i * 3 + j],
                                    preferred_element_type=jnp.float32)
        y2_ref[0] = acc.reshape(Ho, Wo, Op)
        st_ref[0] = jnp.concatenate(_tile_stats(acc, m_tile), axis=0)

    y2, st2 = pl.pallas_call(
        conv2_kernel, grid=(N,),
        in_specs=[tile_spec,
                  pl.BlockSpec((2, Op), lambda n: (0, 0)),
                  pl.BlockSpec((9, Op, Op), lambda n: (0, 0, 0))],
        out_specs=[tile_spec, pl.BlockSpec((1, 2, Op), lambda n: (n, 0, 0))],
        out_shape=[jax.ShapeDtypeStruct((N, Ho, Wo, Op), jnp.float32),
                   jax.ShapeDtypeStruct((N, 2, Op), jnp.float32)],
        scratch_shapes=[pltpu.VMEM((Ho + 2, Wo + 2, Op), jnp.float32)],
        compiler_params=cparams,
    )(y1, g1, w2f)

    g2 = bn_scale_shift(st2[:, 0, :], st2[:, 1, :])

    # ------------- pass 3: bn2 + shortcut + ReLU ------------------------------
    if has_proj:
        def out_kernel(y2_ref, ysc_ref, g2_ref, gsc_ref, o_ref):
            g2v = g2_ref[...]
            gsv = gsc_ref[...]
            o = (y2_ref[0] * g2v[0:1, :].reshape(1, 1, Op)
                 + g2v[1:2, :].reshape(1, 1, Op)
                 + ysc_ref[0] * gsv[0:1, :].reshape(1, 1, Op)
                 + gsv[1:2, :].reshape(1, 1, Op))
            o_ref[0] = jnp.maximum(o, 0.0)

        c_inputs = (y2, ysc, g2, gsc)
        c_in_specs = [tile_spec, tile_spec,
                      pl.BlockSpec((2, Op), lambda n: (0, 0)),
                      pl.BlockSpec((2, Op), lambda n: (0, 0))]
    else:
        xid = xc                          # identity shortcut (stride 1, Cp == Op)

        def out_kernel(y2_ref, xid_ref, g2_ref, o_ref):
            g2v = g2_ref[...]
            o = (y2_ref[0] * g2v[0:1, :].reshape(1, 1, Op)
                 + g2v[1:2, :].reshape(1, 1, Op) + xid_ref[0])
            o_ref[0] = jnp.maximum(o, 0.0)

        c_inputs = (y2, xid, g2)
        c_in_specs = [tile_spec, tile_spec, pl.BlockSpec((2, Op), lambda n: (0, 0))]

    out_p = pl.pallas_call(
        out_kernel, grid=(N,),
        in_specs=c_in_specs, out_specs=tile_spec,
        out_shape=jax.ShapeDtypeStruct((N, Ho, Wo, Op), jnp.float32),
        compiler_params=cparams,
    )(*c_inputs)

    return jnp.transpose(out_p[..., :P], (0, 3, 1, 2))           # back to NCHW


# ------------------------- parameters & reference ----------------------------

def init_params(key, in_planes, planes, stride):
    def kaiming(k, cout, cin, kh, kw):
        fan_in = cin * kh * kw                     # mode='fan_in', relu gain
        std = math.sqrt(2.0 / fan_in)
        return jax.random.normal(k, (cout, cin, kh, kw), jnp.float32) * std

    k1, k2, k3 = jax.random.split(key, 3)
    params = {"w1": kaiming(k1, planes, in_planes, 3, 3),
              "w2": kaiming(k2, planes, planes, 3, 3)}
    if stride != 1 or in_planes != planes:
        params["wsc"] = kaiming(k3, planes, in_planes, 1, 1)
    return params


def reference_forward(x_nchw, params, stride):
    def conv(x, w, s, pad):
        return jax.lax.conv_general_dilated(
            x, w, (s, s), [(pad, pad), (pad, pad)],
            dimension_numbers=("NCHW", "OIHW", "NCHW"))

    def bn(y):
        mean = jnp.mean(y, axis=(0, 2, 3), keepdims=True)
        var = jnp.mean(jnp.square(y - mean), axis=(0, 2, 3), keepdims=True)
        return (y - mean) * jax.lax.rsqrt(var + EPS)

    out = jax.nn.relu(bn(conv(x_nchw, params["w1"], stride, 1)))
    out = bn(conv(out, params["w2"], 1, 1))
    sc = bn(conv(x_nchw, params["wsc"], stride, 0)) if "wsc" in params else x_nchw
    return jax.nn.relu(out + sc)


# ----------------------------------- main -------------------------------------

if __name__ == "__main__":
    fwd = jax.jit(basic_block_forward, static_argnums=(2,))
    key = jax.random.PRNGKey(0)

    configs = [  # (name, in_planes, planes, stride, x_shape NCHW)
        ("projection", 4, 8, 2, (2, 4, 16, 16)),
        ("identity", 8, 8, 1, (2, 8, 16, 16)),
    ]
    for name, in_planes, planes, stride, xshape in configs:
        key, kx, kp = jax.random.split(key, 3)
        x = jax.random.normal(kx, xshape, jnp.float32)         # NCHW like PyTorch
        params = init_params(kp, in_planes, planes, stride)

        out = jax.block_until_ready(fwd(x, params, stride))
        ref = reference_forward(x, params, stride)

        assert out.shape == ref.shape, (name, out.shape, ref.shape)
        err = float(jnp.max(jnp.abs(out - ref)))
        # bf16 MXU operands (f32 accumulation) -> tolerance wider than pure f32.
        assert jnp.allclose(out, ref, atol=3e-2, rtol=3e-2), (name, err)

    print("KERNEL_OK")
</pallas_src>

<mosaic_0001>
module attributes {stable_mosaic.version = 11 : i64} {
  func.func @conv1_kernel(%arg0: i32, %arg1: memref<1x36x9x128xf32, #tpu.memory_space<vmem>>, %arg2: memref<9x128x128xbf16, #tpu.memory_space<vmem>>, %arg3: memref<128x128xbf16, #tpu.memory_space<vmem>>, %arg4: memref<1x8x8x128xf32, #tpu.memory_space<vmem>>, %arg5: memref<1x8x8x128xf32, #tpu.memory_space<vmem>>, %arg6: memref<1x4x128xf32, #tpu.memory_space<vmem>>) attributes {dimension_semantics = [#tpu.dimension_semantics<parallel>], iteration_bounds = array<i64: 2>, scalar_prefetch = 0 : i64, scratch_operands = 0 : i64, tpu.core_type = #tpu.core_type<tc>, window_params = [{transform_indices = @transform_0, window_bounds = array<i64: 1, 36, 9, 128>}, {pipeline_mode = #tpu.pipeline_mode<synchronous>, transform_indices = @transform_1, window_bounds = array<i64: 9, 128, 128>}, {pipeline_mode = #tpu.pipeline_mode<synchronous>, transform_indices = @transform_2, window_bounds = array<i64: 128, 128>}, {transform_indices = @transform_3, window_bounds = array<i64: 1, 8, 8, 128>}, {transform_indices = @transform_4, window_bounds = array<i64: 1, 8, 8, 128>}, {transform_indices = @transform_5, window_bounds = array<i64: 1, 4, 128>}]} {
    %cst = arith.constant 0.000000e+00 : f32
    %0 = vector.broadcast %cst : f32 to vector<64x128xf32>
    %c0 = arith.constant 0 : index
    %c0_0 = arith.constant 0 : index
    %c0_1 = arith.constant 0 : index
    %c0_2 = arith.constant 0 : index
    %1 = vector.load %arg1[%c0, %c0_0, %c0_1, %c0_2] : memref<1x36x9x128xf32, #tpu.memory_space<vmem>>, vector<1x8x8x128xf32>
    %2 = vector.shape_cast %1 : vector<1x8x8x128xf32> to vector<8x8x128xf32>
    %3 = vector.shape_cast %2 : vector<8x8x128xf32> to vector<64x128xf32>
    %4 = arith.truncf %3 : vector<64x128xf32> to vector<64x128xbf16>
    %c0_3 = arith.constant 0 : index
    %c0_4 = arith.constant 0 : index
    %c0_5 = arith.constant 0 : index
    %5 = vector.load %arg2[%c0_3, %c0_4, %c0_5] : memref<9x128x128xbf16, #tpu.memory_space<vmem>>, vector<1x128x128xbf16>
    %6 = vector.shape_cast %5 : vector<1x128x128xbf16> to vector<128x128xbf16>
    %cst_6 = arith.constant dense<0.000000e+00> : vector<64x128xf32>
    %7 = tpu.matmul %4, %6, %cst_6 {dimension_numbers = #tpu.dot_dimension_numbers<[1], [0], [0], [1], [0, 0, 1, 1], [], []>} : vector<64x128xbf16>, vector<128x128xbf16>, vector<64x128xf32> -> vector<64x128xf32>
    %8 = arith.addf %0, %7 : vector<64x128xf32>
    %c0_7 = arith.constant 0 : index
    %c9 = arith.constant 9 : index
    %c0_8 = arith.constant 0 : index
    %c0_9 = arith.constant 0 : index
    %9 = vector.load %arg1[%c0_7, %c9, %c0_8, %c0_9] : memref<1x36x9x128xf32, #tpu.memory_space<vmem>>, vector<1x8x8x128xf32>
    %10 = vector.shape_cast %9 : vector<1x8x8x128xf32> to vector<8x8x128xf32>
    %11 = vector.shape_cast %10 : vector<8x8x128xf32> to vector<64x128xf32>
    %12 = arith.truncf %11 : vector<64x128xf32> to vector<64x128xbf16>
    %c1 = arith.constant 1 : index
    %c0_10 = arith.constant 0 : index
    %c0_11 = arith.constant 0 : index
    %13 = vector.load %arg2[%c1, %c0_10, %c0_11] : memref<9x128x128xbf16, #tpu.memory_space<vmem>>, vector<1x128x128xbf16>
    %14 = vector.shape_cast %13 : vector<1x128x128xbf16> to vector<128x128xbf16>
    %cst_12 = arith.constant dense<0.000000e+00> : vector<64x128xf32>
    %15 = tpu.matmul %12, %14, %cst_12 {dimension_numbers = #tpu.dot_dimension_numbers<[1], [0], [0], [1], [0, 0, 1, 1], [], []>} : vector<64x128xbf16>, vector<128x128xbf16>, vector<64x128xf32> -> vector<64x128xf32>
    %16 = arith.addf %8, %15 : vector<64x128xf32>
    %c0_13 = arith.constant 0 : index
    %c0_14 = arith.constant 0 : index
    %c1_15 = arith.constant 1 : index
    %c0_16 = arith.constant 0 : index
    %17 = vector.load %arg1[%c0_13, %c0_14, %c1_15, %c0_16] : memref<1x36x9x128xf32, #tpu.memory_space<vmem>>, vector<1x8x8x128xf32>
    %18 = vector.shape_cast %17 : vector<1x8x8x128xf32> to vector<8x8x128xf32>
    %19 = vector.shape_cast %18 : vector<8x8x128xf32> to vector<64x128xf32>
    %20 = arith.truncf %19 : vector<64x128xf32> to vector<64x128xbf16>
    %c2 = arith.constant 2 : index
    %c0_17 = arith.constant 0 : index
    %c0_18 = arith.constant 0 : index
    %21 = vector.load %arg2[%c2, %c0_17, %c0_18] : memref<9x128x128xbf16, #tpu.memory_space<vmem>>, vector<1x128x128xbf16>
    %22 = vector.shape_cast %21 : vector<1x128x128xbf16> to vector<128x128xbf16>
    %cst_19 = arith.constant dense<0.000000e+00> : vector<64x128xf32>
    %23 = tpu.matmul %20, %22, %cst_19 {dimension_numbers = #tpu.dot_dimension_numbers<[1], [0], [0], [1], [0, 0, 1, 1], [], []>} : vector<64x128xbf16>, vector<128x128xbf16>, vector<64x128xf32> -> vector<64x128xf32>
    %24 = arith.addf %16, %23 : vector<64x128xf32>
    %c0_20 = arith.constant 0 : index
    %c18 = arith.constant 18 : index
    %c0_21 = arith.constant 0 : index
    %c0_22 = arith.constant 0 : index
    %25 = vector.load %arg1[%c0_20, %c18, %c0_21, %c0_22] : memref<1x36x9x128xf32, #tpu.memory_space<vmem>>, vector<1x8x8x128xf32>
    %26 = vector.shape_cast %25 : vector<1x8x8x128xf32> to vector<8x8x128xf32>
    %27 = vector.shape_cast %26 : vector<8x8x128xf32> to vector<64x128xf32>
    %28 = arith.truncf %27 : vector<64x128xf32> to vector<64x128xbf16>
    %c3 = arith.constant 3 : index
    %c0_23 = arith.constant 0 : index
    %c0_24 = arith.constant 0 : index
    %29 = vector.load %arg2[%c3, %c0_23, %c0_24] : memref<9x128x128xbf16, #tpu.memory_space<vmem>>, vector<1x128x128xbf16>
    %30 = vector.shape_cast %29 : vector<1x128x128xbf16> to vector<128x128xbf16>
    %cst_25 = arith.constant dense<0.000000e+00> : vector<64x128xf32>
    %31 = tpu.matmul %28, %30, %cst_25 {dimension_numbers = #tpu.dot_dimension_numbers<[1], [0], [0], [1], [0, 0, 1, 1], [], []>} : vector<64x128xbf16>, vector<128x128xbf16>, vector<64x128xf32> -> vector<64x128xf32>
    %32 = arith.addf %24, %31 : vector<64x128xf32>
    %c0_26 = arith.constant 0 : index
    %c27 = arith.constant 27 : index
    %c0_27 = arith.constant 0 : index
    %c0_28 = arith.constant 0 : index
    %33 = vector.load %arg1[%c0_26, %c27, %c0_27, %c0_28] : memref<1x36x9x128xf32, #tpu.memory_space<vmem>>, vector<1x8x8x128xf32>
    %34 = vector.shape_cast %33 : vector<1x8x8x128xf32> to vector<8x8x128xf32>
    %35 = vector.shape_cast %34 : vector<8x8x128xf32> to vector<64x128xf32>
    %36 = arith.truncf %35 : vector<64x128xf32> to vector<64x128xbf16>
    %c4 = arith.constant 4 : index
    %c0_29 = arith.constant 0 : index
    %c0_30 = arith.constant 0 : index
    %37 = vector.load %arg2[%c4, %c0_29, %c0_30] : memref<9x128x128xbf16, #tpu.memory_space<vmem>>, vector<1x128x128xbf16>
    %38 = vector.shape_cast %37 : vector<1x128x128xbf16> to vector<128x128xbf16>
    %cst_31 = arith.constant dense<0.000000e+00> : vector<64x128xf32>
    %39 = tpu.matmul %36, %38, %cst_31 {dimension_numbers = #tpu.dot_dimension_numbers<[1], [0], [0], [1], [0, 0, 1, 1], [], []>} : vector<64x128xbf16>, vector<128x128xbf16>, vector<64x128xf32> -> vector<64x128xf32>
    %40 = arith.addf %32, %39 : vector<64x128xf32>
    %c0_32 = arith.constant 0 : index
    %c18_33 = arith.constant 18 : index
    %c1_34 = arith.constant 1 : index
    %c0_35 = arith.constant 0 : index
    %41 = vector.load %arg1[%c0_32, %c18_33, %c1_34, %c0_35] : memref<1x36x9x128xf32, #tpu.memory_space<vmem>>, vector<1x8x8x128xf32>
    %42 = vector.shape_cast %41 : vector<1x8x8x128xf32> to vector<8x8x128xf32>
    %43 = vector.shape_cast %42 : vector<8x8x128xf32> to vector<64x128xf32>
    %44 = arith.truncf %43 : vector<64x128xf32> to vector<64x128xbf16>
    %c5 = arith.constant 5 : index
    %c0_36 = arith.constant 0 : index
    %c0_37 = arith.constant 0 : index
    %45 = vector.load %arg2[%c5, %c0_36, %c0_37] : memref<9x128x128xbf16, #tpu.memory_space<vmem>>, vector<1x128x128xbf16>
    %46 = vector.shape_cast %45 : vector<1x128x128xbf16> to vector<128x128xbf16>
    %cst_38 = arith.constant dense<0.000000e+00> : vector<64x128xf32>
    %47 = tpu.matmul %44, %46, %cst_38 {dimension_numbers = #tpu.dot_dimension_numbers<[1], [0], [0], [1], [0, 0, 1, 1], [], []>} : vector<64x128xbf16>, vector<128x128xbf16>, vector<64x128xf32> -> vector<64x128xf32>
    %48 = arith.addf %40, %47 : vector<64x128xf32>
    %c0_39 = arith.constant 0 : index
    %c1_40 = arith.constant 1 : index
    %c0_41 = arith.constant 0 : index
    %c0_42 = arith.constant 0 : index
    %49 = vector.load %arg1[%c0_39, %c1_40, %c0_41, %c0_42] : memref<1x36x9x128xf32, #tpu.memory_space<vmem>>, vector<1x8x8x128xf32>
    %50 = vector.shape_cast %49 : vector<1x8x8x128xf32> to vector<8x8x128xf32>
    %51 = vector.shape_cast %50 : vector<8x8x128xf32> to vector<64x128xf32>
    %52 = arith.truncf %51 : vector<64x128xf32> to vector<64x128xbf16>
    %c6 = arith.constant 6 : index
    %c0_43 = arith.constant 0 : index
    %c0_44 = arith.constant 0 : index
    %53 = vector.load %arg2[%c6, %c0_43, %c0_44] : memref<9x128x128xbf16, #tpu.memory_space<vmem>>, vector<1x128x128xbf16>
    %54 = vector.shape_cast %53 : vector<1x128x128xbf16> to vector<128x128xbf16>
    %cst_45 = arith.constant dense<0.000000e+00> : vector<64x128xf32>
    %55 = tpu.matmul %52, %54, %cst_45 {dimension_numbers = #tpu.dot_dimension_numbers<[1], [0], [0], [1], [0, 0, 1, 1], [], []>} : vector<64x128xbf16>, vector<128x128xbf16>, vector<64x128xf32> -> vector<64x128xf32>
    %56 = arith.addf %48, %55 : vector<64x128xf32>
    %c0_46 = arith.constant 0 : index
    %c10 = arith.constant 10 : index
    %c0_47 = arith.constant 0 : index
    %c0_48 = arith.constant 0 : index
    %57 = vector.load %arg1[%c0_46, %c10, %c0_47, %c0_48] : memref<1x36x9x128xf32, #tpu.memory_space<vmem>>, vector<1x8x8x128xf32>
    %58 = vector.shape_cast %57 : vector<1x8x8x128xf32> to vector<8x8x128xf32>
    %59 = vector.shape_cast %58 : vector<8x8x128xf32> to vector<64x128xf32>
    %60 = arith.truncf %59 : vector<64x128xf32> to vector<64x128xbf16>
    %c7 = arith.constant 7 : index
    %c0_49 = arith.constant 0 : index
    %c0_50 = arith.constant 0 : index
    %61 = vector.load %arg2[%c7, %c0_49, %c0_50] : memref<9x128x128xbf16, #tpu.memory_space<vmem>>, vector<1x128x128xbf16>
    %62 = vector.shape_cast %61 : vector<1x128x128xbf16> to vector<128x128xbf16>
    %cst_51 = arith.constant dense<0.000000e+00> : vector<64x128xf32>
    %63 = tpu.matmul %60, %62, %cst_51 {dimension_numbers = #tpu.dot_dimension_numbers<[1], [0], [0], [1], [0, 0, 1, 1], [], []>} : vector<64x128xbf16>, vector<128x128xbf16>, vector<64x128xf32> -> vector<64x128xf32>
    %64 = arith.addf %56, %63 : vector<64x128xf32>
    %c0_52 = arith.constant 0 : index
    %c1_53 = arith.constant 1 : index
    %c1_54 = arith.constant 1 : index
    %c0_55 = arith.constant 0 : index
    %65 = vector.load %arg1[%c0_52, %c1_53, %c1_54, %c0_55] : memref<1x36x9x128xf32, #tpu.memory_space<vmem>>, vector<1x8x8x128xf32>
    %66 = vector.shape_cast %65 : vector<1x8x8x128xf32> to vector<8x8x128xf32>
    %67 = vector.shape_cast %66 : vector<8x8x128xf32> to vector<64x128xf32>
    %68 = arith.truncf %67 : vector<64x128xf32> to vector<64x128xbf16>
    %c8 = arith.constant 8 : index
    %c0_56 = arith.constant 0 : index
    %c0_57 = arith.constant 0 : index
    %69 = vector.load %arg2[%c8, %c0_56, %c0_57] : memref<9x128x128xbf16, #tpu.memory_space<vmem>>, vector<1x128x128xbf16>
    %70 = vector.shape_cast %69 : vector<1x128x128xbf16> to vector<128x128xbf16>
    %cst_58 = arith.constant dense<0.000000e+00> : vector<64x128xf32>
    %71 = tpu.matmul %68, %70, %cst_58 {dimension_numbers = #tpu.dot_dimension_numbers<[1], [0], [0], [1], [0, 0, 1, 1], [], []>} : vector<64x128xbf16>, vector<128x128xbf16>, vector<64x128xf32> -> vector<64x128xf32>
    %72 = arith.addf %64, %71 : vector<64x128xf32>
    %73 = vector.shape_cast %72 : vector<64x128xf32> to vector<8x8x128xf32>
    %c0_59 = arith.constant 0 : index
    %c0_60 = arith.constant 0 : index
    %c0_61 = arith.constant 0 : index
    %c0_62 = arith.constant 0 : index
    %74 = vector.load %arg4[%c0_59, %c0_60, %c0_61, %c0_62] : memref<1x8x8x128xf32, #tpu.memory_space<vmem>>, vector<1x8x8x128xf32>
    %75 = vector.shape_cast %74 : vector<1x8x8x128xf32> to vector<8x8x128xf32>
    %76 = vector.shape_cast %73 : vector<8x8x128xf32> to vector<1x8x8x128xf32>
    tpu.vector_store %arg4[%c0_59, %c0_60, %c0_61, %c0_62], %76 {strides = array<i32>} : memref<1x8x8x128xf32, #tpu.memory_space<vmem>>, vector<1x8x8x128xf32>,
    %cst_63 = arith.constant dense<0.000000e+00> : vector<128xf32>
    %77 = vector.multi_reduction <add>, %72, %cst_63 [0] : vector<64x128xf32> to vector<128xf32>
    %78 = vector.shape_cast %77 : vector<128xf32> to vector<1x128xf32>
    %cst_64 = arith.constant 1.562500e-02 : f32
    %79 = vector.broadcast %cst_64 : f32 to vector<1x128xf32>
    %80 = arith.mulf %78, %79 : vector<1x128xf32>
    %81 = vector.broadcast %80 : vector<1x128xf32> to vector<64x128xf32>
    %82 = arith.subf %72, %81 : vector<64x128xf32>
    %83 = arith.mulf %82, %82 : vector<64x128xf32>
    %cst_65 = arith.constant dense<0.000000e+00> : vector<128xf32>
    %84 = vector.multi_reduction <add>, %83, %cst_65 [0] : vector<64x128xf32> to vector<128xf32>
    %85 = vector.shape_cast %84 : vector<128xf32> to vector<1x128xf32>
    %c0_66 = arith.constant 0 : index
    %c0_67 = arith.constant 0 : index
    %86 = vector.load %arg3[%c0_66, %c0_67] : memref<128x128xbf16, #tpu.memory_space<vmem>>, vector<128x128xbf16>
    %cst_68 = arith.constant dense<0.000000e+00> : vector<64x128xf32>
    %87 = tpu.matmul %36, %86, %cst_68 {dimension_numbers = #tpu.dot_dimension_numbers<[1], [0], [0], [1], [0, 0, 1, 1], [], []>} : vector<64x128xbf16>, vector<128x128xbf16>, vector<64x128xf32> -> vector<64x128xf32>
    %88 = vector.shape_cast %87 : vector<64x128xf32> to vector<8x8x128xf32>
    %c0_69 = arith.constant 0 : index
    %c0_70 = arith.constant 0 : index
    %c0_71 = arith.constant 0 : index
    %c0_72 = arith.constant 0 : index
    %89 = vector.load %arg5[%c0_69, %c0_70, %c0_71, %c0_72] : memref<1x8x8x128xf32, #tpu.memory_space<vmem>>, vector<1x8x8x128xf32>
    %90 = vector.shape_cast %89 : vector<1x8x8x128xf32> to vector<8x8x128xf32>
    %91 = vector.shape_cast %88 : vector<8x8x128xf32> to vector<1x8x8x128xf32>
    tpu.vector_store %arg5[%c0_69, %c0_70, %c0_71, %c0_72], %91 {strides = array<i32>} : memref<1x8x8x128xf32, #tpu.memory_space<vmem>>, vector<1x8x8x128xf32>,
    %cst_73 = arith.constant dense<0.000000e+00> : vector<128xf32>
    %92 = vector.multi_reduction <add>, %87, %cst_73 [0] : vector<64x128xf32> to vector<128xf32>
    %93 = vector.shape_cast %92 : vector<128xf32> to vector<1x128xf32>
    %cst_74 = arith.constant 1.562500e-02 : f32
    %94 = vector.broadcast %cst_74 : f32 to vector<1x128xf32>
    %95 = arith.mulf %93, %94 : vector<1x128xf32>
    %96 = vector.broadcast %95 : vector<1x128xf32> to vector<64x128xf32>
    %97 = arith.subf %87, %96 : vector<64x128xf32>
    %98 = arith.mulf %97, %97 : vector<64x128xf32>
    %cst_75 = arith.constant dense<0.000000e+00> : vector<128xf32>
    %99 = vector.multi_reduction <add>, %98, %cst_75 [0] : vector<64x128xf32> to vector<128xf32>
    %100 = vector.shape_cast %99 : vector<128xf32> to vector<1x128xf32>
    %101 = tpu.concatenate %78, %85, %93, %100 in 0 : vector<1x128xf32>, vector<1x128xf32>, vector<1x128xf32>, vector<1x128xf32> -> vector<4x128xf32>
    %c0_76 = arith.constant 0 : index
    %c0_77 = arith.constant 0 : index
    %c0_78 = arith.constant 0 : index
    %102 = vector.load %arg6[%c0_76, %c0_77, %c0_78] : memref<1x4x128xf32, #tpu.memory_space<vmem>>, vector<1x4x128xf32>
    %103 = vector.shape_cast %102 : vector<1x4x128xf32> to vector<4x128xf32>
    %104 = vector.shape_cast %101 : vector<4x128xf32> to vector<1x4x128xf32>
    tpu.vector_store %arg6[%c0_76, %c0_77, %c0_78], %104 {strides = array<i32>} : memref<1x4x128xf32, #tpu.memory_space<vmem>>, vector<1x4x128xf32>,
    return
  }
  func.func @transform_0(%arg0: i32) -> (i32, i32, i32, i32) {
    %c0_i32 = arith.constant 0 : i32
    %c0_i32_0 = arith.constant 0 : i32
    %c0_i32_1 = arith.constant 0 : i32
    %c0_i32_2 = arith.constant 0 : i32
    return %arg0, %c0_i32, %c0_i32_0, %c0_i32_1 : i32, i32, i32, i32
  }
  func.func @transform_1(%arg0: i32) -> (i32, i32, i32) {
    %c0_i32 = arith.constant 0 : i32
    %c0_i32_0 = arith.constant 0 : i32
    %c0_i32_1 = arith.constant 0 : i32
    %c0_i32_2 = arith.constant 0 : i32
    return %c0_i32, %c0_i32_0, %c0_i32_1 : i32, i32, i32
  }
  func.func @transform_2(%arg0: i32) -> (i32, i32) {
    %c0_i32 = arith.constant 0 : i32
    %c0_i32_0 = arith.constant 0 : i32
    %c0_i32_1 = arith.constant 0 : i32
    return %c0_i32, %c0_i32_0 : i32, i32
  }
  func.func @transform_3(%arg0: i32) -> (i32, i32, i32, i32) {
    %c0_i32 = arith.constant 0 : i32
    %c0_i32_0 = arith.constant 0 : i32
    %c0_i32_1 = arith.constant 0 : i32
    %c0_i32_2 = arith.constant 0 : i32
    return %arg0, %c0_i32, %c0_i32_0, %c0_i32_1 : i32, i32, i32, i32
  }
  func.func @transform_4(%arg0: i32) -> (i32, i32, i32, i32) {
    %c0_i32 = arith.constant 0 : i32
    %c0_i32_0 = arith.constant 0 : i32
    %c0_i32_1 = arith.constant 0 : i32
    %c0_i32_2 = arith.constant 0 : i32
    return %arg0, %c0_i32, %c0_i32_0, %c0_i32_1 : i32, i32, i32, i32
  }
  func.func @transform_5(%arg0: i32) -> (i32, i32, i32) {
    %c0_i32 = arith.constant 0 : i32
    %c0_i32_0 = arith.constant 0 : i32
    %c0_i32_1 = arith.constant 0 : i32
    return %arg0, %c0_i32, %c0_i32_0 : i32, i32, i32
  }
}

module attributes {stable_mosaic.version = 11 : i64} {
  func.func @conv2_kernel(%arg0: i32, %arg1: memref<1x8x8x128xf32, #tpu.memory_space<vmem>>, %arg2: memref<2x128xf32, #tpu.memory_space<vmem>>, %arg3: memref<9x128x128xbf16, #tpu.memory_space<vmem>>, %arg4: memref<1x8x8x128xf32, #tpu.memory_space<vmem>>, %arg5: memref<1x2x128xf32, #tpu.memory_space<vmem>>, %arg6: memref<10x10x128xf32, #tpu.memory_space<vmem>>) attributes {dimension_semantics = [#tpu.dimension_semantics<parallel>], iteration_bounds = array<i64: 2>, scalar_prefetch = 0 : i64, scratch_operands = 1 : i64, tpu.core_type = #tpu.core_type<tc>, window_params = [{transform_indices = @transform_0, window_bounds = array<i64: 1, 8, 8, 128>}, {pipeline_mode = #tpu.pipeline_mode<synchronous>, transform_indices = @transform_1, window_bounds = array<i64: 2, 128>}, {pipeline_mode = #tpu.pipeline_mode<synchronous>, transform_indices = @transform_2, window_bounds = array<i64: 9, 128, 128>}, {transform_indices = @transform_3, window_bounds = array<i64: 1, 8, 8, 128>}, {transform_indices = @transform_4, window_bounds = array<i64: 1, 2, 128>}]} {
    %c0 = arith.constant 0 : index
    %c0_0 = arith.constant 0 : index
    %0 = vector.load %arg2[%c0, %c0_0] : memref<2x128xf32, #tpu.memory_space<vmem>>, vector<2x128xf32>
    %1 = vector.extract_strided_slice %0 {offsets = [0, 0], sizes = [1, 128], strides = [1, 1]} : vector<2x128xf32> to vector<1x128xf32>
    %2 = vector.shape_cast %1 : vector<1x128xf32> to vector<1x1x128xf32>
    %3 = vector.extract_strided_slice %0 {offsets = [1, 0], sizes = [1, 128], strides = [1, 1]} : vector<2x128xf32> to vector<1x128xf32>
    %4 = vector.shape_cast %3 : vector<1x128xf32> to vector<1x1x128xf32>
    %c0_1 = arith.constant 0 : index
    %c0_2 = arith.constant 0 : index
    %c0_3 = arith.constant 0 : index
    %c0_4 = arith.constant 0 : index
    %5 = vector.load %arg1[%c0_1, %c0_2, %c0_3, %c0_4] : memref<1x8x8x128xf32, #tpu.memory_space<vmem>>, vector<1x8x8x128xf32>
    %6 = vector.shape_cast %5 : vector<1x8x8x128xf32> to vector<8x8x128xf32>
    %7 = vector.broadcast %2 : vector<1x1x128xf32> to vector<8x8x128xf32>
    %8 = arith.mulf %6, %7 : vector<8x8x128xf32>
    %9 = vector.broadcast %4 : vector<1x1x128xf32> to vector<8x8x128xf32>
    %10 = arith.addf %8, %9 : vector<8x8x128xf32>
    %cst = arith.constant 0.000000e+00 : f32
    %11 = vector.broadcast %cst : f32 to vector<8x8x128xf32>
    %12 = arith.maximumf %10, %11 : vector<8x8x128xf32>
    %cst_5 = arith.constant 0.000000e+00 : f32
    %13 = vector.broadcast %cst_5 : f32 to vector<10x10x128xf32>
    %c0_6 = arith.constant 0 : index
    %c0_7 = arith.constant 0 : index
    %c0_8 = arith.constant 0 : index
    %14 = vector.load %arg6[%c0_6, %c0_7, %c0_8] : memref<10x10x128xf32, #tpu.memory_space<vmem>>, vector<10x10x128xf32>
    tpu.vector_store %arg6[%c0_6, %c0_7, %c0_8], %13 {strides = array<i32>} : memref<10x10x128xf32, #tpu.memory_space<vmem>>, vector<10x10x128xf32>,
    %c1 = arith.constant 1 : index
    %c1_9 = arith.constant 1 : index
    %c0_10 = arith.constant 0 : index
    %15 = vector.load %arg6[%c1, %c1_9, %c0_10] : memref<10x10x128xf32, #tpu.memory_space<vmem>>, vector<8x8x128xf32>
    tpu.vector_store %arg6[%c1, %c1_9, %c0_10], %12 {strides = array<i32>} : memref<10x10x128xf32, #tpu.memory_space<vmem>>, vector<8x8x128xf32>,
    %cst_11 = arith.constant 0.000000e+00 : f32
    %16 = vector.broadcast %cst_11 : f32 to vector<64x128xf32>
    %c0_12 = arith.constant 0 : index
    %c0_13 = arith.constant 0 : index
    %c0_14 = arith.constant 0 : index
    %17 = vector.load %arg6[%c0_12, %c0_13, %c0_14] : memref<10x10x128xf32, #tpu.memory_space<vmem>>, vector<8x8x128xf32>
    %18 = vector.shape_cast %17 : vector<8x8x128xf32> to vector<64x128xf32>
    %19 = arith.truncf %18 : vector<64x128xf32> to vector<64x128xbf16>
    %c0_15 = arith.constant 0 : index
    %c0_16 = arith.constant 0 : index
    %c0_17 = arith.constant 0 : index
    %20 = vector.load %arg3[%c0_15, %c0_16, %c0_17] : memref<9x128x128xbf16, #tpu.memory_space<vmem>>, vector<1x128x128xbf16>
    %21 = vector.shape_cast %20 : vector<1x128x128xbf16> to vector<128x128xbf16>
    %cst_18 = arith.constant dense<0.000000e+00> : vector<64x128xf32>
    %22 = tpu.matmul %19, %21, %cst_18 {dimension_numbers = #tpu.dot_dimension_numbers<[1], [0], [0], [1], [0, 0, 1, 1], [], []>} : vector<64x128xbf16>, vector<128x128xbf16>, vector<64x128xf32> -> vector<64x128xf32>
    %23 = arith.addf %16, %22 : vector<64x128xf32>
    %c0_19 = arith.constant 0 : index
    %c1_20 = arith.constant 1 : index
    %c0_21 = arith.constant 0 : index
    %24 = vector.load %arg6[%c0_19, %c1_20, %c0_21] : memref<10x10x128xf32, #tpu.memory_space<vmem>>, vector<8x8x128xf32>
    %25 = vector.shape_cast %24 : vector<8x8x128xf32> to vector<64x128xf32>
    %26 = arith.truncf %25 : vector<64x128xf32> to vector<64x128xbf16>
    %c1_22 = arith.constant 1 : index
    %c0_23 = arith.constant 0 : index
    %c0_24 = arith.constant 0 : index
    %27 = vector.load %arg3[%c1_22, %c0_23, %c0_24] : memref<9x128x128xbf16, #tpu.memory_space<vmem>>, vector<1x128x128xbf16>
    %28 = vector.shape_cast %27 : vector<1x128x128xbf16> to vector<128x128xbf16>
    %cst_25 = arith.constant dense<0.000000e+00> : vector<64x128xf32>
    %29 = tpu.matmul %26, %28, %cst_25 {dimension_numbers = #tpu.dot_dimension_numbers<[1], [0], [0], [1], [0, 0, 1, 1], [], []>} : vector<64x128xbf16>, vector<128x128xbf16>, vector<64x128xf32> -> vector<64x128xf32>
    %30 = arith.addf %23, %29 : vector<64x128xf32>
    %c0_26 = arith.constant 0 : index
    %c2 = arith.constant 2 : index
    %c0_27 = arith.constant 0 : index
    %31 = vector.load %arg6[%c0_26, %c2, %c0_27] : memref<10x10x128xf32, #tpu.memory_space<vmem>>, vector<8x8x128xf32>
    %32 = vector.shape_cast %31 : vector<8x8x128xf32> to vector<64x128xf32>
    %33 = arith.truncf %32 : vector<64x128xf32> to vector<64x128xbf16>
    %c2_28 = arith.constant 2 : index
    %c0_29 = arith.constant 0 : index
    %c0_30 = arith.constant 0 : index
    %34 = vector.load %arg3[%c2_28, %c0_29, %c0_30] : memref<9x128x128xbf16, #tpu.memory_space<vmem>>, vector<1x128x128xbf16>
    %35 = vector.shape_cast %34 : vector<1x128x128xbf16> to vector<128x128xbf16>
    %cst_31 = arith.constant dense<0.000000e+00> : vector<64x128xf32>
    %36 = tpu.matmul %33, %35, %cst_31 {dimension_numbers = #tpu.dot_dimension_numbers<[1], [0], [0], [1], [0, 0, 1, 1], [], []>} : vector<64x128xbf16>, vector<128x128xbf16>, vector<64x128xf32> -> vector<64x128xf32>
    %37 = arith.addf %30, %36 : vector<64x128xf32>
    %c1_32 = arith.constant 1 : index
    %c0_33 = arith.constant 0 : index
    %c0_34 = arith.constant 0 : index
    %38 = vector.load %arg6[%c1_32, %c0_33, %c0_34] : memref<10x10x128xf32, #tpu.memory_space<vmem>>, vector<8x8x128xf32>
    %39 = vector.shape_cast %38 : vector<8x8x128xf32> to vector<64x128xf32>
    %40 = arith.truncf %39 : vector<64x128xf32> to vector<64x128xbf16>
    %c3 = arith.constant 3 : index
    %c0_35 = arith.constant 0 : index
    %c0_36 = arith.constant 0 : index
    %41 = vector.load %arg3[%c3, %c0_35, %c0_36] : memref<9x128x128xbf16, #tpu.memory_space<vmem>>, vector<1x128x128xbf16>
    %42 = vector.shape_cast %41 : vector<1x128x128xbf16> to vector<128x128xbf16>
    %cst_37 = arith.constant dense<0.000000e+00> : vector<64x128xf32>
    %43 = tpu.matmul %40, %42, %cst_37 {dimension_numbers = #tpu.dot_dimension_numbers<[1], [0], [0], [1], [0, 0, 1, 1], [], []>} : vector<64x128xbf16>, vector<128x128xbf16>, vector<64x128xf32> -> vector<64x128xf32>
    %44 = arith.addf %37, %43 : vector<64x128xf32>
    %c1_38 = arith.constant 1 : index
    %c1_39 = arith.constant 1 : index
    %c0_40 = arith.constant 0 : index
    %45 = vector.load %arg6[%c1_38, %c1_39, %c0_40] : memref<10x10x128xf32, #tpu.memory_space<vmem>>, vector<8x8x128xf32>
    %46 = vector.shape_cast %45 : vector<8x8x128xf32> to vector<64x128xf32>
    %47 = arith.truncf %46 : vector<64x128xf32> to vector<64x128xbf16>
    %c4 = arith.constant 4 : index
    %c0_41 = arith.constant 0 : index
    %c0_42 = arith.constant 0 : index
    %48 = vector.load %arg3[%c4, %c0_41, %c0_42] : memref<9x128x128xbf16, #tpu.memory_space<vmem>>, vector<1x128x128xbf16>
    %49 = vector.shape_cast %48 : vector<1x128x128xbf16> to vector<128x128xbf16>
    %cst_43 = arith.constant dense<0.000000e+00> : vector<64x128xf32>
    %50 = tpu.matmul %47, %49, %cst_43 {dimension_numbers = #tpu.dot_dimension_numbers<[1], [0], [0], [1], [0, 0, 1, 1], [], []>} : vector<64x128xbf16>, vector<128x128xbf16>, vector<64x128xf32> -> vector<64x128xf32>
    %51 = arith.addf %44, %50 : vector<64x128xf32>
    %c1_44 = arith.constant 1 : index
    %c2_45 = arith.constant 2 : index
    %c0_46 = arith.constant 0 : index
    %52 = vector.load %arg6[%c1_44, %c2_45, %c0_46] : memref<10x10x128xf32, #tpu.memory_space<vmem>>, vector<8x8x128xf32>
    %53 = vector.shape_cast %52 : vector<8x8x128xf32> to vector<64x128xf32>
    %54 = arith.truncf %53 : vector<64x128xf32> to vector<64x128xbf16>
    %c5 = arith.constant 5 : index
    %c0_47 = arith.constant 0 : index
    %c0_48 = arith.constant 0 : index
    %55 = vector.load %arg3[%c5, %c0_47, %c0_48] : memref<9x128x128xbf16, #tpu.memory_space<vmem>>, vector<1x128x128xbf16>
    %56 = vector.shape_cast %55 : vector<1x128x128xbf16> to vector<128x128xbf16>
    %cst_49 = arith.constant dense<0.000000e+00> : vector<64x128xf32>
    %57 = tpu.matmul %54, %56, %cst_49 {dimension_numbers = #tpu.dot_dimension_numbers<[1], [0], [0], [1], [0, 0, 1, 1], [], []>} : vector<64x128xbf16>, vector<128x128xbf16>, vector<64x128xf32> -> vector<64x128xf32>
    %58 = arith.addf %51, %57 : vector<64x128xf32>
    %c2_50 = arith.constant 2 : index
    %c0_51 = arith.constant 0 : index
    %c0_52 = arith.constant 0 : index
    %59 = vector.load %arg6[%c2_50, %c0_51, %c0_52] : memref<10x10x128xf32, #tpu.memory_space<vmem>>, vector<8x8x128xf32>
    %60 = vector.shape_cast %59 : vector<8x8x128xf32> to vector<64x128xf32>
    %61 = arith.truncf %60 : vector<64x128xf32> to vector<64x128xbf16>
    %c6 = arith.constant 6 : index
    %c0_53 = arith.constant 0 : index
    %c0_54 = arith.constant 0 : index
    %62 = vector.load %arg3[%c6, %c0_53, %c0_54] : memref<9x128x128xbf16, #tpu.memory_space<vmem>>, vector<1x128x128xbf16>
    %63 = vector.shape_cast %62 : vector<1x128x128xbf16> to vector<128x128xbf16>
    %cst_55 = arith.constant dense<0.000000e+00> : vector<64x128xf32>
    %64 = tpu.matmul %61, %63, %cst_55 {dimension_numbers = #tpu.dot_dimension_numbers<[1], [0], [0], [1], [0, 0, 1, 1], [], []>} : vector<64x128xbf16>, vector<128x128xbf16>, vector<64x128xf32> -> vector<64x128xf32>
    %65 = arith.addf %58, %64 : vector<64x128xf32>
    %c2_56 = arith.constant 2 : index
    %c1_57 = arith.constant 1 : index
    %c0_58 = arith.constant 0 : index
    %66 = vector.load %arg6[%c2_56, %c1_57, %c0_58] : memref<10x10x128xf32, #tpu.memory_space<vmem>>, vector<8x8x128xf32>
    %67 = vector.shape_cast %66 : vector<8x8x128xf32> to vector<64x128xf32>
    %68 = arith.truncf %67 : vector<64x128xf32> to vector<64x128xbf16>
    %c7 = arith.constant 7 : index
    %c0_59 = arith.constant 0 : index
    %c0_60 = arith.constant 0 : index
    %69 = vector.load %arg3[%c7, %c0_59, %c0_60] : memref<9x128x128xbf16, #tpu.memory_space<vmem>>, vector<1x128x128xbf16>
    %70 = vector.shape_cast %69 : vector<1x128x128xbf16> to vector<128x128xbf16>
    %cst_61 = arith.constant dense<0.000000e+00> : vector<64x128xf32>
    %71 = tpu.matmul %68, %70, %cst_61 {dimension_numbers = #tpu.dot_dimension_numbers<[1], [0], [0], [1], [0, 0, 1, 1], [], []>} : vector<64x128xbf16>, vector<128x128xbf16>, vector<64x128xf32> -> vector<64x128xf32>
    %72 = arith.addf %65, %71 : vector<64x128xf32>
    %c2_62 = arith.constant 2 : index
    %c2_63 = arith.constant 2 : index
    %c0_64 = arith.constant 0 : index
    %73 = vector.load %arg6[%c2_62, %c2_63, %c0_64] : memref<10x10x128xf32, #tpu.memory_space<vmem>>, vector<8x8x128xf32>
    %74 = vector.shape_cast %73 : vector<8x8x128xf32> to vector<64x128xf32>
    %75 = arith.truncf %74 : vector<64x128xf32> to vector<64x128xbf16>
    %c8 = arith.constant 8 : index
    %c0_65 = arith.constant 0 : index
    %c0_66 = arith.constant 0 : index
    %76 = vector.load %arg3[%c8, %c0_65, %c0_66] : memref<9x128x128xbf16, #tpu.memory_space<vmem>>, vector<1x128x128xbf16>
    %77 = vector.shape_cast %76 : vector<1x128x128xbf16> to vector<128x128xbf16>
    %cst_67 = arith.constant dense<0.000000e+00> : vector<64x128xf32>
    %78 = tpu.matmul %75, %77, %cst_67 {dimension_numbers = #tpu.dot_dimension_numbers<[1], [0], [0], [1], [0, 0, 1, 1], [], []>} : vector<64x128xbf16>, vector<128x128xbf16>, vector<64x128xf32> -> vector<64x128xf32>
    %79 = arith.addf %72, %78 : vector<64x128xf32>
    %80 = vector.shape_cast %79 : vector<64x128xf32> to vector<8x8x128xf32>
    %c0_68 = arith.constant 0 : index
    %c0_69 = arith.constant 0 : index
    %c0_70 = arith.constant 0 : index
    %c0_71 = arith.constant 0 : index
    %81 = vector.load %arg4[%c0_68, %c0_69, %c0_70, %c0_71] : memref<1x8x8x128xf32, #tpu.memory_space<vmem>>, vector<1x8x8x128xf32>
    %82 = vector.shape_cast %81 : vector<1x8x8x128xf32> to vector<8x8x128xf32>
    %83 = vector.shape_cast %80 : vector<8x8x128xf32> to vector<1x8x8x128xf32>
    tpu.vector_store %arg4[%c0_68, %c0_69, %c0_70, %c0_71], %83 {strides = array<i32>} : memref<1x8x8x128xf32, #tpu.memory_space<vmem>>, vector<1x8x8x128xf32>,
    %cst_72 = arith.constant dense<0.000000e+00> : vector<128xf32>
    %84 = vector.multi_reduction <add>, %79, %cst_72 [0] : vector<64x128xf32> to vector<128xf32>
    %85 = vector.shape_cast %84 : vector<128xf32> to vector<1x128xf32>
    %cst_73 = arith.constant 1.562500e-02 : f32
    %86 = vector.broadcast %cst_73 : f32 to vector<1x128xf32>
    %87 = arith.mulf %85, %86 : vector<1x128xf32>
    %88 = vector.broadcast %87 : vector<1x128xf32> to vector<64x128xf32>
    %89 = arith.subf %79, %88 : vector<64x128xf32>
    %90 = arith.mulf %89, %89 : vector<64x128xf32>
    %cst_74 = arith.constant dense<0.000000e+00> : vector<128xf32>
    %91 = vector.multi_reduction <add>, %90, %cst_74 [0] : vector<64x128xf32> to vector<128xf32>
    %92 = vector.shape_cast %91 : vector<128xf32> to vector<1x128xf32>
    %93 = tpu.concatenate %85, %92 in 0 : vector<1x128xf32>, vector<1x128xf32> -> vector<2x128xf32>
    %c0_75 = arith.constant 0 : index
    %c0_76 = arith.constant 0 : index
    %c0_77 = arith.constant 0 : index
    %94 = vector.load %arg5[%c0_75, %c0_76, %c0_77] : memref<1x2x128xf32, #tpu.memory_space<vmem>>, vector<1x2x128xf32>
    %95 = vector.shape_cast %94 : vector<1x2x128xf32> to vector<2x128xf32>
    %96 = vector.shape_cast %93 : vector<2x128xf32> to vector<1x2x128xf32>
    tpu.vector_store %arg5[%c0_75, %c0_76, %c0_77], %96 {strides = array<i32>} : memref<1x2x128xf32, #tpu.memory_space<vmem>>, vector<1x2x128xf32>,
    return
  }
  func.func @transform_0(%arg0: i32) -> (i32, i32, i32, i32) {
    %c0_i32 = arith.constant 0 : i32
    %c0_i32_0 = arith.constant 0 : i32
    %c0_i32_1 = arith.constant 0 : i32
    %c0_i32_2 = arith.constant 0 : i32
    return %arg0, %c0_i32, %c0_i32_0, %c0_i32_1 : i32, i32, i32, i32
  }
  func.func @transform_1(%arg0: i32) -> (i32, i32) {
    %c0_i32 = arith.constant 0 : i32
    %c0_i32_0 = arith.constant 0 : i32
    %c0_i32_1 = arith.constant 0 : i32
    return %c0_i32, %c0_i32_0 : i32, i32
  }
  func.func @transform_2(%arg0: i32) -> (i32, i32, i32) {
    %c0_i32 = arith.constant 0 : i32
    %c0_i32_0 = arith.constant 0 : i32
    %c0_i32_1 = arith.constant 0 : i32
    %c0_i32_2 = arith.constant 0 : i32
    return %c0_i32, %c0_i32_0, %c0_i32_1 : i32, i32, i32
  }
  func.func @transform_3(%arg0: i32) -> (i32, i32, i32, i32) {
    %c0_i32 = arith.constant 0 : i32
    %c0_i32_0 = arith.constant 0 : i32
    %c0_i32_1 = arith.constant 0 : i32
    %c0_i32_2 = arith.constant 0 : i32
    return %arg0, %c0_i32, %c0_i32_0, %c0_i32_1 : i32, i32, i32, i32
  }
  func.func @transform_4(%arg0: i32) -> (i32, i32, i32) {
    %c0_i32 = arith.constant 0 : i32
    %c0_i32_0 = arith.constant 0 : i32
    %c0_i32_1 = arith.constant 0 : i32
    return %arg0, %c0_i32, %c0_i32_0 : i32, i32, i32
  }
}

module attributes {stable_mosaic.version = 11 : i64} {
  func.func @out_kernel(%arg0: i32, %arg1: memref<1x8x8x128xf32, #tpu.memory_space<vmem>>, %arg2: memref<1x8x8x128xf32, #tpu.memory_space<vmem>>, %arg3: memref<2x128xf32, #tpu.memory_space<vmem>>, %arg4: memref<2x128xf32, #tpu.memory_space<vmem>>, %arg5: memref<1x8x8x128xf32, #tpu.memory_space<vmem>>) attributes {dimension_semantics = [#tpu.dimension_semantics<parallel>], iteration_bounds = array<i64: 2>, scalar_prefetch = 0 : i64, scratch_operands = 0 : i64, tpu.core_type = #tpu.core_type<tc>, window_params = [{transform_indices = @transform_0, window_bounds = array<i64: 1, 8, 8, 128>}, {transform_indices = @transform_1, window_bounds = array<i64: 1, 8, 8, 128>}, {pipeline_mode = #tpu.pipeline_mode<synchronous>, transform_indices = @transform_2, window_bounds = array<i64: 2, 128>}, {pipeline_mode = #tpu.pipeline_mode<synchronous>, transform_indices = @transform_3, window_bounds = array<i64: 2, 128>}, {transform_indices = @transform_4, window_bounds = array<i64: 1, 8, 8, 128>}]} {
    %c0 = arith.constant 0 : index
    %c0_0 = arith.constant 0 : index
    %0 = vector.load %arg3[%c0, %c0_0] : memref<2x128xf32, #tpu.memory_space<vmem>>, vector<2x128xf32>
    %c0_1 = arith.constant 0 : index
    %c0_2 = arith.constant 0 : index
    %1 = vector.load %arg4[%c0_1, %c0_2] : memref<2x128xf32, #tpu.memory_space<vmem>>, vector<2x128xf32>
    %c0_3 = arith.constant 0 : index
    %c0_4 = arith.constant 0 : index
    %c0_5 = arith.constant 0 : index
    %c0_6 = arith.constant 0 : index
    %2 = vector.load %arg1[%c0_3, %c0_4, %c0_5, %c0_6] : memref<1x8x8x128xf32, #tpu.memory_space<vmem>>, vector<1x8x8x128xf32>
    %3 = vector.shape_cast %2 : vector<1x8x8x128xf32> to vector<8x8x128xf32>
    %4 = vector.extract_strided_slice %0 {offsets = [0, 0], sizes = [1, 128], strides = [1, 1]} : vector<2x128xf32> to vector<1x128xf32>
    %5 = vector.shape_cast %4 : vector<1x128xf32> to vector<1x1x128xf32>
    %6 = vector.broadcast %5 : vector<1x1x128xf32> to vector<8x8x128xf32>
    %7 = arith.mulf %3, %6 : vector<8x8x128xf32>
    %8 = vector.extract_strided_slice %0 {offsets = [1, 0], sizes = [1, 128], strides = [1, 1]} : vector<2x128xf32> to vector<1x128xf32>
    %9 = vector.shape_cast %8 : vector<1x128xf32> to vector<1x1x128xf32>
    %10 = vector.broadcast %9 : vector<1x1x128xf32> to vector<8x8x128xf32>
    %11 = arith.addf %7, %10 : vector<8x8x128xf32>
    %c0_7 = arith.constant 0 : index
    %c0_8 = arith.constant 0 : index
    %c0_9 = arith.constant 0 : index
    %c0_10 = arith.constant 0 : index
    %12 = vector.load %arg2[%c0_7, %c0_8, %c0_9, %c0_10] : memref<1x8x8x128xf32, #tpu.memory_space<vmem>>, vector<1x8x8x128xf32>
    %13 = vector.shape_cast %12 : vector<1x8x8x128xf32> to vector<8x8x128xf32>
    %14 = vector.extract_strided_slice %1 {offsets = [0, 0], sizes = [1, 128], strides = [1, 1]} : vector<2x128xf32> to vector<1x128xf32>
    %15 = vector.shape_cast %14 : vector<1x128xf32> to vector<1x1x128xf32>
    %16 = vector.broadcast %15 : vector<1x1x128xf32> to vector<8x8x128xf32>
    %17 = arith.mulf %13, %16 : vector<8x8x128xf32>
    %18 = arith.addf %11, %17 : vector<8x8x128xf32>
    %19 = vector.extract_strided_slice %1 {offsets = [1, 0], sizes = [1, 128], strides = [1, 1]} : vector<2x128xf32> to vector<1x128xf32>
    %20 = vector.shape_cast %19 : vector<1x128xf32> to vector<1x1x128xf32>
    %21 = vector.broadcast %20 : vector<1x1x128xf32> to vector<8x8x128xf32>
    %22 = arith.addf %18, %21 : vector<8x8x128xf32>
    %cst = arith.constant 0.000000e+00 : f32
    %23 = vector.broadcast %cst : f32 to vector<8x8x128xf32>
    %24 = arith.maximumf %22, %23 : vector<8x8x128xf32>
    %c0_11 = arith.constant 0 : index
    %c0_12 = arith.constant 0 : index
    %c0_13 = arith.constant 0 : index
    %c0_14 = arith.constant 0 : index
    %25 = vector.load %arg5[%c0_11, %c0_12, %c0_13, %c0_14] : memref<1x8x8x128xf32, #tpu.memory_space<vmem>>, vector<1x8x8x128xf32>
    %26 = vector.shape_cast %25 : vector<1x8x8x128xf32> to vector<8x8x128xf32>
    %27 = vector.shape_cast %24 : vector<8x8x128xf32> to vector<1x8x8x128xf32>
    tpu.vector_store %arg5[%c0_11, %c0_12, %c0_13, %c0_14], %27 {strides = array<i32>} : memref<1x8x8x128xf32, #tpu.memory_space<vmem>>, vector<1x8x8x128xf32>,
    return
  }
  func.func @transform_0(%arg0: i32) -> (i32, i32, i32, i32) {
    %c0_i32 = arith.constant 0 : i32
    %c0_i32_0 = arith.constant 0 : i32
    %c0_i32_1 = arith.constant 0 : i32
    %c0_i32_2 = arith.constant 0 : i32
    return %arg0, %c0_i32, %c0_i32_0, %c0_i32_1 : i32, i32, i32, i32
  }
  func.func @transform_1(%arg0: i32) -> (i32, i32, i32, i32) {
    %c0_i32 = arith.constant 0 : i32
    %c0_i32_0 = arith.constant 0 : i32
    %c0_i32_1 = arith.constant 0 : i32
    %c0_i32_2 = arith.constant 0 : i32
    return %arg0, %c0_i32, %c0_i32_0, %c0_i32_1 : i32, i32, i32, i32
  }
  func.func @transform_2(%arg0: i32) -> (i32, i32) {
    %c0_i32 = arith.constant 0 : i32
    %c0_i32_0 = arith.constant 0 : i32
    %c0_i32_1 = arith.constant 0 : i32
    return %c0_i32, %c0_i32_0 : i32, i32
  }
  func.func @transform_3(%arg0: i32) -> (i32, i32) {
    %c0_i32 = arith.constant 0 : i32
    %c0_i32_0 = arith.constant 0 : i32
    %c0_i32_1 = arith.constant 0 : i32
    return %c0_i32, %c0_i32_0 : i32, i32
  }
  func.func @transform_4(%arg0: i32) -> (i32, i32, i32, i32) {
    %c0_i32 = arith.constant 0 : i32
    %c0_i32_0 = arith.constant 0 : i32
    %c0_i32_1 = arith.constant 0 : i32
    %c0_i32_2 = arith.constant 0 : i32
    return %arg0, %c0_i32, %c0_i32_0, %c0_i32_1 : i32, i32, i32, i32
  }
}

</mosaic_0001>

<llo_original>
// kernel: basic_block_forward.5
$region0: #{basic_block_forward.5}
  #allocation0 [shape = 'u32[]', space=smem, size = 0x4, offset = 0x4, fixed_abs, tag = 'smem constant byte address 0x4 - core index']
  #allocation1 [shape = 'u32[144,128]{1,0:T(1,128)}', space=vmem, size = 0x12000, scoped, tag = 'internal scratch']
  %s0 = inlined_call_operand.vmem [shape: f32[2,8,8,128], index: 0, kind: input, shape index: {}]
  %s1 = inlined_call_operand.vmem [shape: f32[2,8,8,128], index: 1, kind: input, shape index: {}]
  %s2 = inlined_call_operand.vmem [shape: f32[2,128], index: 2, kind: input, shape index: {}]
  %s3 = inlined_call_operand.vmem [shape: f32[2,128], index: 3, kind: input, shape index: {}]
  %s4 = inlined_call_operand.vmem [shape: f32[2,8,8,128], index: 4, kind: output, shape index: {}]
  %s5 = sld [smem:[#allocation0]]
  $region49: #{basic_block_forward.5} parent=0
    _
  %s7 = ssub.s32 1, %s5
  %s8 = scalar_select 0, %s7, %s5
  loop: start=0, step=1, limit=4
  $region2: #{basic_block_forward.5} parent=0 // loop_pre_header
    _
  $region3: #{basic_block_forward.5} parent=0 // loop_header
    %s10 = sphi 0, %s14
    %p11 = scmp.ge.s32.totalorder %s10, 4
    %s20 = sphi 0, %s22
    %s23 = sphi 0, %s20
    %s24 = sphi 0, %s23
    %s40 = sphi 0, %s24
    %s46 = sphi 0, %s48
    %s49 = sphi 0, %s46
    %s50 = sphi 0, %s49
    %s66 = sphi 0, %s50
    %s70 = sphi 0, %s70
    %s72 = sphi 0, %s70
    %s73 = sphi 0, %s72
    %s87 = sphi 0, %s73
    %s91 = sphi 0, %s91
    %s93 = sphi 0, %s91
    %s94 = sphi 0, %s93
    %s108 = sphi 0, %s94
    %s114 = sphi 0, %s116
    %s117 = sphi 0, %s114
    %s118 = sphi 0, %s117
    %s134 = sphi 0, %s118
  $region4: #{basic_block_forward.5} parent=0 // loop_header_branch
    %13 = sbr.rel (%p11) target = $region8
  $region5: #{basic_block_forward.5} parent=0 // loop_body
    %s15 = ssub.s32 %s10, 1
    %s16 = ssub.s32 %s10, 2
    %s17 = sadd.s32 %s10, 1
    %s18 = ssub.s32 %s10, %s17
    %p19 = scmp.eq.s32.totalorder %s18, 0
    %s21 = sadd.s32 %s20, 1
    %s22 = scalar_select %p19, %s20, %s21
    %p25 = pneg %p19
    %p26 = scmp.eq.s32.totalorder %s10, 1
    %p27 = por %p25, %p26
    %p28 = scmp.ne.s32.totalorder %s20, %s23
    %p29 = scmp.eq.s32.totalorder %s10, 0
    %p30 = por %p28, %p29
    %p31 = scmp.ne.s32.totalorder %s20, %s23
    %p32 = scmp.eq.s32.totalorder %s15, 1
    %p33 = por %p31, %p32
    %p34 = scmp.ne.s32.totalorder %s23, %s24
    %p35 = scmp.eq.s32.totalorder %s15, 0
    %p36 = por %p34, %p35
    %p37 = scmp.ne.s32.totalorder %s23, %s24
    %p38 = scmp.eq.s32.totalorder %s16, 1
    %p39 = por %p37, %p38
    %p41 = scmp.ne.s32.totalorder %s24, %s40
    %p42 = scmp.eq.s32.totalorder %s16, 0
    %p43 = por %p41, %p42
    %s44 = ssub.s32 %s10, %s17
    %p45 = scmp.eq.s32.totalorder %s44, 0
    %s47 = sadd.s32 %s46, 1
    %s48 = scalar_select %p45, %s46, %s47
    %p51 = pneg %p45
    %p52 = scmp.eq.s32.totalorder %s10, 1
    %p53 = por %p51, %p52
    %p54 = scmp.ne.s32.totalorder %s46, %s49
    %p55 = scmp.eq.s32.totalorder %s10, 0
    %p56 = por %p54, %p55
    %p57 = scmp.ne.s32.totalorder %s46, %s49
    %p58 = scmp.eq.s32.totalorder %s15, 1
    %p59 = por %p57, %p58
    %p60 = scmp.ne.s32.totalorder %s49, %s50
    %p61 = scmp.eq.s32.totalorder %s15, 0
    %p62 = por %p60, %p61
    %p63 = scmp.ne.s32.totalorder %s49, %s50
    %p64 = scmp.eq.s32.totalorder %s16, 1
    %p65 = por %p63, %p64
    %p67 = scmp.ne.s32.totalorder %s50, %s66
    %p68 = scmp.eq.s32.totalorder %s16, 0
    %p69 = por %p67, %p68
    %s71 = sadd.s32 %s70, 1
    %p74 = scmp.eq.s32.totalorder %s10, 1
    %p75 = scmp.ne.s32.totalorder %s70, %s72
    %p76 = scmp.eq.s32.totalorder %s10, 0
    %p77 = por %p75, %p76
    %p78 = scmp.ne.s32.totalorder %s70, %s72
    %p79 = scmp.eq.s32.totalorder %s15, 1
    %p80 = por %p78, %p79
    %p81 = scmp.ne.s32.totalorder %s72, %s73
    %p82 = scmp.eq.s32.totalorder %s15, 0
    %p83 = por %p81, %p82
    %p84 = scmp.ne.s32.totalorder %s72, %s73
    %p85 = scmp.eq.s32.totalorder %s16, 1
    %p86 = por %p84, %p85
    %p88 = scmp.ne.s32.totalorder %s73, %s87
    %p89 = scmp.eq.s32.totalorder %s16, 0
    %p90 = por %p88, %p89
    %s92 = sadd.s32 %s91, 1
    %p95 = scmp.eq.s32.totalorder %s10, 1
    %p96 = scmp.ne.s32.totalorder %s91, %s93
    %p97 = scmp.eq.s32.totalorder %s10, 0
    %p98 = por %p96, %p97
    %p99 = scmp.ne.s32.totalorder %s91, %s93
    %p100 = scmp.eq.s32.totalorder %s15, 1
    %p101 = por %p99, %p100
    %p102 = scmp.ne.s32.totalorder %s93, %s94
    %p103 = scmp.eq.s32.totalorder %s15, 0
    %p104 = por %p102, %p103
    %p105 = scmp.ne.s32.totalorder %s93, %s94
    %p106 = scmp.eq.s32.totalorder %s16, 1
    %p107 = por %p105, %p106
    %p109 = scmp.ne.s32.totalorder %s94, %s108
    %p110 = scmp.eq.s32.totalorder %s16, 0
    %p111 = por %p109, %p110
    %s112 = ssub.s32 %s10, %s17
    %p113 = scmp.eq.s32.totalorder %s112, 0
    %s115 = sadd.s32 %s114, 1
    %s116 = scalar_select %p113, %s114, %s115
    %p119 = pneg %p113
    %p120 = scmp.eq.s32.totalorder %s10, 1
    %p121 = por %p119, %p120
    %p122 = scmp.ne.s32.totalorder %s114, %s117
    %p123 = scmp.eq.s32.totalorder %s10, 0
    %p124 = por %p122, %p123
    %p125 = scmp.ne.s32.totalorder %s114, %s117
    %p126 = scmp.eq.s32.totalorder %s15, 1
    %p127 = por %p125, %p126
    %p128 = scmp.ne.s32.totalorder %s117, %s118
    %p129 = scmp.eq.s32.totalorder %s15, 0
    %p130 = por %p128, %p129
    %p131 = scmp.ne.s32.totalorder %s117, %s118
    %p132 = scmp.eq.s32.totalorder %s16, 1
    %p133 = por %p131, %p132
    %p135 = scmp.ne.s32.totalorder %s118, %s134
    %p136 = scmp.eq.s32.totalorder %s16, 0
    %p137 = por %p135, %p136
    %p138 = scmp.le.s32.totalorder 1, %s10
    %p139 = scmp.lt.s32.totalorder %s10, 3
    %p140 = pnand %p138, %p139
    %p141 = pneg %p140
    // Predicated region
    $region9: #{basic_block_forward.5} parent=5 // pred_check
      _
    $region10: #{basic_block_forward.5} parent=5 // pred_check_branch
      %143 = sbr.rel (%p140) target = $region12
    $region11: #{basic_block_forward.5} parent=5 // pred_region
      %s144 = ssub.s32 %s10, 1
      // Predicated region
      $region13: #{basic_block_forward.5} parent=11 // pred_check
        %p145 = pneg %p83
      $region14: #{basic_block_forward.5} parent=11 // pred_check_branch
        %147 = sbr.rel (%p145) target = $region16
      $region15: #{basic_block_forward.5} parent=11 // pred_region
        _
      $region16: #{basic_block_forward.5} parent=11 // pred_fallthru
        _
      // Predicated region
      $region17: #{basic_block_forward.5} parent=11 // pred_check
        %p148 = pneg %p104
      $region18: #{basic_block_forward.5} parent=11 // pred_check_branch
        %150 = sbr.rel (%p148) target = $region20
      $region19: #{basic_block_forward.5} parent=11 // pred_region
        _
      $region20: #{basic_block_forward.5} parent=11 // pred_fallthru
        _
    $region12: #{basic_block_forward.5} parent=5 // pred_fallthru
      _
    %p151 = scmp.lt.s32.totalorder %s10, 2
    // Predicated region
    $region21: #{basic_block_forward.5} parent=5 // pred_check
      %p152 = pneg %p151
    $region22: #{basic_block_forward.5} parent=5 // pred_check_branch
      %154 = sbr.rel (%p152) target = $region24
    $region23: #{basic_block_forward.5} parent=5 // pred_region
      // Predicated region
      $region25: #{basic_block_forward.5} parent=23 // pred_check
        %p155 = pneg %p30
      $region26: #{basic_block_forward.5} parent=23 // pred_check_branch
        %157 = sbr.rel (%p155) target = $region28
      $region27: #{basic_block_forward.5} parent=23 // pred_region
        %p158 = scmp.lt.s32.totalorder %s10, 1
        %s159 = scalar_select %p158, %s10, 1
        %s160 = smul.addr %s159, 8
        %s161 = smul.addr %s160, 8
        %s162 = scalar_lea.vmem %s0, %s161
      $region28: #{basic_block_forward.5} parent=23 // pred_fallthru
        _
      // Predicated region
      $region29: #{basic_block_forward.5} parent=23 // pred_check
        %p163 = pneg %p56
      $region30: #{basic_block_forward.5} parent=23 // pred_check_branch
        %165 = sbr.rel (%p163) target = $region32
      $region31: #{basic_block_forward.5} parent=23 // pred_region
        %p166 = scmp.lt.s32.totalorder %s10, 1
        %s167 = scalar_select %p166, %s10, 1
        %s168 = smul.addr %s167, 8
        %s169 = smul.addr %s168, 8
        %s170 = scalar_lea.vmem %s1, %s169
      $region32: #{basic_block_forward.5} parent=23 // pred_fallthru
        _
    $region24: #{basic_block_forward.5} parent=5 // pred_fallthru
      _
    %p171 = scmp.le.s32.totalorder 1, %s10
    %p172 = scmp.lt.s32.totalorder %s10, 3
    %p173 = pnand %p171, %p172
    %p174 = pneg %p173
    // Predicated region
    $region33: #{basic_block_forward.5} parent=5 // pred_check
      _
    $region34: #{basic_block_forward.5} parent=5 // pred_check_branch
      %176 = sbr.rel (%p173) target = $region36
    $region35: #{basic_block_forward.5} parent=5 // pred_region
      %s177 = ssub.s32 %s10, 1
      %p178 = scmp.lt.s32.totalorder %s15, 1
      %s179 = scalar_select %p178, %s15, 1
      %s180 = smul.addr %s179, 8
      %s181 = smul.addr %s180, 8
      %s182 = scalar_lea.vmem %s0, %s181
      %p183 = pneg %p36
      %p184 = pneg %p33
      %p185 = scmp.lt.s32.totalorder %s15, 1
      %s186 = scalar_select %p185, %s15, 1
      %s187 = smul.addr %s186, 8
      %s188 = smul.addr %s187, 8
      %s189 = scalar_lea.vmem %s1, %s188
      %p190 = pneg %p62
      %p191 = pneg %p59
      %p192 = pneg %p83
      %p193 = pneg %p80
      %p194 = pneg %p104
      %p195 = pneg %p101
      %p196 = pneg %p130
      %p197 = pneg %p127
      %p198 = scmp.lt.s32.totalorder %s15, 1
      %s199 = scalar_select %p198, %s15, 1
      %s200 = smul.addr %s199, 8
      %s201 = smul.addr %s200, 8
      %s202 = scalar_lea.vmem %s4, %s201
      %p203 = scmp.lt.s32.totalorder %s15, 1
      %s204 = scalar_select %p203, %s15, 1
      %s205 = smul.addr %s204, 8
      %s206 = smul.addr %s205, 8
      %s207 = scalar_lea.vmem %s0, %s206
      %p208 = scmp.lt.s32.totalorder %s15, 1
      %s209 = scalar_select %p208, %s15, 1
      %s210 = smul.addr %s209, 8
      %s211 = smul.addr %s210, 8
      %s212 = scalar_lea.vmem %s1, %s211
      %p213 = scmp.lt.s32.totalorder %s15, 1
      %s214 = scalar_select %p213, %s15, 1
      %s215 = smul.addr %s214, 8
      %s216 = smul.addr %s215, 8
      %s217 = scalar_lea.vmem %s4, %s216
      %v218 = vld [vmem:[%s2] sm:$0x3]
      %v219 = vld [vmem:[%s3] sm:$0x3]
      %v220 = vld [vmem:[%s207] sm:$0xff]
      %v221 = vld [vmem:[%s207 + $0x8] sm:$0xff]
      %v222 = vld [vmem:[%s207 + $0x10] sm:$0xff]
      %v223 = vld [vmem:[%s207 + $0x18] sm:$0xff]
      %v224 = vld [vmem:[%s207 + $0x20] sm:$0xff]
      %v225 = vld [vmem:[%s207 + $0x28] sm:$0xff]
      %v226 = vld [vmem:[%s207 + $0x30] sm:$0xff]
      %v227 = vld [vmem:[%s207 + $0x38] sm:$0xff]
      %v228 = vlaneseq
      %v229 = vshrl.u32 %v228, 7
      %v230 = vsub.s32 0, %v229
      %v231 = vrot.slane %v218, %v230
      %v232 = vmul.f32 %v220, %v231
      %v233 = vmul.f32 %v221, %v231
      %v234 = vmul.f32 %v222, %v231
      %v235 = vmul.f32 %v223, %v231
      %v236 = vmul.f32 %v224, %v231
      %v237 = vmul.f32 %v225, %v231
      %v238 = vmul.f32 %v226, %v231
      %v239 = vmul.f32 %v227, %v231
      %v240 = vlaneseq
      %v241 = vshrl.u32 %v240, 7
      %v242 = vsub.s32 1, %v241
      %v243 = vrot.slane %v218, %v242
      %v244 = vadd.f32 %v232, %v243
      %v245 = vadd.f32 %v233, %v243
      %v246 = vadd.f32 %v234, %v243
      %v247 = vadd.f32 %v235, %v243
      %v248 = vadd.f32 %v236, %v243
      %v249 = vadd.f32 %v237, %v243
      %v250 = vadd.f32 %v238, %v243
      %v251 = vadd.f32 %v239, %v243
      %v252 = vld [vmem:[%s212] sm:$0xff]
      %v253 = vld [vmem:[%s212 + $0x8] sm:$0xff]
      %v254 = vld [vmem:[%s212 + $0x10] sm:$0xff]
      %v255 = vld [vmem:[%s212 + $0x18] sm:$0xff]
      %v256 = vld [vmem:[%s212 + $0x20] sm:$0xff]
      %v257 = vld [vmem:[%s212 + $0x28] sm:$0xff]
      %v258 = vld [vmem:[%s212 + $0x30] sm:$0xff]
      %v259 = vld [vmem:[%s212 + $0x38] sm:$0xff]
      %v260 = vlaneseq
      %v261 = vshrl.u32 %v260, 7
      %v262 = vsub.s32 0, %v261
      %v263 = vrot.slane %v219, %v262
      %v264 = vmul.f32 %v252, %v263
      %v265 = vmul.f32 %v253, %v263
      %v266 = vmul.f32 %v254, %v263
      %v267 = vmul.f32 %v255, %v263
      %v268 = vmul.f32 %v256, %v263
      %v269 = vmul.f32 %v257, %v263
      %v270 = vmul.f32 %v258, %v263
      %v271 = vmul.f32 %v259, %v263
      %v272 = vadd.f32 %v244, %v264
      %v273 = vadd.f32 %v245, %v265
      %v274 = vadd.f32 %v246, %v266
      %v275 = vadd.f32 %v247, %v267
      %v276 = vadd.f32 %v248, %v268
      %v277 = vadd.f32 %v249, %v269
      %v278 = vadd.f32 %v250, %v270
      %v279 = vadd.f32 %v251, %v271
      %v280 = vlaneseq
      %v281 = vshrl.u32 %v280, 7
      %v282 = vsub.s32 1, %v281
      %v283 = vrot.slane %v219, %v282
      %v284 = vadd.f32 %v272, %v283
      %v285 = vadd.f32 %v273, %v283
      %v286 = vadd.f32 %v274, %v283
      %v287 = vadd.f32 %v275, %v283
      %v288 = vadd.f32 %v276, %v283
      %v289 = vadd.f32 %v277, %v283
      %v290 = vadd.f32 %v278, %v283
      %v291 = vadd.f32 %v279, %v283
      %v292 = vmax.f32 %v284, 0.0
      %v293 = vmax.f32 %v285, 0.0
      %v294 = vmax.f32 %v286, 0.0
      %v295 = vmax.f32 %v287, 0.0
      %v296 = vmax.f32 %v288, 0.0
      %v297 = vmax.f32 %v289, 0.0
      %v298 = vmax.f32 %v290, 0.0
      %v299 = vmax.f32 %v291, 0.0
      %300 = vst [vmem:[%s217] sm:$0xff] %v292
      %301 = vst [vmem:[%s217 + $0x8] sm:$0xff] %v293
      %302 = vst [vmem:[%s217 + $0x10] sm:$0xff] %v294
      %303 = vst [vmem:[%s217 + $0x18] sm:$0xff] %v295
      %304 = vst [vmem:[%s217 + $0x20] sm:$0xff] %v296
      %305 = vst [vmem:[%s217 + $0x28] sm:$0xff] %v297
      %306 = vst [vmem:[%s217 + $0x30] sm:$0xff] %v298
      %307 = vst [vmem:[%s217 + $0x38] sm:$0xff] %v299
      %p308 = scmp.lt.s32.totalorder %s15, 1
      %s309 = scalar_select %p308, %s15, 1
      %s310 = smul.addr %s309, 8
      %s311 = smul.addr %s310, 8
      %s312 = scalar_lea.vmem %s4, %s311
      // Predicated region
      $region37: #{basic_block_forward.5} parent=35 // pred_check
        %p313 = pneg %p127
      $region38: #{basic_block_forward.5} parent=35 // pred_check_branch
        %315 = sbr.rel (%p313) target = $region40
      $region39: #{basic_block_forward.5} parent=35 // pred_region
        _
      $region40: #{basic_block_forward.5} parent=35 // pred_fallthru
        _
    $region36: #{basic_block_forward.5} parent=5 // pred_fallthru
      _
    %p316 = scmp.le.s32.totalorder 2, %s10
    // Predicated region
    $region41: #{basic_block_forward.5} parent=5 // pred_check
      %p317 = pneg %p316
    $region42: #{basic_block_forward.5} parent=5 // pred_check_branch
      %319 = sbr.rel (%p317) target = $region44
    $region43: #{basic_block_forward.5} parent=5 // pred_region
      %s320 = ssub.s32 %s10, 2
      // Predicated region
      $region45: #{basic_block_forward.5} parent=43 // pred_check
        %p321 = pneg %p133
      $region46: #{basic_block_forward.5} parent=43 // pred_check_branch
        %323 = sbr.rel (%p321) target = $region48
      $region47: #{basic_block_forward.5} parent=43 // pred_region
        %p324 = scmp.lt.s32.totalorder %s16, 1
        %s325 = scalar_select %p324, %s16, 1
        %s326 = smul.addr %s325, 8
        %s327 = smul.addr %s326, 8
        %s328 = scalar_lea.vmem %s4, %s327
      $region48: #{basic_block_forward.5} parent=43 // pred_fallthru
        _
    $region44: #{basic_block_forward.5} parent=5 // pred_fallthru
      _
  $region6: #{basic_block_forward.5} parent=0 // loop_footer
    %s14 = sadd.s32 1, %s10
  $region7: #{basic_block_forward.5} parent=0 // loop_footer_branch
    %9 = sbr.rel target = $region3
  $region8: #{basic_block_forward.5} parent=0 // loop_exit
    _

// kernel: basic_block_forward.3
$region0: #{basic_block_forward.3}
  #allocation0 [shape = 'u32[]', space=smem, size = 0x4, offset = 0x4, fixed_abs, tag = 'smem constant byte address 0x4 - core index']
  #allocation1 [shape = 'u32[144,128]{1,0:T(1,128)}', space=vmem, size = 0x12000, scoped, tag = 'internal scratch']
  %s0 = inlined_call_operand.vmem [shape: f32[2,36,9,128], index: 0, kind: input, shape index: {}]
  %s1 = inlined_call_operand.vmem [shape: bf16[9,128,128], index: 1, kind: input, shape index: {}]
  %s2 = inlined_call_operand.vmem [shape: bf16[128,128], index: 2, kind: input, shape index: {}]
  %s3 = inlined_call_operand.vmem [shape: f32[2,8,8,128], index: 3, kind: output, shape index: {0}]
  %s4 = inlined_call_operand.vmem [shape: f32[2,8,8,128], index: 4, kind: output, shape index: {1}]
  %s5 = inlined_call_operand.vmem [shape: f32[2,4,128], index: 5, kind: output, shape index: {2}]
  %6 = xla_tuple %s3, %s4, %s5
  %s7 = sld [smem:[#allocation0]]
  $region61: #{basic_block_forward.3} parent=0
    _
  %s9 = ssub.s32 1, %s7
  %s10 = scalar_select 0, %s9, %s7
  loop: start=0, step=1, limit=4
  $region2: #{basic_block_forward.3} parent=0 // loop_pre_header
    _
  $region3: #{basic_block_forward.3} parent=0 // loop_header
    %s12 = sphi 0, %s16
    %p13 = scmp.ge.s32.totalorder %s12, 4
    %s22 = sphi 0, %s24
    %s25 = sphi 0, %s22
    %s26 = sphi 0, %s25
    %s42 = sphi 0, %s26
    %s46 = sphi 0, %s46
    %s48 = sphi 0, %s46
    %s49 = sphi 0, %s48
    %s63 = sphi 0, %s49
    %s67 = sphi 0, %s67
    %s69 = sphi 0, %s67
    %s70 = sphi 0, %s69
    %s84 = sphi 0, %s70
    %s90 = sphi 0, %s92
    %s93 = sphi 0, %s90
    %s94 = sphi 0, %s93
    %s110 = sphi 0, %s94
    %s116 = sphi 0, %s118
    %s119 = sphi 0, %s116
    %s120 = sphi 0, %s119
    %s136 = sphi 0, %s120
    %s142 = sphi 0, %s144
    %s145 = sphi 0, %s142
    %s146 = sphi 0, %s145
    %s162 = sphi 0, %s146
  $region4: #{basic_block_forward.3} parent=0 // loop_header_branch
    %15 = sbr.rel (%p13) target = $region8
  $region5: #{basic_block_forward.3} parent=0 // loop_body
    %s17 = ssub.s32 %s12, 1
    %s18 = ssub.s32 %s12, 2
    %s19 = sadd.s32 %s12, 1
    %s20 = ssub.s32 %s12, %s19
    %p21 = scmp.eq.s32.totalorder %s20, 0
    %s23 = sadd.s32 %s22, 1
    %s24 = scalar_select %p21, %s22, %s23
    %p27 = pneg %p21
    %p28 = scmp.eq.s32.totalorder %s12, 1
    %p29 = por %p27, %p28
    %p30 = scmp.ne.s32.totalorder %s22, %s25
    %p31 = scmp.eq.s32.totalorder %s12, 0
    %p32 = por %p30, %p31
    %p33 = scmp.ne.s32.totalorder %s22, %s25
    %p34 = scmp.eq.s32.totalorder %s17, 1
    %p35 = por %p33, %p34
    %p36 = scmp.ne.s32.totalorder %s25, %s26
    %p37 = scmp.eq.s32.totalorder %s17, 0
    %p38 = por %p36, %p37
    %p39 = scmp.ne.s32.totalorder %s25, %s26
    %p40 = scmp.eq.s32.totalorder %s18, 1
    %p41 = por %p39, %p40
    %p43 = scmp.ne.s32.totalorder %s26, %s42
    %p44 = scmp.eq.s32.totalorder %s18, 0
    %p45 = por %p43, %p44
    %s47 = sadd.s32 %s46, 1
    %p50 = scmp.eq.s32.totalorder %s12, 1
    %p51 = scmp.ne.s32.totalorder %s46, %s48
    %p52 = scmp.eq.s32.totalorder %s12, 0
    %p53 = por %p51, %p52
    %p54 = scmp.ne.s32.totalorder %s46, %s48
    %p55 = scmp.eq.s32.totalorder %s17, 1
    %p56 = por %p54, %p55
    %p57 = scmp.ne.s32.totalorder %s48, %s49
    %p58 = scmp.eq.s32.totalorder %s17, 0
    %p59 = por %p57, %p58
    %p60 = scmp.ne.s32.totalorder %s48, %s49
    %p61 = scmp.eq.s32.totalorder %s18, 1
    %p62 = por %p60, %p61
    %p64 = scmp.ne.s32.totalorder %s49, %s63
    %p65 = scmp.eq.s32.totalorder %s18, 0
    %p66 = por %p64, %p65
    %s68 = sadd.s32 %s67, 1
    %p71 = scmp.eq.s32.totalorder %s12, 1
    %p72 = scmp.ne.s32.totalorder %s67, %s69
    %p73 = scmp.eq.s32.totalorder %s12, 0
    %p74 = por %p72, %p73
    %p75 = scmp.ne.s32.totalorder %s67, %s69
    %p76 = scmp.eq.s32.totalorder %s17, 1
    %p77 = por %p75, %p76
    %p78 = scmp.ne.s32.totalorder %s69, %s70
    %p79 = scmp.eq.s32.totalorder %s17, 0
    %p80 = por %p78, %p79
    %p81 = scmp.ne.s32.totalorder %s69, %s70
    %p82 = scmp.eq.s32.totalorder %s18, 1
    %p83 = por %p81, %p82
    %p85 = scmp.ne.s32.totalorder %s70, %s84
    %p86 = scmp.eq.s32.totalorder %s18, 0
    %p87 = por %p85, %p86
    %s88 = ssub.s32 %s12, %s19
    %p89 = scmp.eq.s32.totalorder %s88, 0
    %s91 = sadd.s32 %s90, 1
    %s92 = scalar_select %p89, %s90, %s91
    %p95 = pneg %p89
    %p96 = scmp.eq.s32.totalorder %s12, 1
    %p97 = por %p95, %p96
    %p98 = scmp.ne.s32.totalorder %s90, %s93
    %p99 = scmp.eq.s32.totalorder %s12, 0
    %p100 = por %p98, %p99
    %p101 = scmp.ne.s32.totalorder %s90, %s93
    %p102 = scmp.eq.s32.totalorder %s17, 1
    %p103 = por %p101, %p102
    %p104 = scmp.ne.s32.totalorder %s93, %s94
    %p105 = scmp.eq.s32.totalorder %s17, 0
    %p106 = por %p104, %p105
    %p107 = scmp.ne.s32.totalorder %s93, %s94
    %p108 = scmp.eq.s32.totalorder %s18, 1
    %p109 = por %p107, %p108
    %p111 = scmp.ne.s32.totalorder %s94, %s110
    %p112 = scmp.eq.s32.totalorder %s18, 0
    %p113 = por %p111, %p112
    %s114 = ssub.s32 %s12, %s19
    %p115 = scmp.eq.s32.totalorder %s114, 0
    %s117 = sadd.s32 %s116, 1
    %s118 = scalar_select %p115, %s116, %s117
    %p121 = pneg %p115
    %p122 = scmp.eq.s32.totalorder %s12, 1
    %p123 = por %p121, %p122
    %p124 = scmp.ne.s32.totalorder %s116, %s119
    %p125 = scmp.eq.s32.totalorder %s12, 0
    %p126 = por %p124, %p125
    %p127 = scmp.ne.s32.totalorder %s116, %s119
    %p128 = scmp.eq.s32.totalorder %s17, 1
    %p129 = por %p127, %p128
    %p130 = scmp.ne.s32.totalorder %s119, %s120
    %p131 = scmp.eq.s32.totalorder %s17, 0
    %p132 = por %p130, %p131
    %p133 = scmp.ne.s32.totalorder %s119, %s120
    %p134 = scmp.eq.s32.totalorder %s18, 1
    %p135 = por %p133, %p134
    %p137 = scmp.ne.s32.totalorder %s120, %s136
    %p138 = scmp.eq.s32.totalorder %s18, 0
    %p139 = por %p137, %p138
    %s140 = ssub.s32 %s12, %s19
    %p141 = scmp.eq.s32.totalorder %s140, 0
    %s143 = sadd.s32 %s142, 1
    %s144 = scalar_select %p141, %s142, %s143
    %p147 = pneg %p141
    %p148 = scmp.eq.s32.totalorder %s12, 1
    %p149 = por %p147, %p148
    %p150 = scmp.ne.s32.totalorder %s142, %s145
    %p151 = scmp.eq.s32.totalorder %s12, 0
    %p152 = por %p150, %p151
    %p153 = scmp.ne.s32.totalorder %s142, %s145
    %p154 = scmp.eq.s32.totalorder %s17, 1
    %p155 = por %p153, %p154
    %p156 = scmp.ne.s32.totalorder %s145, %s146
    %p157 = scmp.eq.s32.totalorder %s17, 0
    %p158 = por %p156, %p157
    %p159 = scmp.ne.s32.totalorder %s145, %s146
    %p160 = scmp.eq.s32.totalorder %s18, 1
    %p161 = por %p159, %p160
    %p163 = scmp.ne.s32.totalorder %s146, %s162
    %p164 = scmp.eq.s32.totalorder %s18, 0
    %p165 = por %p163, %p164
    %p166 = scmp.le.s32.totalorder 1, %s12
    %p167 = scmp.lt.s32.totalorder %s12, 3
    %p168 = pnand %p166, %p167
    %p169 = pneg %p168
    // Predicated region
    $region9: #{basic_block_forward.3} parent=5 // pred_check
      _
    $region10: #{basic_block_forward.3} parent=5 // pred_check_branch
      %171 = sbr.rel (%p168) target = $region12
    $region11: #{basic_block_forward.3} parent=5 // pred_region
      %s172 = ssub.s32 %s12, 1
      // Predicated region
      $region13: #{basic_block_forward.3} parent=11 // pred_check
        %p173 = pneg %p59
      $region14: #{basic_block_forward.3} parent=11 // pred_check_branch
        %175 = sbr.rel (%p173) target = $region16
      $region15: #{basic_block_forward.3} parent=11 // pred_region
        _
      $region16: #{basic_block_forward.3} parent=11 // pred_fallthru
        _
      // Predicated region
      $region17: #{basic_block_forward.3} parent=11 // pred_check
        %p176 = pneg %p80
      $region18: #{basic_block_forward.3} parent=11 // pred_check_branch
        %178 = sbr.rel (%p176) target = $region20
      $region19: #{basic_block_forward.3} parent=11 // pred_region
        _
      $region20: #{basic_block_forward.3} parent=11 // pred_fallthru
        _
    $region12: #{basic_block_forward.3} parent=5 // pred_fallthru
      _
    %p179 = scmp.lt.s32.totalorder %s12, 2
    // Predicated region
    $region21: #{basic_block_forward.3} parent=5 // pred_check
      %p180 = pneg %p179
    $region22: #{basic_block_forward.3} parent=5 // pred_check_branch
      %182 = sbr.rel (%p180) target = $region24
    $region23: #{basic_block_forward.3} parent=5 // pred_region
      // Predicated region
      $region25: #{basic_block_forward.3} parent=23 // pred_check
        %p183 = pneg %p32
      $region26: #{basic_block_forward.3} parent=23 // pred_check_branch
        %185 = sbr.rel (%p183) target = $region28
      $region27: #{basic_block_forward.3} parent=23 // pred_region
        %p186 = scmp.lt.s32.totalorder %s12, 1
        %s187 = scalar_select %p186, %s12, 1
        %s188 = smul.addr %s187, 72
        %s189 = smul.addr %s188, 8
        %s190 = scalar_lea.vmem %s0, %s189
      $region28: #{basic_block_forward.3} parent=23 // pred_fallthru
        _
    $region24: #{basic_block_forward.3} parent=5 // pred_fallthru
      _
    %p191 = scmp.le.s32.totalorder 1, %s12
    %p192 = scmp.lt.s32.totalorder %s12, 3
    %p193 = pnand %p191, %p192
    %p194 = pneg %p193
    // Predicated region
    $region29: #{basic_block_forward.3} parent=5 // pred_check
      _
    $region30: #{basic_block_forward.3} parent=5 // pred_check_branch
      %196 = sbr.rel (%p193) target = $region32
    $region31: #{basic_block_forward.3} parent=5 // pred_region
      %s197 = ssub.s32 %s12, 1
      %p198 = scmp.lt.s32.totalorder %s17, 1
      %s199 = scalar_select %p198, %s17, 1
      %s200 = smul.addr %s199, 72
      %s201 = smul.addr %s200, 8
      %s202 = scalar_lea.vmem %s0, %s201
      %p203 = pneg %p38
      %p204 = pneg %p35
      %p205 = pneg %p59
      %p206 = pneg %p56
      %p207 = pneg %p80
      %p208 = pneg %p77
      %p209 = pneg %p106
      %p210 = pneg %p103
      %p211 = scmp.lt.s32.totalorder %s17, 1
      %s212 = scalar_select %p211, %s17, 1
      %s213 = smul.addr %s212, 8
      %s214 = smul.addr %s213, 8
      %s215 = scalar_lea.vmem %s3, %s214
      %p216 = pneg %p132
      %p217 = pneg %p129
      %p218 = scmp.lt.s32.totalorder %s17, 1
      %s219 = scalar_select %p218, %s17, 1
      %s220 = smul.addr %s219, 8
      %s221 = smul.addr %s220, 8
      %s222 = scalar_lea.vmem %s4, %s221
      %p223 = pneg %p158
      %p224 = pneg %p155
      %p225 = scmp.lt.s32.totalorder %s17, 1
      %s226 = scalar_select %p225, %s17, 1
      %s227 = smul.addr %s226, 4
      %s228 = scalar_lea.vmem %s5, %s227
      %p229 = scmp.lt.s32.totalorder %s17, 1
      %s230 = scalar_select %p229, %s17, 1
      %s231 = smul.addr %s230, 72
      %s232 = smul.addr %s231, 8
      %s233 = scalar_lea.vmem %s0, %s232
      %p234 = scmp.lt.s32.totalorder %s17, 1
      %s235 = scalar_select %p234, %s17, 1
      %s236 = smul.addr %s235, 8
      %s237 = smul.addr %s236, 8
      %s238 = scalar_lea.vmem %s3, %s237
      %p239 = scmp.lt.s32.totalorder %s17, 1
      %s240 = scalar_select %p239, %s17, 1
      %s241 = smul.addr %s240, 8
      %s242 = smul.addr %s241, 8
      %s243 = scalar_lea.vmem %s4, %s242
      %p244 = scmp.lt.s32.totalorder %s17, 1
      %s245 = scalar_select %p244, %s17, 1
      %s246 = smul.addr %s245, 4
      %s247 = scalar_lea.vmem %s5, %s246
      %v249 = vld [vmem:[%s233] sm:$0xff]
      %v250 = vld [vmem:[%s233 + $0x10] sm:$0xff]
      %v251 = vld [vmem:[%s233 + $0x20] sm:$0xff]
      %v252 = vld [vmem:[%s233 + $0x30] sm:$0xff]
      %v253 = vld [vmem:[%s233 + $0x40] sm:$0xff]
      %v254 = vld [vmem:[%s233 + $0x50] sm:$0xff]
      %v255 = vld [vmem:[%s233 + $0x60] sm:$0xff]
      %v256 = vld [vmem:[%s233 + $0x70] sm:$0xff]
      %v257 = vpack.c.bf16 %v250, %v249
      %v258 = vpack.c.bf16 %v252, %v251
      %v259 = vpack.c.bf16 %v254, %v253
      %v260 = vpack.c.bf16 %v256, %v255
      %v261 = vld [vmem:[%s1] sm:$0xf]
      %v262 = vld [vmem:[%s1 + $0x4] sm:$0xf]
      %v263 = vld [vmem:[%s1 + $0x8] sm:$0xf]
      %v264 = vld [vmem:[%s1 + $0xc] sm:$0xf]
      %v265 = vld [vmem:[%s1 + $0x10] sm:$0xf]
      %v266 = vld [vmem:[%s1 + $0x14] sm:$0xf]
      %v267 = vld [vmem:[%s1 + $0x18] sm:$0xf]
      %v268 = vld [vmem:[%s1 + $0x1c] sm:$0xf]
      %v269 = vld [vmem:[%s1 + $0x20] sm:$0xf]
      %v270 = vld [vmem:[%s1 + $0x24] sm:$0xf]
      %v271 = vld [vmem:[%s1 + $0x28] sm:$0xf]
      %v272 = vld [vmem:[%s1 + $0x2c] sm:$0xf]
      %v273 = vld [vmem:[%s1 + $0x30] sm:$0xf]
      %v274 = vld [vmem:[%s1 + $0x34] sm:$0xf]
      %v275 = vld [vmem:[%s1 + $0x38] sm:$0xf]
      %v276 = vld [vmem:[%s1 + $0x3c] sm:$0xf]
      %s277 = scalar_lea.vmem %s233, 144
      %v278 = vld [vmem:[%s277] sm:$0xff]
      %v279 = vld [vmem:[%s277 + $0x10] sm:$0xff]
      %v280 = vld [vmem:[%s277 + $0x20] sm:$0xff]
      %v281 = vld [vmem:[%s277 + $0x30] sm:$0xff]
      %v282 = vld [vmem:[%s277 + $0x40] sm:$0xff]
      %v283 = vld [vmem:[%s277 + $0x50] sm:$0xff]
      %v284 = vld [vmem:[%s277 + $0x60] sm:$0xff]
      %v285 = vld [vmem:[%s277 + $0x70] sm:$0xff]
      %v286 = vpack.c.bf16 %v279, %v278
      %v287 = vpack.c.bf16 %v281, %v280
      %v288 = vpack.c.bf16 %v283, %v282
      %v289 = vpack.c.bf16 %v285, %v284
      %s290 = scalar_lea.vmem %s1, 64
      %v291 = vld [vmem:[%s290] sm:$0xf]
      %v292 = vld [vmem:[%s290 + $0x4] sm:$0xf]
      %v293 = vld [vmem:[%s290 + $0x8] sm:$0xf]
      %v294 = vld [vmem:[%s290 + $0xc] sm:$0xf]
      %v295 = vld [vmem:[%s290 + $0x10] sm:$0xf]
      %v296 = vld [vmem:[%s290 + $0x14] sm:$0xf]
      %v297 = vld [vmem:[%s290 + $0x18] sm:$0xf]
      %v298 = vld [vmem:[%s290 + $0x1c] sm:$0xf]
      %v299 = vld [vmem:[%s290 + $0x20] sm:$0xf]
      %v300 = vld [vmem:[%s290 + $0x24] sm:$0xf]
      %v301 = vld [vmem:[%s290 + $0x28] sm:$0xf]
      %v302 = vld [vmem:[%s290 + $0x2c] sm:$0xf]
      %v303 = vld [vmem:[%s290 + $0x30] sm:$0xf]
      %v304 = vld [vmem:[%s290 + $0x34] sm:$0xf]
      %v305 = vld [vmem:[%s290 + $0x38] sm:$0xf]
      %v306 = vld [vmem:[%s290 + $0x3c] sm:$0xf]
      %v323 = vunpack.c.l.b16 %v291
      %v324 = vunpack.c.l.b16 %v292
      %v325 = vunpack.c.l.b16 %v293
      %v326 = vunpack.c.l.b16 %v294
      %v327 = vunpack.c.l.b16 %v295
      %v328 = vunpack.c.l.b16 %v296
      %v329 = vunpack.c.l.b16 %v297
      %v330 = vunpack.c.l.b16 %v298
      %v331 = vunpack.c.l.b16 %v299
      %v332 = vunpack.c.l.b16 %v300
      %v333 = vunpack.c.l.b16 %v301
      %v334 = vunpack.c.l.b16 %v302
      %v335 = vunpack.c.l.b16 %v303
      %v336 = vunpack.c.l.b16 %v304
      %v337 = vunpack.c.l.b16 %v305
      %v338 = vunpack.c.l.b16 %v306
      %v339 = vpack.c.b16 %v324, %v323
      %v340 = vpack.c.b16 %v326, %v325
      %v341 = vpack.c.b16 %v328, %v327
      %v342 = vpack.c.b16 %v330, %v329
      %v343 = vpack.c.b16 %v332, %v331
      %v344 = vpack.c.b16 %v334, %v333
      %v345 = vpack.c.b16 %v336, %v335
      %v346 = vpack.c.b16 %v338, %v337
      %355 = vmatprep.subr.bf16.mxu0 0
      %356 = vmatpush1.bf16.msra.mxu0 %v339
      %357 = vmatprep.subr.bf16.mxu0 0
      %358 = vmatpush1.bf16.msra.mxu0 %v340
      %359 = vmatprep.subr.bf16.mxu0 0
      %360 = vmatpush1.bf16.msra.mxu0 %v341
      %361 = vmatprep.subr.bf16.mxu0 0
      %362 = vmatpush1.bf16.msra.mxu0 %v342
      %363 = vmatprep.subr.bf16.mxu0 0
      %364 = vmatpush1.bf16.msra.mxu0 %v343
      %365 = vmatprep.subr.bf16.mxu0 0
      %366 = vmatpush1.bf16.msra.mxu0 %v344
      %367 = vmatprep.subr.bf16.mxu0 0
      %368 = vmatpush1.bf16.msra.mxu0 %v345
      %369 = vmatprep.subr.bf16.mxu0 0
      %370 = vmatpush1.bf16.msra.mxu0 %v346
      %371 = vmatprep.subr.bf16.mxu0 0
      %372 = vmatpush1.bf16.msra.mxu0 0
      %373 = vmatprep.subr.bf16.mxu0 0
      %374 = vmatpush1.bf16.msra.mxu0 0
      %375 = vmatprep.subr.bf16.mxu0 0
      %376 = vmatpush1.bf16.msra.mxu0 0
      %377 = vmatprep.subr.bf16.mxu0 0
      %378 = vmatpush1.bf16.msra.mxu0 0
      %379 = vmatprep.subr.bf16.mxu0 0
      %380 = vmatpush1.bf16.msra.mxu0 0
      %381 = vmatprep.subr.bf16.mxu0 0
      %382 = vmatpush1.bf16.msra.mxu0 0
      %383 = vmatprep.subr.bf16.mxu0 0
      %384 = vmatpush1.bf16.msra.mxu0 0
      %385 = vmatprep.subr.bf16.mxu0 0
      %386 = vmatpush1.bf16.msra.mxu0 0
      %387 = vmatprep.mubr.bf16.mxu0 0
      %388 = vmatmul.mubr.bf16.gmra.mrb[0].mxu0 %v286
      %v389 = vpop.f32.mrb[0].mxu0
      %v390 = vadd.f32 0.0, %v389
      %v391 = vpop.f32.mrb[0].mxu0
      %v392 = vpop.f32.mrb[0].mxu0
      %v393 = vadd.f32 0.0, %v392
      %v394 = vpop.f32.mrb[0].mxu0
      %395 = vmatprep.mubr.bf16.mxu0 0
      %396 = vmatmul.mubr.bf16.gmra.mrb[0].mxu0 %v287
      %v397 = vpop.f32.mrb[0].mxu0
      %v398 = vadd.f32 0.0, %v397
      %v399 = vpop.f32.mrb[0].mxu0
      %v400 = vpop.f32.mrb[0].mxu0
      %v401 = vadd.f32 0.0, %v400
      %v402 = vpop.f32.mrb[0].mxu0
      %403 = vmatprep.mubr.bf16.mxu0 0
      %404 = vmatmul.mubr.bf16.gmra.mrb[0].mxu0 %v288
      %v405 = vpop.f32.mrb[0].mxu0
      %v406 = vadd.f32 0.0, %v405
      %v407 = vpop.f32.mrb[0].mxu0
      %v408 = vpop.f32.mrb[0].mxu0
      %v409 = vadd.f32 0.0, %v408
      %v410 = vpop.f32.mrb[0].mxu0
      %411 = vmatprep.mubr.bf16.mxu0 0
      %412 = vmatmul.mubr.bf16.gmra.mrb[0].mxu0 %v289
      %v413 = vpop.f32.mrb[0].mxu0
      %v414 = vadd.f32 0.0, %v413
      %v415 = vpop.f32.mrb[0].mxu0
      %v416 = vpop.f32.mrb[0].mxu0
      %v417 = vadd.f32 0.0, %v416
      %v418 = vpop.f32.mrb[0].mxu0
      %419 = vdwg.mxu0
      %v436 = vunpack.c.l.b16 %v261
      %v437 = vunpack.c.l.b16 %v262
      %v438 = vunpack.c.l.b16 %v263
      %v439 = vunpack.c.l.b16 %v264
      %v440 = vunpack.c.l.b16 %v265
      %v441 = vunpack.c.l.b16 %v266
      %v442 = vunpack.c.l.b16 %v267
      %v443 = vunpack.c.l.b16 %v268
      %v444 = vunpack.c.l.b16 %v269
      %v445 = vunpack.c.l.b16 %v270
      %v446 = vunpack.c.l.b16 %v271
      %v447 = vunpack.c.l.b16 %v272
      %v448 = vunpack.c.l.b16 %v273
      %v449 = vunpack.c.l.b16 %v274
      %v450 = vunpack.c.l.b16 %v275
      %v451 = vunpack.c.l.b16 %v276
      %v452 = vpack.c.b16 %v437, %v436
      %v453 = vpack.c.b16 %v439, %v438
      %v454 = vpack.c.b16 %v441, %v440
      %v455 = vpack.c.b16 %v443, %v442
      %v456 = vpack.c.b16 %v445, %v444
      %v457 = vpack.c.b16 %v447, %v446
      %v458 = vpack.c.b16 %v449, %v448
      %v459 = vpack.c.b16 %v451, %v450
      %468 = vmatprep.subr.bf16.mxu0 0
      %469 = vmatpush1.bf16.msra.mxu0 %v452
      %470 = vmatprep.subr.bf16.mxu0 0
      %471 = vmatpush1.bf16.msra.mxu0 %v453
      %472 = vmatprep.subr.bf16.mxu0 0
      %473 = vmatpush1.bf16.msra.mxu0 %v454
      %474 = vmatprep.subr.bf16.mxu0 0
      %475 = vmatpush1.bf16.msra.mxu0 %v455
      %476 = vmatprep.subr.bf16.mxu0 0
      %477 = vmatpush1.bf16.msra.mxu0 %v456
      %478 = vmatprep.subr.bf16.mxu0 0
      %479 = vmatpush1.bf16.msra.mxu0 %v457
      %480 = vmatprep.subr.bf16.mxu0 0
      %481 = vmatpush1.bf16.msra.mxu0 %v458
      %482 = vmatprep.subr.bf16.mxu0 0
      %483 = vmatpush1.bf16.msra.mxu0 %v459
      %484 = vmatprep.subr.bf16.mxu0 0
      %485 = vmatpush1.bf16.msra.mxu0 0
      %486 = vmatprep.subr.bf16.mxu0 0
      %487 = vmatpush1.bf16.msra.mxu0 0
      %488 = vmatprep.subr.bf16.mxu0 0
      %489 = vmatpush1.bf16.msra.mxu0 0
      %490 = vmatprep.subr.bf16.mxu0 0
      %491 = vmatpush1.bf16.msra.mxu0 0
      %492 = vmatprep.subr.bf16.mxu0 0
      %493 = vmatpush1.bf16.msra.mxu0 0
      %494 = vmatprep.subr.bf16.mxu0 0
      %495 = vmatpush1.bf16.msra.mxu0 0
      %496 = vmatprep.subr.bf16.mxu0 0
      %497 = vmatpush1.bf16.msra.mxu0 0
      %498 = vmatprep.subr.bf16.mxu0 0
      %499 = vmatpush1.bf16.msra.mxu0 0
      %500 = vmatprep.mubr.bf16.mxu0 0
      %501 = vmatmul.mubr.bf16.gmra.mrb[0].mxu0 %v257
      %v502 = vpop.f32.mrb[0].mxu0
      %v503 = vadd.f32 %v390, %v502
      %v504 = vpop.f32.mrb[0].mxu0
      %v505 = vpop.f32.mrb[0].mxu0
      %v506 = vadd.f32 %v393, %v505
      %v507 = vpop.f32.mrb[0].mxu0
      %508 = vmatprep.mubr.bf16.mxu0 0
      %509 = vmatmul.mubr.bf16.gmra.mrb[0].mxu0 %v258
      %v510 = vpop.f32.mrb[0].mxu0
      %v511 = vadd.f32 %v398, %v510
      %v512 = vpop.f32.mrb[0].mxu0
      %v513 = vpop.f32.mrb[0].mxu0
      %v514 = vadd.f32 %v401, %v513
      %v515 = vpop.f32.mrb[0].mxu0
      %516 = vmatprep.mubr.bf16.mxu0 0
      %517 = vmatmul.mubr.bf16.gmra.mrb[0].mxu0 %v259
      %v518 = vpop.f32.mrb[0].mxu0
      %v519 = vadd.f32 %v406, %v518
      %v520 = vpop.f32.mrb[0].mxu0
      %v521 = vpop.f32.mrb[0].mxu0
      %v522 = vadd.f32 %v409, %v521
      %v523 = vpop.f32.mrb[0].mxu0
      %524 = vmatprep.mubr.bf16.mxu0 0
      %525 = vmatmul.mubr.bf16.gmra.mrb[0].mxu0 %v260
      %v526 = vpop.f32.mrb[0].mxu0
      %v527 = vadd.f32 %v414, %v526
      %v528 = vpop.f32.mrb[0].mxu0
      %v529 = vpop.f32.mrb[0].mxu0
      %v530 = vadd.f32 %v417, %v529
      %v531 = vpop.f32.mrb[0].mxu0
      %532 = vdwg.mxu0
      %v533 = vld [vmem:[%s233 + $0x1] sm:$0xff]
      %v534 = vld [vmem:[%s233 + $0x11] sm:$0xff]
      %v535 = vld [vmem:[%s233 + $0x21] sm:$0xff]
      %v536 = vld [vmem:[%s233 + $0x31] sm:$0xff]
      %v537 = vld [vmem:[%s233 + $0x41] sm:$0xff]
      %v538 = vld [vmem:[%s233 + $0x51] sm:$0xff]
      %v539 = vld [vmem:[%s233 + $0x61] sm:$0xff]
      %v540 = vld [vmem:[%s233 + $0x71] sm:$0xff]
      %v541 = vpack.c.bf16 %v534, %v533
      %v542 = vpack.c.bf16 %v536, %v535
      %v543 = vpack.c.bf16 %v538, %v537
      %v544 = vpack.c.bf16 %v540, %v539
      %s545 = scalar_lea.vmem %s1, 128
      %v546 = vld [vmem:[%s545] sm:$0xf]
      %v547 = vld [vmem:[%s545 + $0x4] sm:$0xf]
      %v548 = vld [vmem:[%s545 + $0x8] sm:$0xf]
      %v549 = vld [vmem:[%s545 + $0xc] sm:$0xf]
      %v550 = vld [vmem:[%s545 + $0x10] sm:$0xf]
      %v551 = vld [vmem:[%s545 + $0x14] sm:$0xf]
      %v552 = vld [vmem:[%s545 + $0x18] sm:$0xf]
      %v553 = vld [vmem:[%s545 + $0x1c] sm:$0xf]
      %v554 = vld [vmem:[%s545 + $0x20] sm:$0xf]
      %v555 = vld [vmem:[%s545 + $0x24] sm:$0xf]
      %v556 = vld [vmem:[%s545 + $0x28] sm:$0xf]
      %v557 = vld [vmem:[%s545 + $0x2c] sm:$0xf]
      %v558 = vld [vmem:[%s545 + $0x30] sm:$0xf]
      %v559 = vld [vmem:[%s545 + $0x34] sm:$0xf]
      %v560 = vld [vmem:[%s545 + $0x38] sm:$0xf]
      %v561 = vld [vmem:[%s545 + $0x3c] sm:$0xf]
      %v578 = vunpack.c.l.b16 %v546
      %v579 = vunpack.c.l.b16 %v547
      %v580 = vunpack.c.l.b16 %v548
      %v581 = vunpack.c.l.b16 %v549
      %v582 = vunpack.c.l.b16 %v550
      %v583 = vunpack.c.l.b16 %v551
      %v584 = vunpack.c.l.b16 %v552
      %v585 = vunpack.c.l.b16 %v553
      %v586 = vunpack.c.l.b16 %v554
      %v587 = vunpack.c.l.b16 %v555
      %v588 = vunpack.c.l.b16 %v556
      %v589 = vunpack.c.l.b16 %v557
      %v590 = vunpack.c.l.b16 %v558
      %v591 = vunpack.c.l.b16 %v559
      %v592 = vunpack.c.l.b16 %v560
      %v593 = vunpack.c.l.b16 %v561
      %v594 = vpack.c.b16 %v579, %v578
      %v595 = vpack.c.b16 %v581, %v580
      %v596 = vpack.c.b16 %v583, %v582
      %v597 = vpack.c.b16 %v585, %v584
      %v598 = vpack.c.b16 %v587, %v586
      %v599 = vpack.c.b16 %v589, %v588
      %v600 = vpack.c.b16 %v591, %v590
      %v601 = vpack.c.b16 %v593, %v592
      %610 = vmatprep.subr.bf16.mxu0 0
      %611 = vmatpush1.bf16.msra.mxu0 %v594
      %612 = vmatprep.subr.bf16.mxu0 0
      %613 = vmatpush1.bf16.msra.mxu0 %v595
      %614 = vmatprep.subr.bf16.mxu0 0
      %615 = vmatpush1.bf16.msra.mxu0 %v596
      %616 = vmatprep.subr.bf16.mxu0 0
      %617 = vmatpush1.bf16.msra.mxu0 %v597
      %618 = vmatprep.subr.bf16.mxu0 0
      %619 = vmatpush1.bf16.msra.mxu0 %v598
      %620 = vmatprep.subr.bf16.mxu0 0
      %621 = vmatpush1.bf16.msra.mxu0 %v599
      %622 = vmatprep.subr.bf16.mxu0 0
      %623 = vmatpush1.bf16.msra.mxu0 %v600
      %624 = vmatprep.subr.bf16.mxu0 0
      %625 = vmatpush1.bf16.msra.mxu0 %v601
      %626 = vmatprep.subr.bf16.mxu0 0
      %627 = vmatpush1.bf16.msra.mxu0 0
      %628 = vmatprep.subr.bf16.mxu0 0
      %629 = vmatpush1.bf16.msra.mxu0 0
      %630 = vmatprep.subr.bf16.mxu0 0
      %631 = vmatpush1.bf16.msra.mxu0 0
      %632 = vmatprep.subr.bf16.mxu0 0
      %633 = vmatpush1.bf16.msra.mxu0 0
      %634 = vmatprep.subr.bf16.mxu0 0
      %635 = vmatpush1.bf16.msra.mxu0 0
      %636 = vmatprep.subr.bf16.mxu0 0
      %637 = vmatpush1.bf16.msra.mxu0 0
      %638 = vmatprep.subr.bf16.mxu0 0
      %639 = vmatpush1.bf16.msra.mxu0 0
      %640 = vmatprep.subr.bf16.mxu0 0
      %641 = vmatpush1.bf16.msra.mxu0 0
      %642 = vmatprep.mubr.bf16.mxu0 0
      %643 = vmatmul.mubr.bf16.gmra.mrb[0].mxu0 %v541
      %v644 = vpop.f32.mrb[0].mxu0
      %v645 = vadd.f32 0.0, %v644
      %v646 = vpop.f32.mrb[0].mxu0
      %v647 = vpop.f32.mrb[0].mxu0
      %v648 = vadd.f32 0.0, %v647
      %v649 = vpop.f32.mrb[0].mxu0
      %650 = vmatprep.mubr.bf16.mxu0 0
      %651 = vmatmul.mubr.bf16.gmra.mrb[0].mxu0 %v542
      %v652 = vpop.f32.mrb[0].mxu0
      %v653 = vadd.f32 0.0, %v652
      %v654 = vpop.f32.mrb[0].mxu0
      %v655 = vpop.f32.mrb[0].mxu0
      %v656 = vadd.f32 0.0, %v655
      %v657 = vpop.f32.mrb[0].mxu0
      %658 = vmatprep.mubr.bf16.mxu0 0
      %659 = vmatmul.mubr.bf16.gmra.mrb[0].mxu0 %v543
      %v660 = vpop.f32.mrb[0].mxu0
      %v661 = vadd.f32 0.0, %v660
      %v662 = vpop.f32.mrb[0].mxu0
      %v663 = vpop.f32.mrb[0].mxu0
      %v664 = vadd.f32 0.0, %v663
      %v665 = vpop.f32.mrb[0].mxu0
      %666 = vmatprep.mubr.bf16.mxu0 0
      %667 = vmatmul.mubr.bf16.gmra.mrb[0].mxu0 %v544
      %v668 = vpop.f32.mrb[0].mxu0
      %v669 = vadd.f32 0.0, %v668
      %v670 = vpop.f32.mrb[0].mxu0
      %v671 = vpop.f32.mrb[0].mxu0
      %v672 = vadd.f32 0.0, %v671
      %v673 = vpop.f32.mrb[0].mxu0
      %674 = vdwg.mxu0
      %v675 = vadd.f32 %v503, %v645
      %v676 = vadd.f32 %v506, %v648
      %v677 = vadd.f32 %v511, %v653
      %v678 = vadd.f32 %v514, %v656
      %v679 = vadd.f32 %v519, %v661
      %v680 = vadd.f32 %v522, %v664
      %v681 = vadd.f32 %v527, %v669
      %v682 = vadd.f32 %v530, %v672
      %s683 = scalar_lea.vmem %s233, 288
      %v684 = vld [vmem:[%s683] sm:$0xff]
      %v685 = vld [vmem:[%s683 + $0x10] sm:$0xff]
      %v686 = vld [vmem:[%s683 + $0x20] sm:$0xff]
      %v687 = vld [vmem:[%s683 + $0x30] sm:$0xff]
      %v688 = vld [vmem:[%s683 + $0x40] sm:$0xff]
      %v689 = vld [vmem:[%s683 + $0x50] sm:$0xff]
      %v690 = vld [vmem:[%s683 + $0x60] sm:$0xff]
      %v691 = vld [vmem:[%s683 + $0x70] sm:$0xff]
      %v692 = vpack.c.bf16 %v685, %v684
      %v693 = vpack.c.bf16 %v687, %v686
      %v694 = vpack.c.bf16 %v689, %v688
      %v695 = vpack.c.bf16 %v691, %v690
      %s696 = scalar_lea.vmem %s1, 192
      %v697 = vld [vmem:[%s696] sm:$0xf]
      %v698 = vld [vmem:[%s696 + $0x4] sm:$0xf]
      %v699 = vld [vmem:[%s696 + $0x8] sm:$0xf]
      %v700 = vld [vmem:[%s696 + $0xc] sm:$0xf]
      %v701 = vld [vmem:[%s696 + $0x10] sm:$0xf]
      %v702 = vld [vmem:[%s696 + $0x14] sm:$0xf]
      %v703 = vld [vmem:[%s696 + $0x18] sm:$0xf]
      %v704 = vld [vmem:[%s696 + $0x1c] sm:$0xf]
      %v705 = vld [vmem:[%s696 + $0x20] sm:$0xf]
      %v706 = vld [vmem:[%s696 + $0x24] sm:$0xf]
      %v707 = vld [vmem:[%s696 + $0x28] sm:$0xf]
      %v708 = vld [vmem:[%s696 + $0x2c] sm:$0xf]
      %v709 = vld [vmem:[%s696 + $0x30] sm:$0xf]
      %v710 = vld [vmem:[%s696 + $0x34] sm:$0xf]
      %v711 = vld [vmem:[%s696 + $0x38] sm:$0xf]
      %v712 = vld [vmem:[%s696 + $0x3c] sm:$0xf]
      %v729 = vunpack.c.l.b16 %v697
      %v730 = vunpack.c.l.b16 %v698
      %v731 = vunpack.c.l.b16 %v699
      %v732 = vunpack.c.l.b16 %v700
      %v733 = vunpack.c.l.b16 %v701
      %v734 = vunpack.c.l.b16 %v702
      %v735 = vunpack.c.l.b16 %v703
      %v736 = vunpack.c.l.b16 %v704
      %v737 = vunpack.c.l.b16 %v705
      %v738 = vunpack.c.l.b16 %v706
      %v739 = vunpack.c.l.b16 %v707
      %v740 = vunpack.c.l.b16 %v708
      %v741 = vunpack.c.l.b16 %v709
      %v742 = vunpack.c.l.b16 %v710
      %v743 = vunpack.c.l.b16 %v711
      %v744 = vunpack.c.l.b16 %v712
      %v745 = vpack.c.b16 %v730, %v729
      %v746 = vpack.c.b16 %v732, %v731
      %v747 = vpack.c.b16 %v734, %v733
      %v748 = vpack.c.b16 %v736, %v735
      %v749 = vpack.c.b16 %v738, %v737
      %v750 = vpack.c.b16 %v740, %v739
      %v751 = vpack.c.b16 %v742, %v741
      %v752 = vpack.c.b16 %v744, %v743
      %761 = vmatprep.subr.bf16.mxu0 0
      %762 = vmatpush1.bf16.msra.mxu0 %v745
      %763 = vmatprep.subr.bf16.mxu0 0
      %764 = vmatpush1.bf16.msra.mxu0 %v746
      %765 = vmatprep.subr.bf16.mxu0 0
      %766 = vmatpush1.bf16.msra.mxu0 %v747
      %767 = vmatprep.subr.bf16.mxu0 0
      %768 = vmatpush1.bf16.msra.mxu0 %v748
      %769 = vmatprep.subr.bf16.mxu0 0
      %770 = vmatpush1.bf16.msra.mxu0 %v749
      %771 = vmatprep.subr.bf16.mxu0 0
      %772 = vmatpush1.bf16.msra.mxu0 %v750
      %773 = vmatprep.subr.bf16.mxu0 0
      %774 = vmatpush1.bf16.msra.mxu0 %v751
      %775 = vmatprep.subr.bf16.mxu0 0
      %776 = vmatpush1.bf16.msra.mxu0 %v752
      %777 = vmatprep.subr.bf16.mxu0 0
      %778 = vmatpush1.bf16.msra.mxu0 0
      %779 = vmatprep.subr.bf16.mxu0 0
      %780 = vmatpush1.bf16.msra.mxu0 0
      %781 = vmatprep.subr.bf16.mxu0 0
      %782 = vmatpush1.bf16.msra.mxu0 0
      %783 = vmatprep.subr.bf16.mxu0 0
      %784 = vmatpush1.bf16.msra.mxu0 0
      %785 = vmatprep.subr.bf16.mxu0 0
      %786 = vmatpush1.bf16.msra.mxu0 0
      %787 = vmatprep.subr.bf16.mxu0 0
      %788 = vmatpush1.bf16.msra.mxu0 0
      %789 = vmatprep.subr.bf16.mxu0 0
      %790 = vmatpush1.bf16.msra.mxu0 0
      %791 = vmatprep.subr.bf16.mxu0 0
      %792 = vmatpush1.bf16.msra.mxu0 0
      %793 = vmatprep.mubr.bf16.mxu0 0
      %794 = vmatmul.mubr.bf16.gmra.mrb[0].mxu0 %v692
      %v795 = vpop.f32.mrb[0].mxu0
      %v796 = vadd.f32 0.0, %v795
      %v797 = vpop.f32.mrb[0].mxu0
      %v798 = vpop.f32.mrb[0].mxu0
      %v799 = vadd.f32 0.0, %v798
      %v800 = vpop.f32.mrb[0].mxu0
      %801 = vmatprep.mubr.bf16.mxu0 0
      %802 = vmatmul.mubr.bf16.gmra.mrb[0].mxu0 %v693
      %v803 = vpop.f32.mrb[0].mxu0
      %v804 = vadd.f32 0.0, %v803
      %v805 = vpop.f32.mrb[0].mxu0
      %v806 = vpop.f32.mrb[0].mxu0
      %v807 = vadd.f32 0.0, %v806
      %v808 = vpop.f32.mrb[0].mxu0
      %809 = vmatprep.mubr.bf16.mxu0 0
      %810 = vmatmul.mubr.bf16.gmra.mrb[0].mxu0 %v694
      %v811 = vpop.f32.mrb[0].mxu0
      %v812 = vadd.f32 0.0, %v811
      %v813 = vpop.f32.mrb[0].mxu0
      %v814 = vpop.f32.mrb[0].mxu0
      %v815 = vadd.f32 0.0, %v814
      %v816 = vpop.f32.mrb[0].mxu0
      %817 = vmatprep.mubr.bf16.mxu0 0
      %818 = vmatmul.mubr.bf16.gmra.mrb[0].mxu0 %v695
      %v819 = vpop.f32.mrb[0].mxu0
      %v820 = vadd.f32 0.0, %v819
      %v821 = vpop.f32.mrb[0].mxu0
      %v822 = vpop.f32.mrb[0].mxu0
      %v823 = vadd.f32 0.0, %v822
      %v824 = vpop.f32.mrb[0].mxu0
      %825 = vdwg.mxu0
      %v826 = vadd.f32 %v675, %v796
      %v827 = vadd.f32 %v676, %v799
      %v828 = vadd.f32 %v677, %v804
      %v829 = vadd.f32 %v678, %v807
      %v830 = vadd.f32 %v679, %v812
      %v831 = vadd.f32 %v680, %v815
      %v832 = vadd.f32 %v681, %v820
      %v833 = vadd.f32 %v682, %v823
      %s834 = scalar_lea.vmem %s233, 432
      %v835 = vld [vmem:[%s834] sm:$0xff]
      %v836 = vld [vmem:[%s834 + $0x10] sm:$0xff]
      %v837 = vld [vmem:[%s834 + $0x20] sm:$0xff]
      %v838 = vld [vmem:[%s834 + $0x30] sm:$0xff]
      %v839 = vld [vmem:[%s834 + $0x40] sm:$0xff]
      %v840 = vld [vmem:[%s834 + $0x50] sm:$0xff]
      %v841 = vld [vmem:[%s834 + $0x60] sm:$0xff]
      %v842 = vld [vmem:[%s834 + $0x70] sm:$0xff]
      %v843 = vpack.c.bf16 %v836, %v835
      %v844 = vpack.c.bf16 %v838, %v837
      %v845 = vpack.c.bf16 %v840, %v839
      %v846 = vpack.c.bf16 %v842, %v841
      %s847 = scalar_lea.vmem %s1, 256
      %v848 = vld [vmem:[%s847] sm:$0xf]
      %v849 = vld [vmem:[%s847 + $0x4] sm:$0xf]
      %v850 = vld [vmem:[%s847 + $0x8] sm:$0xf]
      %v851 = vld [vmem:[%s847 + $0xc] sm:$0xf]
      %v852 = vld [vmem:[%s847 + $0x10] sm:$0xf]
      %v853 = vld [vmem:[%s847 + $0x14] sm:$0xf]
      %v854 = vld [vmem:[%s847 + $0x18] sm:$0xf]
      %v855 = vld [vmem:[%s847 + $0x1c] sm:$0xf]
      %v856 = vld [vmem:[%s847 + $0x20] sm:$0xf]
      %v857 = vld [vmem:[%s847 + $0x24] sm:$0xf]
      %v858 = vld [vmem:[%s847 + $0x28] sm:$0xf]
      %v859 = vld [vmem:[%s847 + $0x2c] sm:$0xf]
      %v860 = vld [vmem:[%s847 + $0x30] sm:$0xf]
      %v861 = vld [vmem:[%s847 + $0x34] sm:$0xf]
      %v862 = vld [vmem:[%s847 + $0x38] sm:$0xf]
      %v863 = vld [vmem:[%s847 + $0x3c] sm:$0xf]
      %v880 = vunpack.c.l.b16 %v848
      %v881 = vunpack.c.l.b16 %v849
      %v882 = vunpack.c.l.b16 %v850
      %v883 = vunpack.c.l.b16 %v851
      %v884 = vunpack.c.l.b16 %v852
      %v885 = vunpack.c.l.b16 %v853
      %v886 = vunpack.c.l.b16 %v854
      %v887 = vunpack.c.l.b16 %v855
      %v888 = vunpack.c.l.b16 %v856
      %v889 = vunpack.c.l.b16 %v857
      %v890 = vunpack.c.l.b16 %v858
      %v891 = vunpack.c.l.b16 %v859
      %v892 = vunpack.c.l.b16 %v860
      %v893 = vunpack.c.l.b16 %v861
      %v894 = vunpack.c.l.b16 %v862
      %v895 = vunpack.c.l.b16 %v863
      %v896 = vpack.c.b16 %v881, %v880
      %v897 = vpack.c.b16 %v883, %v882
      %v898 = vpack.c.b16 %v885, %v884
      %v899 = vpack.c.b16 %v887, %v886
      %v900 = vpack.c.b16 %v889, %v888
      %v901 = vpack.c.b16 %v891, %v890
      %v902 = vpack.c.b16 %v893, %v892
      %v903 = vpack.c.b16 %v895, %v894
      %912 = vmatprep.subr.bf16.mxu0 0
      %913 = vmatpush1.bf16.msra.mxu0 %v896
      %914 = vmatprep.subr.bf16.mxu0 0
      %915 = vmatpush1.bf16.msra.mxu0 %v897
      %916 = vmatprep.subr.bf16.mxu0 0
      %917 = vmatpush1.bf16.msra.mxu0 %v898
      %918 = vmatprep.subr.bf16.mxu0 0
      %919 = vmatpush1.bf16.msra.mxu0 %v899
      %920 = vmatprep.subr.bf16.mxu0 0
      %921 = vmatpush1.bf16.msra.mxu0 %v900
      %922 = vmatprep.subr.bf16.mxu0 0
      %923 = vmatpush1.bf16.msra.mxu0 %v901
      %924 = vmatprep.subr.bf16.mxu0 0
      %925 = vmatpush1.bf16.msra.mxu0 %v902
      %926 = vmatprep.subr.bf16.mxu0 0
      %927 = vmatpush1.bf16.msra.mxu0 %v903
      %928 = vmatprep.subr.bf16.mxu0 0
      %929 = vmatpush1.bf16.msra.mxu0 0
      %930 = vmatprep.subr.bf16.mxu0 0
      %931 = vmatpush1.bf16.msra.mxu0 0
      %932 = vmatprep.subr.bf16.mxu0 0
      %933 = vmatpush1.bf16.msra.mxu0 0
      %934 = vmatprep.subr.bf16.mxu0 0
      %935 = vmatpush1.bf16.msra.mxu0 0
      %936 = vmatprep.subr.bf16.mxu0 0
      %937 = vmatpush1.bf16.msra.mxu0 0
      %938 = vmatprep.subr.bf16.mxu0 0
      %939 = vmatpush1.bf16.msra.mxu0 0
      %940 = vmatprep.subr.bf16.mxu0 0
      %941 = vmatpush1.bf16.msra.mxu0 0
      %942 = vmatprep.subr.bf16.mxu0 0
      %943 = vmatpush1.bf16.msra.mxu0 0
      %944 = vmatprep.mubr.bf16.mxu0 0
      %945 = vmatmul.mubr.bf16.gmra.mrb[0].mxu0 %v843
      %v946 = vpop.f32.mrb[0].mxu0
      %v947 = vadd.f32 0.0, %v946
      %v948 = vpop.f32.mrb[0].mxu0
      %v949 = vpop.f32.mrb[0].mxu0
      %v950 = vadd.f32 0.0, %v949
      %v951 = vpop.f32.mrb[0].mxu0
      %952 = vmatprep.mubr.bf16.mxu0 0
      %953 = vmatmul.mubr.bf16.gmra.mrb[0].mxu0 %v844
      %v954 = vpop.f32.mrb[0].mxu0
      %v955 = vadd.f32 0.0, %v954
      %v956 = vpop.f32.mrb[0].mxu0
      %v957 = vpop.f32.mrb[0].mxu0
      %v958 = vadd.f32 0.0, %v957
      %v959 = vpop.f32.mrb[0].mxu0
      %960 = vmatprep.mubr.bf16.mxu0 0
      %961 = vmatmul.mubr.bf16.gmra.mrb[0].mxu0 %v845
      %v962 = vpop.f32.mrb[0].mxu0
      %v963 = vadd.f32 0.0, %v962
      %v964 = vpop.f32.mrb[0].mxu0
      %v965 = vpop.f32.mrb[0].mxu0
      %v966 = vadd.f32 0.0, %v965
      %v967 = vpop.f32.mrb[0].mxu0
      %968 = vmatprep.mubr.bf16.mxu0 0
      %969 = vmatmul.mubr.bf16.gmra.mrb[0].mxu0 %v846
      %v970 = vpop.f32.mrb[0].mxu0
      %v971 = vadd.f32 0.0, %v970
      %v972 = vpop.f32.mrb[0].mxu0
      %v973 = vpop.f32.mrb[0].mxu0
      %v974 = vadd.f32 0.0, %v973
      %v975 = vpop.f32.mrb[0].mxu0
      %976 = vdwg.mxu0
      %v977 = vadd.f32 %v826, %v947
      %v978 = vadd.f32 %v827, %v950
      %v979 = vadd.f32 %v828, %v955
      %v980 = vadd.f32 %v829, %v958
      %v981 = vadd.f32 %v830, %v963
      %v982 = vadd.f32 %v831, %v966
      %v983 = vadd.f32 %v832, %v971
      %v984 = vadd.f32 %v833, %v974
      %v985 = vld [vmem:[%s683 + $0x1] sm:$0xff]
      %v986 = vld [vmem:[%s683 + $0x11] sm:$0xff]
      %v987 = vld [vmem:[%s683 + $0x21] sm:$0xff]
      %v988 = vld [vmem:[%s683 + $0x31] sm:$0xff]
      %v989 = vld [vmem:[%s683 + $0x41] sm:$0xff]
      %v990 = vld [vmem:[%s683 + $0x51] sm:$0xff]
      %v991 = vld [vmem:[%s683 + $0x61] sm:$0xff]
      %v992 = vld [vmem:[%s683 + $0x71] sm:$0xff]
      %v993 = vpack.c.bf16 %v986, %v985
      %v994 = vpack.c.bf16 %v988, %v987
      %v995 = vpack.c.bf16 %v990, %v989
      %v996 = vpack.c.bf16 %v992, %v991
      %s997 = scalar_lea.vmem %s1, 320
      %v998 = vld [vmem:[%s997] sm:$0xf]
      %v999 = vld [vmem:[%s997 + $0x4] sm:$0xf]
      %v1000 = vld [vmem:[%s997 + $0x8] sm:$0xf]
      %v1001 = vld [vmem:[%s997 + $0xc] sm:$0xf]
      %v1002 = vld [vmem:[%s997 + $0x10] sm:$0xf]
      %v1003 = vld [vmem:[%s997 + $0x14] sm:$0xf]
      %v1004 = vld [vmem:[%s997 + $0x18] sm:$0xf]
      %v1005 = vld [vmem:[%s997 + $0x1c] sm:$0xf]
      %v1006 = vld [vmem:[%s997 + $0x20] sm:$0xf]
      %v1007 = vld [vmem:[%s997 + $0x24] sm:$0xf]
      %v1008 = vld [vmem:[%s997 + $0x28] sm:$0xf]
      %v1009 = vld [vmem:[%s997 + $0x2c] sm:$0xf]
      %v1010 = vld [vmem:[%s997 + $0x30] sm:$0xf]
      %v1011 = vld [vmem:[%s997 + $0x34] sm:$0xf]
      %v1012 = vld [vmem:[%s997 + $0x38] sm:$0xf]
      %v1013 = vld [vmem:[%s997 + $0x3c] sm:$0xf]
      %v1030 = vunpack.c.l.b16 %v998
      %v1031 = vunpack.c.l.b16 %v999
      %v1032 = vunpack.c.l.b16 %v1000
      %v1033 = vunpack.c.l.b16 %v1001
      %v1034 = vunpack.c.l.b16 %v1002
      %v1035 = vunpack.c.l.b16 %v1003
      %v1036 = vunpack.c.l.b16 %v1004
      %v1037 = vunpack.c.l.b16 %v1005
      %v1038 = vunpack.c.l.b16 %v1006
      %v1039 = vunpack.c.l.b16 %v1007
      %v1040 = vunpack.c.l.b16 %v1008
      %v1041 = vunpack.c.l.b16 %v1009
      %v1042 = vunpack.c.l.b16 %v1010
      %v1043 = vunpack.c.l.b16 %v1011
      %v1044 = vunpack.c.l.b16 %v1012
      %v1045 = vunpack.c.l.b16 %v1013
      %v1046 = vpack.c.b16 %v1031, %v1030
      %v1047 = vpack.c.b16 %v1033, %v1032
      %v1048 = vpack.c.b16 %v1035, %v1034
      %v1049 = vpack.c.b16 %v1037, %v1036
      %v1050 = vpack.c.b16 %v1039, %v1038
      %v1051 = vpack.c.b16 %v1041, %v1040
      %v1052 = vpack.c.b16 %v1043, %v1042
      %v1053 = vpack.c.b16 %v1045, %v1044
      %1062 = vmatprep.subr.bf16.mxu0 0
      %1063 = vmatpush1.bf16.msra.mxu0 %v1046
      %1064 = vmatprep.subr.bf16.mxu0 0
      %1065 = vmatpush1.bf16.msra.mxu0 %v1047
      %1066 = vmatprep.subr.bf16.mxu0 0
      %1067 = vmatpush1.bf16.msra.mxu0 %v1048
      %1068 = vmatprep.subr.bf16.mxu0 0
      %1069 = vmatpush1.bf16.msra.mxu0 %v1049
      %1070 = vmatprep.subr.bf16.mxu0 0
      %1071 = vmatpush1.bf16.msra.mxu0 %v1050
      %1072 = vmatprep.subr.bf16.mxu0 0
      %1073 = vmatpush1.bf16.msra.mxu0 %v1051
      %1074 = vmatprep.subr.bf16.mxu0 0
      %1075 = vmatpush1.bf16.msra.mxu0 %v1052
      %1076 = vmatprep.subr.bf16.mxu0 0
      %1077 = vmatpush1.bf16.msra.mxu0 %v1053
      %1078 = vmatprep.subr.bf16.mxu0 0
      %1079 = vmatpush1.bf16.msra.mxu0 0
      %1080 = vmatprep.subr.bf16.mxu0 0
      %1081 = vmatpush1.bf16.msra.mxu0 0
      %1082 = vmatprep.subr.bf16.mxu0 0
      %1083 = vmatpush1.bf16.msra.mxu0 0
      %1084 = vmatprep.subr.bf16.mxu0 0
      %1085 = vmatpush1.bf16.msra.mxu0 0
      %1086 = vmatprep.subr.bf16.mxu0 0
      %1087 = vmatpush1.bf16.msra.mxu0 0
      %1088 = vmatprep.subr.bf16.mxu0 0
      %1089 = vmatpush1.bf16.msra.mxu0 0
      %1090 = vmatprep.subr.bf16.mxu0 0
      %1091 = vmatpush1.bf16.msra.mxu0 0
      %1092 = vmatprep.subr.bf16.mxu0 0
      %1093 = vmatpush1.bf16.msra.mxu0 0
      %1094 = vmatprep.mubr.bf16.mxu0 0
      %1095 = vmatmul.mubr.bf16.gmra.mrb[0].mxu0 %v993
      %v1096 = vpop.f32.mrb[0].mxu0
      %v1097 = vadd.f32 0.0, %v1096
      %v1098 = vpop.f32.mrb[0].mxu0
      %v1099 = vpop.f32.mrb[0].mxu0
      %v1100 = vadd.f32 0.0, %v1099
      %v1101 = vpop.f32.mrb[0].mxu0
      %1102 = vmatprep.mubr.bf16.mxu0 0
      %1103 = vmatmul.mubr.bf16.gmra.mrb[0].mxu0 %v994
      %v1104 = vpop.f32.mrb[0].mxu0
      %v1105 = vadd.f32 0.0, %v1104
      %v1106 = vpop.f32.mrb[0].mxu0
      %v1107 = vpop.f32.mrb[0].mxu0
      %v1108 = vadd.f32 0.0, %v1107
      %v1109 = vpop.f32.mrb[0].mxu0
      %1110 = vmatprep.mubr.bf16.mxu0 0
      %1111 = vmatmul.mubr.bf16.gmra.mrb[0].mxu0 %v995
      %v1112 = vpop.f32.mrb[0].mxu0
      %v1113 = vadd.f32 0.0, %v1112
      %v1114 = vpop.f32.mrb[0].mxu0
      %v1115 = vpop.f32.mrb[0].mxu0
      %v1116 = vadd.f32 0.0, %v1115
      %v1117 = vpop.f32.mrb[0].mxu0
      %1118 = vmatprep.mubr.bf16.mxu0 0
      %1119 = vmatmul.mubr.bf16.gmra.mrb[0].mxu0 %v996
      %v1120 = vpop.f32.mrb[0].mxu0
      %v1121 = vadd.f32 0.0, %v1120
      %v1122 = vpop.f32.mrb[0].mxu0
      %v1123 = vpop.f32.mrb[0].mxu0
      %v1124 = vadd.f32 0.0, %v1123
      %v1125 = vpop.f32.mrb[0].mxu0
      %1126 = vdwg.mxu0
      %v1127 = vadd.f32 %v977, %v1097
      %v1128 = vadd.f32 %v978, %v1100
      %v1129 = vadd.f32 %v979, %v1105
      %v1130 = vadd.f32 %v980, %v1108
      %v1131 = vadd.f32 %v981, %v1113
      %v1132 = vadd.f32 %v982, %v1116
      %v1133 = vadd.f32 %v983, %v1121
      %v1134 = vadd.f32 %v984, %v1124
      %s1135 = scalar_lea.vmem %s233, 16
      %v1136 = vld [vmem:[%s1135] sm:$0xff]
      %v1137 = vld [vmem:[%s1135 + $0x10] sm:$0xff]
      %v1138 = vld [vmem:[%s1135 + $0x20] sm:$0xff]
      %v1139 = vld [vmem:[%s1135 + $0x30] sm:$0xff]
      %v1140 = vld [vmem:[%s1135 + $0x40] sm:$0xff]
      %v1141 = vld [vmem:[%s1135 + $0x50] sm:$0xff]
      %v1142 = vld [vmem:[%s1135 + $0x60] sm:$0xff]
      %v1143 = vld [vmem:[%s1135 + $0x70] sm:$0xff]
      %v1144 = vpack.c.bf16 %v1137, %v1136
      %v1145 = vpack.c.bf16 %v1139, %v1138
      %v1146 = vpack.c.bf16 %v1141, %v1140
      %v1147 = vpack.c.bf16 %v1143, %v1142
      %s1148 = scalar_lea.vmem %s1, 384
      %v1149 = vld [vmem:[%s1148] sm:$0xf]
      %v1150 = vld [vmem:[%s1148 + $0x4] sm:$0xf]
      %v1151 = vld [vmem:[%s1148 + $0x8] sm:$0xf]
      %v1152 = vld [vmem:[%s1148 + $0xc] sm:$0xf]
      %v1153 = vld [vmem:[%s1148 + $0x10] sm:$0xf]
      %v1154 = vld [vmem:[%s1148 + $0x14] sm:$0xf]
      %v1155 = vld [vmem:[%s1148 + $0x18] sm:$0xf]
      %v1156 = vld [vmem:[%s1148 + $0x1c] sm:$0xf]
      %v1157 = vld [vmem:[%s1148 + $0x20] sm:$0xf]
      %v1158 = vld [vmem:[%s1148 + $0x24] sm:$0xf]
      %v1159 = vld [vmem:[%s1148 + $0x28] sm:$0xf]
      %v1160 = vld [vmem:[%s1148 + $0x2c] sm:$0xf]
      %v1161 = vld [vmem:[%s1148 + $0x30] sm:$0xf]
      %v1162 = vld [vmem:[%s1148 + $0x34] sm:$0xf]
      %v1163 = vld [vmem:[%s1148 + $0x38] sm:$0xf]
      %v1164 = vld [vmem:[%s1148 + $0x3c] sm:$0xf]
      %v1181 = vunpack.c.l.b16 %v1149
      %v1182 = vunpack.c.l.b16 %v1150
      %v1183 = vunpack.c.l.b16 %v1151
      %v1184 = vunpack.c.l.b16 %v1152
      %v1185 = vunpack.c.l.b16 %v1153
      %v1186 = vunpack.c.l.b16 %v1154
      %v1187 = vunpack.c.l.b16 %v1155
      %v1188 = vunpack.c.l.b16 %v1156
      %v1189 = vunpack.c.l.b16 %v1157
      %v1190 = vunpack.c.l.b16 %v1158
      %v1191 = vunpack.c.l.b16 %v1159
      %v1192 = vunpack.c.l.b16 %v1160
      %v1193 = vunpack.c.l.b16 %v1161
      %v1194 = vunpack.c.l.b16 %v1162
      %v1195 = vunpack.c.l.b16 %v1163
      %v1196 = vunpack.c.l.b16 %v1164
      %v1197 = vpack.c.b16 %v1182, %v1181
      %v1198 = vpack.c.b16 %v1184, %v1183
      %v1199 = vpack.c.b16 %v1186, %v1185
      %v1200 = vpack.c.b16 %v1188, %v1187
      %v1201 = vpack.c.b16 %v1190, %v1189
      %v1202 = vpack.c.b16 %v1192, %v1191
      %v1203 = vpack.c.b16 %v1194, %v1193
      %v1204 = vpack.c.b16 %v1196, %v1195
      %1213 = vmatprep.subr.bf16.mxu0 0
      %1214 = vmatpush1.bf16.msra.mxu0 %v1197
      %1215 = vmatprep.subr.bf16.mxu0 0
      %1216 = vmatpush1.bf16.msra.mxu0 %v1198
      %1217 = vmatprep.subr.bf16.mxu0 0
      %1218 = vmatpush1.bf16.msra.mxu0 %v1199
      %1219 = vmatprep.subr.bf16.mxu0 0
      %1220 = vmatpush1.bf16.msra.mxu0 %v1200
      %1221 = vmatprep.subr.bf16.mxu0 0
      %1222 = vmatpush1.bf16.msra.mxu0 %v1201
      %1223 = vmatprep.subr.bf16.mxu0 0
      %1224 = vmatpush1.bf16.msra.mxu0 %v1202
      %1225 = vmatprep.subr.bf16.mxu0 0
      %1226 = vmatpush1.bf16.msra.mxu0 %v1203
      %1227 = vmatprep.subr.bf16.mxu0 0
      %1228 = vmatpush1.bf16.msra.mxu0 %v1204
      %1229 = vmatprep.subr.bf16.mxu0 0
      %1230 = vmatpush1.bf16.msra.mxu0 0
      %1231 = vmatprep.subr.bf16.mxu0 0
      %1232 = vmatpush1.bf16.msra.mxu0 0
      %1233 = vmatprep.subr.bf16.mxu0 0
      %1234 = vmatpush1.bf16.msra.mxu0 0
      %1235 = vmatprep.subr.bf16.mxu0 0
      %1236 = vmatpush1.bf16.msra.mxu0 0
      %1237 = vmatprep.subr.bf16.mxu0 0
      %1238 = vmatpush1.bf16.msra.mxu0 0
      %1239 = vmatprep.subr.bf16.mxu0 0
      %1240 = vmatpush1.bf16.msra.mxu0 0
      %1241 = vmatprep.subr.bf16.mxu0 0
      %1242 = vmatpush1.bf16.msra.mxu0 0
      %1243 = vmatprep.subr.bf16.mxu0 0
      %1244 = vmatpush1.bf16.msra.mxu0 0
      %1245 = vmatprep.mubr.bf16.mxu0 0
      %1246 = vmatmul.mubr.bf16.gmra.mrb[0].mxu0 %v1144
      %v1247 = vpop.f32.mrb[0].mxu0
      %v1248 = vadd.f32 0.0, %v1247
      %v1249 = vpop.f32.mrb[0].mxu0
      %v1250 = vpop.f32.mrb[0].mxu0
      %v1251 = vadd.f32 0.0, %v1250
      %v1252 = vpop.f32.mrb[0].mxu0
      %1253 = vmatprep.mubr.bf16.mxu0 0
      %1254 = vmatmul.mubr.bf16.gmra.mrb[0].mxu0 %v1145
      %v1255 = vpop.f32.mrb[0].mxu0
      %v1256 = vadd.f32 0.0, %v1255
      %v1257 = vpop.f32.mrb[0].mxu0
      %v1258 = vpop.f32.mrb[0].mxu0
      %v1259 = vadd.f32 0.0, %v1258
      %v1260 = vpop.f32.mrb[0].mxu0
      %1261 = vmatprep.mubr.bf16.mxu0 0
      %1262 = vmatmul.mubr.bf16.gmra.mrb[0].mxu0 %v1146
      %v1263 = vpop.f32.mrb[0].mxu0
      %v1264 = vadd.f32 0.0, %v1263
      %v1265 = vpop.f32.mrb[0].mxu0
      %v1266 = vpop.f32.mrb[0].mxu0
      %v1267 = vadd.f32 0.0, %v1266
      %v1268 = vpop.f32.mrb[0].mxu0
      %1269 = vmatprep.mubr.bf16.mxu0 0
      %1270 = vmatmul.mubr.bf16.gmra.mrb[0].mxu0 %v1147
      %v1271 = vpop.f32.mrb[0].mxu0
      %v1272 = vadd.f32 0.0, %v1271
      %v1273 = vpop.f32.mrb[0].mxu0
      %v1274 = vpop.f32.mrb[0].mxu0
      %v1275 = vadd.f32 0.0, %v1274
      %v1276 = vpop.f32.mrb[0].mxu0
      %1277 = vdwg.mxu0
      %v1278 = vadd.f32 %v1127, %v1248
      %v1279 = vadd.f32 %v1128, %v1251
      %v1280 = vadd.f32 %v1129, %v1256
      %v1281 = vadd.f32 %v1130, %v1259
      %v1282 = vadd.f32 %v1131, %v1264
      %v1283 = vadd.f32 %v1132, %v1267
      %v1284 = vadd.f32 %v1133, %v1272
      %v1285 = vadd.f32 %v1134, %v1275
      %s1286 = scalar_lea.vmem %s233, 160
      %v1287 = vld [vmem:[%s1286] sm:$0xff]
      %v1288 = vld [vmem:[%s1286 + $0x10] sm:$0xff]
      %v1289 = vld [vmem:[%s1286 + $0x20] sm:$0xff]
      %v1290 = vld [vmem:[%s1286 + $0x30] sm:$0xff]
      %v1291 = vld [vmem:[%s1286 + $0x40] sm:$0xff]
      %v1292 = vld [vmem:[%s1286 + $0x50] sm:$0xff]
      %v1293 = vld [vmem:[%s1286 + $0x60] sm:$0xff]
      %v1294 = vld [vmem:[%s1286 + $0x70] sm:$0xff]
      %v1295 = vpack.c.bf16 %v1288, %v1287
      %v1296 = vpack.c.bf16 %v1290, %v1289
      %v1297 = vpack.c.bf16 %v1292, %v1291
      %v1298 = vpack.c.bf16 %v1294, %v1293
      %s1299 = scalar_lea.vmem %s1, 448
      %v1300 = vld [vmem:[%s1299] sm:$0xf]
      %v1301 = vld [vmem:[%s1299 + $0x4] sm:$0xf]
      %v1302 = vld [vmem:[%s1299 + $0x8] sm:$0xf]
      %v1303 = vld [vmem:[%s1299 + $0xc] sm:$0xf]
      %v1304 = vld [vmem:[%s1299 + $0x10] sm:$0xf]
      %v1305 = vld [vmem:[%s1299 + $0x14] sm:$0xf]
      %v1306 = vld [vmem:[%s1299 + $0x18] sm:$0xf]
      %v1307 = vld [vmem:[%s1299 + $0x1c] sm:$0xf]
      %v1308 = vld [vmem:[%s1299 + $0x20] sm:$0xf]
      %v1309 = vld [vmem:[%s1299 + $0x24] sm:$0xf]
      %v1310 = vld [vmem:[%s1299 + $0x28] sm:$0xf]
      %v1311 = vld [vmem:[%s1299 + $0x2c] sm:$0xf]
      %v1312 = vld [vmem:[%s1299 + $0x30] sm:$0xf]
      %v1313 = vld [vmem:[%s1299 + $0x34] sm:$0xf]
      %v1314 = vld [vmem:[%s1299 + $0x38] sm:$0xf]
      %v1315 = vld [vmem:[%s1299 + $0x3c] sm:$0xf]
      %v1332 = vunpack.c.l.b16 %v1300
      %v1333 = vunpack.c.l.b16 %v1301
      %v1334 = vunpack.c.l.b16 %v1302
      %v1335 = vunpack.c.l.b16 %v1303
      %v1336 = vunpack.c.l.b16 %v1304
      %v1337 = vunpack.c.l.b16 %v1305
      %v1338 = vunpack.c.l.b16 %v1306
      %v1339 = vunpack.c.l.b16 %v1307
      %v1340 = vunpack.c.l.b16 %v1308
      %v1341 = vunpack.c.l.b16 %v1309
      %v1342 = vunpack.c.l.b16 %v1310
      %v1343 = vunpack.c.l.b16 %v1311
      %v1344 = vunpack.c.l.b16 %v1312
      %v1345 = vunpack.c.l.b16 %v1313
      %v1346 = vunpack.c.l.b16 %v1314
      %v1347 = vunpack.c.l.b16 %v1315
      %v1348 = vpack.c.b16 %v1333, %v1332
      %v1349 = vpack.c.b16 %v1335, %v1334
      %v1350 = vpack.c.b16 %v1337, %v1336
      %v1351 = vpack.c.b16 %v1339, %v1338
      %v1352 = vpack.c.b16 %v1341, %v1340
      %v1353 = vpack.c.b16 %v1343, %v1342
      %v1354 = vpack.c.b16 %v1345, %v1344
      %v1355 = vpack.c.b16 %v1347, %v1346
      %1364 = vmatprep.subr.bf16.mxu0 0
      %1365 = vmatpush1.bf16.msra.mxu0 %v1348
      %1366 = vmatprep.subr.bf16.mxu0 0
      %1367 = vmatpush1.bf16.msra.mxu0 %v1349
      %1368 = vmatprep.subr.bf16.mxu0 0
      %1369 = vmatpush1.bf16.msra.mxu0 %v1350
      %1370 = vmatprep.subr.bf16.mxu0 0
      %1371 = vmatpush1.bf16.msra.mxu0 %v1351
      %1372 = vmatprep.subr.bf16.mxu0 0
      %1373 = vmatpush1.bf16.msra.mxu0 %v1352
      %1374 = vmatprep.subr.bf16.mxu0 0
      %1375 = vmatpush1.bf16.msra.mxu0 %v1353
      %1376 = vmatprep.subr.bf16.mxu0 0
      %1377 = vmatpush1.bf16.msra.mxu0 %v1354
      %1378 = vmatprep.subr.bf16.mxu0 0
      %1379 = vmatpush1.bf16.msra.mxu0 %v1355
      %1380 = vmatprep.subr.bf16.mxu0 0
      %1381 = vmatpush1.bf16.msra.mxu0 0
      %1382 = vmatprep.subr.bf16.mxu0 0
      %1383 = vmatpush1.bf16.msra.mxu0 0
      %1384 = vmatprep.subr.bf16.mxu0 0
      %1385 = vmatpush1.bf16.msra.mxu0 0
      %1386 = vmatprep.subr.bf16.mxu0 0
      %1387 = vmatpush1.bf16.msra.mxu0 0
      %1388 = vmatprep.subr.bf16.mxu0 0
      %1389 = vmatpush1.bf16.msra.mxu0 0
      %1390 = vmatprep.subr.bf16.mxu0 0
      %1391 = vmatpush1.bf16.msra.mxu0 0
      %1392 = vmatprep.subr.bf16.mxu0 0
      %1393 = vmatpush1.bf16.msra.mxu0 0
      %1394 = vmatprep.subr.bf16.mxu0 0
      %1395 = vmatpush1.bf16.msra.mxu0 0
      %1396 = vmatprep.mubr.bf16.mxu0 0
      %1397 = vmatmul.mubr.bf16.gmra.mrb[0].mxu0 %v1295
      %v1398 = vpop.f32.mrb[0].mxu0
      %v1399 = vadd.f32 0.0, %v1398
      %v1400 = vpop.f32.mrb[0].mxu0
      %v1401 = vpop.f32.mrb[0].mxu0
      %v1402 = vadd.f32 0.0, %v1401
      %v1403 = vpop.f32.mrb[0].mxu0
      %1404 = vmatprep.mubr.bf16.mxu0 0
      %1405 = vmatmul.mubr.bf16.gmra.mrb[0].mxu0 %v1296
      %v1406 = vpop.f32.mrb[0].mxu0
      %v1407 = vadd.f32 0.0, %v1406
      %v1408 = vpop.f32.mrb[0].mxu0
      %v1409 = vpop.f32.mrb[0].mxu0
      %v1410 = vadd.f32 0.0, %v1409
      %v1411 = vpop.f32.mrb[0].mxu0
      %1412 = vmatprep.mubr.bf16.mxu0 0
      %1413 = vmatmul.mubr.bf16.gmra.mrb[0].mxu0 %v1297
      %v1414 = vpop.f32.mrb[0].mxu0
      %v1415 = vadd.f32 0.0, %v1414
      %v1416 = vpop.f32.mrb[0].mxu0
      %v1417 = vpop.f32.mrb[0].mxu0
      %v1418 = vadd.f32 0.0, %v1417
      %v1419 = vpop.f32.mrb[0].mxu0
      %1420 = vmatprep.mubr.bf16.mxu0 0
      %1421 = vmatmul.mubr.bf16.gmra.mrb[0].mxu0 %v1298
      %v1422 = vpop.f32.mrb[0].mxu0
      %v1423 = vadd.f32 0.0, %v1422
      %v1424 = vpop.f32.mrb[0].mxu0
      %v1425 = vpop.f32.mrb[0].mxu0
      %v1426 = vadd.f32 0.0, %v1425
      %v1427 = vpop.f32.mrb[0].mxu0
      %1428 = vdwg.mxu0
      %v1429 = vadd.f32 %v1278, %v1399
      %v1430 = vadd.f32 %v1279, %v1402
      %v1431 = vadd.f32 %v1280, %v1407
      %v1432 = vadd.f32 %v1281, %v1410
      %v1433 = vadd.f32 %v1282, %v1415
      %v1434 = vadd.f32 %v1283, %v1418
      %v1435 = vadd.f32 %v1284, %v1423
      %v1436 = vadd.f32 %v1285, %v1426
      %v1437 = vld [vmem:[%s1135 + $0x1] sm:$0xff]
      %v1438 = vld [vmem:[%s1135 + $0x11] sm:$0xff]
      %v1439 = vld [vmem:[%s1135 + $0x21] sm:$0xff]
      %v1440 = vld [vmem:[%s1135 + $0x31] sm:$0xff]
      %v1441 = vld [vmem:[%s1135 + $0x41] sm:$0xff]
      %v1442 = vld [vmem:[%s1135 + $0x51] sm:$0xff]
      %v1443 = vld [vmem:[%s1135 + $0x61] sm:$0xff]
      %v1444 = vld [vmem:[%s1135 + $0x71] sm:$0xff]
      %v1445 = vpack.c.bf16 %v1438, %v1437
      %v1446 = vpack.c.bf16 %v1440, %v1439
      %v1447 = vpack.c.bf16 %v1442, %v1441
      %v1448 = vpack.c.bf16 %v1444, %v1443
      %s1449 = scalar_lea.vmem %s1, 512
      %v1450 = vld [vmem:[%s1449] sm:$0xf]
      %v1451 = vld [vmem:[%s1449 + $0x4] sm:$0xf]
      %v1452 = vld [vmem:[%s1449 + $0x8] sm:$0xf]
      %v1453 = vld [vmem:[%s1449 + $0xc] sm:$0xf]
      %v1454 = vld [vmem:[%s1449 + $0x10] sm:$0xf]
      %v1455 = vld [vmem:[%s1449 + $0x14] sm:$0xf]
      %v1456 = vld [vmem:[%s1449 + $0x18] sm:$0xf]
      %v1457 = vld [vmem:[%s1449 + $0x1c] sm:$0xf]
      %v1458 = vld [vmem:[%s1449 + $0x20] sm:$0xf]
      %v1459 = vld [vmem:[%s1449 + $0x24] sm:$0xf]
      %v1460 = vld [vmem:[%s1449 + $0x28] sm:$0xf]
      %v1461 = vld [vmem:[%s1449 + $0x2c] sm:$0xf]
      %v1462 = vld [vmem:[%s1449 + $0x30] sm:$0xf]
      %v1463 = vld [vmem:[%s1449 + $0x34] sm:$0xf]
      %v1464 = vld [vmem:[%s1449 + $0x38] sm:$0xf]
      %v1465 = vld [vmem:[%s1449 + $0x3c] sm:$0xf]
      %v1482 = vunpack.c.l.b16 %v1450
      %v1483 = vunpack.c.l.b16 %v1451
      %v1484 = vunpack.c.l.b16 %v1452
      %v1485 = vunpack.c.l.b16 %v1453
      %v1486 = vunpack.c.l.b16 %v1454
      %v1487 = vunpack.c.l.b16 %v1455
      %v1488 = vunpack.c.l.b16 %v1456
      %v1489 = vunpack.c.l.b16 %v1457
      %v1490 = vunpack.c.l.b16 %v1458
      %v1491 = vunpack.c.l.b16 %v1459
      %v1492 = vunpack.c.l.b16 %v1460
      %v1493 = vunpack.c.l.b16 %v1461
      %v1494 = vunpack.c.l.b16 %v1462
      %v1495 = vunpack.c.l.b16 %v1463
      %v1496 = vunpack.c.l.b16 %v1464
      %v1497 = vunpack.c.l.b16 %v1465
      %v1498 = vpack.c.b16 %v1483, %v1482
      %v1499 = vpack.c.b16 %v1485, %v1484
      %v1500 = vpack.c.b16 %v1487, %v1486
      %v1501 = vpack.c.b16 %v1489, %v1488
      %v1502 = vpack.c.b16 %v1491, %v1490
      %v1503 = vpack.c.b16 %v1493, %v1492
      %v1504 = vpack.c.b16 %v1495, %v1494
      %v1505 = vpack.c.b16 %v1497, %v1496
      %1514 = vmatprep.subr.bf16.mxu0 0
      %1515 = vmatpush1.bf16.msra.mxu0 %v1498
      %1516 = vmatprep.subr.bf16.mxu0 0
      %1517 = vmatpush1.bf16.msra.mxu0 %v1499
      %1518 = vmatprep.subr.bf16.mxu0 0
      %1519 = vmatpush1.bf16.msra.mxu0 %v1500
      %1520 = vmatprep.subr.bf16.mxu0 0
      %1521 = vmatpush1.bf16.msra.mxu0 %v1501
      %1522 = vmatprep.subr.bf16.mxu0 0
      %1523 = vmatpush1.bf16.msra.mxu0 %v1502
      %1524 = vmatprep.subr.bf16.mxu0 0
      %1525 = vmatpush1.bf16.msra.mxu0 %v1503
      %1526 = vmatprep.subr.bf16.mxu0 0
      %1527 = vmatpush1.bf16.msra.mxu0 %v1504
      %1528 = vmatprep.subr.bf16.mxu0 0
      %1529 = vmatpush1.bf16.msra.mxu0 %v1505
      %1530 = vmatprep.subr.bf16.mxu0 0
      %1531 = vmatpush1.bf16.msra.mxu0 0
      %1532 = vmatprep.subr.bf16.mxu0 0
      %1533 = vmatpush1.bf16.msra.mxu0 0
      %1534 = vmatprep.subr.bf16.mxu0 0
      %1535 = vmatpush1.bf16.msra.mxu0 0
      %1536 = vmatprep.subr.bf16.mxu0 0
      %1537 = vmatpush1.bf16.msra.mxu0 0
      %1538 = vmatprep.subr.bf16.mxu0 0
      %1539 = vmatpush1.bf16.msra.mxu0 0
      %1540 = vmatprep.subr.bf16.mxu0 0
      %1541 = vmatpush1.bf16.msra.mxu0 0
      %1542 = vmatprep.subr.bf16.mxu0 0
      %1543 = vmatpush1.bf16.msra.mxu0 0
      %1544 = vmatprep.subr.bf16.mxu0 0
      %1545 = vmatpush1.bf16.msra.mxu0 0
      %1546 = vmatprep.mubr.bf16.mxu0 0
      %1547 = vmatmul.mubr.bf16.gmra.mrb[0].mxu0 %v1445
      %v1548 = vpop.f32.mrb[0].mxu0
      %v1549 = vadd.f32 0.0, %v1548
      %v1550 = vpop.f32.mrb[0].mxu0
      %v1551 = vpop.f32.mrb[0].mxu0
      %v1552 = vadd.f32 0.0, %v1551
      %v1553 = vpop.f32.mrb[0].mxu0
      %1554 = vmatprep.mubr.bf16.mxu0 0
      %1555 = vmatmul.mubr.bf16.gmra.mrb[0].mxu0 %v1446
      %v1556 = vpop.f32.mrb[0].mxu0
      %v1557 = vadd.f32 0.0, %v1556
      %v1558 = vpop.f32.mrb[0].mxu0
      %v1559 = vpop.f32.mrb[0].mxu0
      %v1560 = vadd.f32 0.0, %v1559
      %v1561 = vpop.f32.mrb[0].mxu0
      %1562 = vmatprep.mubr.bf16.mxu0 0
      %1563 = vmatmul.mubr.bf16.gmra.mrb[0].mxu0 %v1447
      %v1564 = vpop.f32.mrb[0].mxu0
      %v1565 = vadd.f32 0.0, %v1564
      %v1566 = vpop.f32.mrb[0].mxu0
      %v1567 = vpop.f32.mrb[0].mxu0
      %v1568 = vadd.f32 0.0, %v1567
      %v1569 = vpop.f32.mrb[0].mxu0
      %1570 = vmatprep.mubr.bf16.mxu0 0
      %1571 = vmatmul.mubr.bf16.gmra.mrb[0].mxu0 %v1448
      %v1572 = vpop.f32.mrb[0].mxu0
      %v1573 = vadd.f32 0.0, %v1572
      %v1574 = vpop.f32.mrb[0].mxu0
      %v1575 = vpop.f32.mrb[0].mxu0
      %v1576 = vadd.f32 0.0, %v1575
      %v1577 = vpop.f32.mrb[0].mxu0
      %1578 = vdwg.mxu0
      %v1579 = vadd.f32 %v1429, %v1549
      %v1580 = vadd.f32 %v1430, %v1552
      %v1581 = vadd.f32 %v1431, %v1557
      %v1582 = vadd.f32 %v1432, %v1560
      %v1583 = vadd.f32 %v1433, %v1565
      %v1584 = vadd.f32 %v1434, %v1568
      %v1585 = vadd.f32 %v1435, %v1573
      %v1586 = vadd.f32 %v1436, %v1576
      %1587 = vst [vmem:[%s238] sm:$0xff] %v1579
      %1588 = vst [vmem:[%s238 + $0x8] sm:$0xff] %v1580
      %1589 = vst [vmem:[%s238 + $0x10] sm:$0xff] %v1581
      %1590 = vst [vmem:[%s238 + $0x18] sm:$0xff] %v1582
      %1591 = vst [vmem:[%s238 + $0x20] sm:$0xff] %v1583
      %1592 = vst [vmem:[%s238 + $0x28] sm:$0xff] %v1584
      %1593 = vst [vmem:[%s238 + $0x30] sm:$0xff] %v1585
      %1594 = vst [vmem:[%s238 + $0x38] sm:$0xff] %v1586
      %v1595 = vadd.f32 %v1579, %v1580
      %v1596 = vadd.f32 %v1595, %v1581
      %v1597 = vadd.f32 %v1596, %v1582
      %v1598 = vadd.f32 %v1597, %v1583
      %v1599 = vadd.f32 %v1598, %v1584
      %v1600 = vadd.f32 %v1599, %v1585
      %v1601 = vadd.f32 %v1600, %v1586
      %v1602 = vrot.slane %v1601, 4
      %v1603 = vadd.f32 %v1601, %v1602
      %v1604 = vrot.slane %v1603, 2
      %v1605 = vadd.f32 %v1603, %v1604
      %v1606 = vrot.slane %v1605, 1
      %v1607 = vadd.f32 %v1605, %v1606
      %v1608 = vmul.f32 %v1607, 0.015625
      %v1609 = vsub.f32 %v1579, %v1608
      %v1610 = vsub.f32 %v1580, %v1608
      %v1611 = vsub.f32 %v1581, %v1608
      %v1612 = vsub.f32 %v1582, %v1608
      %v1613 = vsub.f32 %v1583, %v1608
      %v1614 = vsub.f32 %v1584, %v1608
      %v1615 = vsub.f32 %v1585, %v1608
      %v1616 = vsub.f32 %v1586, %v1608
      %v1617 = vmul.f32 %v1609, %v1609
      %v1618 = vmul.f32 %v1610, %v1610
      %v1619 = vmul.f32 %v1611, %v1611
      %v1620 = vmul.f32 %v1612, %v1612
      %v1621 = vmul.f32 %v1613, %v1613
      %v1622 = vmul.f32 %v1614, %v1614
      %v1623 = vmul.f32 %v1615, %v1615
      %v1624 = vmul.f32 %v1616, %v1616
      %v1625 = vadd.f32 %v1617, %v1618
      %v1626 = vadd.f32 %v1625, %v1619
      %v1627 = vadd.f32 %v1626, %v1620
      %v1628 = vadd.f32 %v1627, %v1621
      %v1629 = vadd.f32 %v1628, %v1622
      %v1630 = vadd.f32 %v1629, %v1623
      %v1631 = vadd.f32 %v1630, %v1624
      %v1632 = vrot.slane %v1631, 4
      %v1633 = vadd.f32 %v1631, %v1632
      %v1634 = vrot.slane %v1633, 2
      %v1635 = vadd.f32 %v1633, %v1634
      %v1636 = vrot.slane %v1635, 1
      %v1637 = vadd.f32 %v1635, %v1636
      %v1638 = vld [vmem:[%s2] sm:$0xf]
      %v1639 = vld [vmem:[%s2 + $0x4] sm:$0xf]
      %v1640 = vld [vmem:[%s2 + $0x8] sm:$0xf]
      %v1641 = vld [vmem:[%s2 + $0xc] sm:$0xf]
      %v1642 = vld [vmem:[%s2 + $0x10] sm:$0xf]
      %v1643 = vld [vmem:[%s2 + $0x14] sm:$0xf]
      %v1644 = vld [vmem:[%s2 + $0x18] sm:$0xf]
      %v1645 = vld [vmem:[%s2 + $0x1c] sm:$0xf]
      %v1646 = vld [vmem:[%s2 + $0x20] sm:$0xf]
      %v1647 = vld [vmem:[%s2 + $0x24] sm:$0xf]
      %v1648 = vld [vmem:[%s2 + $0x28] sm:$0xf]
      %v1649 = vld [vmem:[%s2 + $0x2c] sm:$0xf]
      %v1650 = vld [vmem:[%s2 + $0x30] sm:$0xf]
      %v1651 = vld [vmem:[%s2 + $0x34] sm:$0xf]
      %v1652 = vld [vmem:[%s2 + $0x38] sm:$0xf]
      %v1653 = vld [vmem:[%s2 + $0x3c] sm:$0xf]
      %v1670 = vunpack.c.l.b16 %v1638
      %v1671 = vunpack.c.l.b16 %v1639
      %v1672 = vunpack.c.l.b16 %v1640
      %v1673 = vunpack.c.l.b16 %v1641
      %v1674 = vunpack.c.l.b16 %v1642
      %v1675 = vunpack.c.l.b16 %v1643
      %v1676 = vunpack.c.l.b16 %v1644
      %v1677 = vunpack.c.l.b16 %v1645
      %v1678 = vunpack.c.l.b16 %v1646
      %v1679 = vunpack.c.l.b16 %v1647
      %v1680 = vunpack.c.l.b16 %v1648
      %v1681 = vunpack.c.l.b16 %v1649
      %v1682 = vunpack.c.l.b16 %v1650
      %v1683 = vunpack.c.l.b16 %v1651
      %v1684 = vunpack.c.l.b16 %v1652
      %v1685 = vunpack.c.l.b16 %v1653
      %v1686 = vpack.c.b16 %v1671, %v1670
      %v1687 = vpack.c.b16 %v1673, %v1672
      %v1688 = vpack.c.b16 %v1675, %v1674
      %v1689 = vpack.c.b16 %v1677, %v1676
      %v1690 = vpack.c.b16 %v1679, %v1678
      %v1691 = vpack.c.b16 %v1681, %v1680
      %v1692 = vpack.c.b16 %v1683, %v1682
      %v1693 = vpack.c.b16 %v1685, %v1684
      %1702 = vmatprep.subr.bf16.mxu0 0
      %1703 = vmatpush1.bf16.msra.mxu0 %v1686
      %1704 = vmatprep.subr.bf16.mxu0 0
      %1705 = vmatpush1.bf16.msra.mxu0 %v1687
      %1706 = vmatprep.subr.bf16.mxu0 0
      %1707 = vmatpush1.bf16.msra.mxu0 %v1688
      %1708 = vmatprep.subr.bf16.mxu0 0
      %1709 = vmatpush1.bf16.msra.mxu0 %v1689
      %1710 = vmatprep.subr.bf16.mxu0 0
      %1711 = vmatpush1.bf16.msra.mxu0 %v1690
      %1712 = vmatprep.subr.bf16.mxu0 0
      %1713 = vmatpush1.bf16.msra.mxu0 %v1691
      %1714 = vmatprep.subr.bf16.mxu0 0
      %1715 = vmatpush1.bf16.msra.mxu0 %v1692
      %1716 = vmatprep.subr.bf16.mxu0 0
      %1717 = vmatpush1.bf16.msra.mxu0 %v1693
      %1718 = vmatprep.subr.bf16.mxu0 0
      %1719 = vmatpush1.bf16.msra.mxu0 0
      %1720 = vmatprep.subr.bf16.mxu0 0
      %1721 = vmatpush1.bf16.msra.mxu0 0
      %1722 = vmatprep.subr.bf16.mxu0 0
      %1723 = vmatpush1.bf16.msra.mxu0 0
      %1724 = vmatprep.subr.bf16.mxu0 0
      %1725 = vmatpush1.bf16.msra.mxu0 0
      %1726 = vmatprep.subr.bf16.mxu0 0
      %1727 = vmatpush1.bf16.msra.mxu0 0
      %1728 = vmatprep.subr.bf16.mxu0 0
      %1729 = vmatpush1.bf16.msra.mxu0 0
      %1730 = vmatprep.subr.bf16.mxu0 0
      %1731 = vmatpush1.bf16.msra.mxu0 0
      %1732 = vmatprep.subr.bf16.mxu0 0
      %1733 = vmatpush1.bf16.msra.mxu0 0
      %1734 = vmatprep.mubr.bf16.mxu0 0
      %1735 = vmatmul.mubr.bf16.gmra.mrb[0].mxu0 %v843
      %v1736 = vpop.f32.mrb[0].mxu0
      %v1737 = vadd.f32 0.0, %v1736
      %v1738 = vpop.f32.mrb[0].mxu0
      %v1739 = vpop.f32.mrb[0].mxu0
      %v1740 = vadd.f32 0.0, %v1739
      %v1741 = vpop.f32.mrb[0].mxu0
      %1742 = vmatprep.mubr.bf16.mxu0 0
      %1743 = vmatmul.mubr.bf16.gmra.mrb[0].mxu0 %v844
      %v1744 = vpop.f32.mrb[0].mxu0
      %v1745 = vadd.f32 0.0, %v1744
      %v1746 = vpop.f32.mrb[0].mxu0
      %v1747 = vpop.f32.mrb[0].mxu0
      %v1748 = vadd.f32 0.0, %v1747
      %v1749 = vpop.f32.mrb[0].mxu0
      %1750 = vmatprep.mubr.bf16.mxu0 0
      %1751 = vmatmul.mubr.bf16.gmra.mrb[0].mxu0 %v845
      %v1752 = vpop.f32.mrb[0].mxu0
      %v1753 = vadd.f32 0.0, %v1752
      %v1754 = vpop.f32.mrb[0].mxu0
      %v1755 = vpop.f32.mrb[0].mxu0
      %v1756 = vadd.f32 0.0, %v1755
      %v1757 = vpop.f32.mrb[0].mxu0
      %1758 = vmatprep.mubr.bf16.mxu0 0
      %1759 = vmatmul.mubr.bf16.gmra.mrb[0].mxu0 %v846
      %v1760 = vpop.f32.mrb[0].mxu0
      %v1761 = vadd.f32 0.0, %v1760
      %v1762 = vpop.f32.mrb[0].mxu0
      %v1763 = vpop.f32.mrb[0].mxu0
      %v1764 = vadd.f32 0.0, %v1763
      %v1765 = vpop.f32.mrb[0].mxu0
      %1766 = vdwg.mxu0
      %1767 = vst [vmem:[%s243] sm:$0xff] %v1737
      %1768 = vst [vmem:[%s243 + $0x8] sm:$0xff] %v1740
      %1769 = vst [vmem:[%s243 + $0x10] sm:$0xff] %v1745
      %1770 = vst [vmem:[%s243 + $0x18] sm:$0xff] %v1748
      %1771 = vst [vmem:[%s243 + $0x20] sm:$0xff] %v1753
      %1772 = vst [vmem:[%s243 + $0x28] sm:$0xff] %v1756
      %1773 = vst [vmem:[%s243 + $0x30] sm:$0xff] %v1761
      %1774 = vst [vmem:[%s243 + $0x38] sm:$0xff] %v1764
      %v1775 = vadd.f32 %v1737, %v1740
      %v1776 = vadd.f32 %v1775, %v1745
      %v1777 = vadd.f32 %v1776, %v1748
      %v1778 = vadd.f32 %v1777, %v1753
      %v1779 = vadd.f32 %v1778, %v1756
      %v1780 = vadd.f32 %v1779, %v1761
      %v1781 = vadd.f32 %v1780, %v1764
      %v1782 = vrot.slane %v1781, 4
      %v1783 = vadd.f32 %v1781, %v1782
      %v1784 = vrot.slane %v1783, 2
      %v1785 = vadd.f32 %v1783, %v1784
      %v1786 = vrot.slane %v1785, 1
      %v1787 = vadd.f32 %v1785, %v1786
      %v1788 = vmul.f32 %v1787, 0.015625
      %v1789 = vsub.f32 %v1737, %v1788
      %v1790 = vsub.f32 %v1740, %v1788
      %v1791 = vsub.f32 %v1745, %v1788
      %v1792 = vsub.f32 %v1748, %v1788
      %v1793 = vsub.f32 %v1753, %v1788
      %v1794 = vsub.f32 %v1756, %v1788
      %v1795 = vsub.f32 %v1761, %v1788
      %v1796 = vsub.f32 %v1764, %v1788
      %v1797 = vmul.f32 %v1789, %v1789
      %v1798 = vmul.f32 %v1790, %v1790
      %v1799 = vmul.f32 %v1791, %v1791
      %v1800 = vmul.f32 %v1792, %v1792
      %v1801 = vmul.f32 %v1793, %v1793
      %v1802 = vmul.f32 %v1794, %v1794
      %v1803 = vmul.f32 %v1795, %v1795
      %v1804 = vmul.f32 %v1796, %v1796
      %v1805 = vadd.f32 %v1797, %v1798
      %v1806 = vadd.f32 %v1805, %v1799
      %v1807 = vadd.f32 %v1806, %v1800
      %v1808 = vadd.f32 %v1807, %v1801
      %v1809 = vadd.f32 %v1808, %v1802
      %v1810 = vadd.f32 %v1809, %v1803
      %v1811 = vadd.f32 %v1810, %v1804
      %v1812 = vrot.slane %v1811, 4
      %v1813 = vadd.f32 %v1811, %v1812
      %v1814 = vrot.slane %v1813, 2
      %v1815 = vadd.f32 %v1813, %v1814
      %v1816 = vrot.slane %v1815, 1
      %v1817 = vadd.f32 %v1815, %v1816
      %vm1818 = vcmask 1040384
      %v1819 = vsel %vm1818, %v1607, %v1637
      %vm1820 = vcmask 1041408
      %v1821 = vsel %vm1820, %v1819, %v1787
      %vm1822 = vcmask 1042432
      %v1823 = vsel %vm1822, %v1821, %v1817
      %1824 = vst [vmem:[%s247] sm:$0xf] %v1823
      %p1825 = scmp.lt.s32.totalorder %s17, 1
      %s1826 = scalar_select %p1825, %s17, 1
      %s1827 = smul.addr %s1826, 8
      %s1828 = smul.addr %s1827, 8
      %s1829 = scalar_lea.vmem %s3, %s1828
      %p1830 = scmp.lt.s32.totalorder %s17, 1
      %s1831 = scalar_select %p1830, %s17, 1
      %s1832 = smul.addr %s1831, 8
      %s1833 = smul.addr %s1832, 8
      %s1834 = scalar_lea.vmem %s4, %s1833
      %p1835 = scmp.lt.s32.totalorder %s17, 1
      %s1836 = scalar_select %p1835, %s17, 1
      %s1837 = smul.addr %s1836, 4
      %s1838 = scalar_lea.vmem %s5, %s1837
      // Predicated region
      $region33: #{basic_block_forward.3} parent=31 // pred_check
        %p1839 = pneg %p103
      $region34: #{basic_block_forward.3} parent=31 // pred_check_branch
        %1841 = sbr.rel (%p1839) target = $region36
      $region35: #{basic_block_forward.3} parent=31 // pred_region
        _
      $region36: #{basic_block_forward.3} parent=31 // pred_fallthru
        _
      // Predicated region
      $region37: #{basic_block_forward.3} parent=31 // pred_check
        %p1842 = pneg %p129
      $region38: #{basic_block_forward.3} parent=31 // pred_check_branch
        %1844 = sbr.rel (%p1842) target = $region40
      $region39: #{basic_block_forward.3} parent=31 // pred_region
        _
      $region40: #{basic_block_forward.3} parent=31 // pred_fallthru
        _
      // Predicated region
      $region41: #{basic_block_forward.3} parent=31 // pred_check
        %p1845 = pneg %p155
      $region42: #{basic_block_forward.3} parent=31 // pred_check_branch
        %1847 = sbr.rel (%p1845) target = $region44
      $region43: #{basic_block_forward.3} parent=31 // pred_region
        _
      $region44: #{basic_block_forward.3} parent=31 // pred_fallthru
        _
    $region32: #{basic_block_forward.3} parent=5 // pred_fallthru
      _
    %p1848 = scmp.le.s32.totalorder 2, %s12
    // Predicated region
    $region45: #{basic_block_forward.3} parent=5 // pred_check
      %p1849 = pneg %p1848
    $region46: #{basic_block_forward.3} parent=5 // pred_check_branch
      %1851 = sbr.rel (%p1849) target = $region48
    $region47: #{basic_block_forward.3} parent=5 // pred_region
      %s1852 = ssub.s32 %s12, 2
      // Predicated region
      $region49: #{basic_block_forward.3} parent=47 // pred_check
        %p1853 = pneg %p109
      $region50: #{basic_block_forward.3} parent=47 // pred_check_branch
        %1855 = sbr.rel (%p1853) target = $region52
      $region51: #{basic_block_forward.3} parent=47 // pred_region
        %p1856 = scmp.lt.s32.totalorder %s18, 1
        %s1857 = scalar_select %p1856, %s18, 1
        %s1858 = smul.addr %s1857, 8
        %s1859 = smul.addr %s1858, 8
        %s1860 = scalar_lea.vmem %s3, %s1859
      $region52: #{basic_block_forward.3} parent=47 // pred_fallthru
        _
      // Predicated region
      $region53: #{basic_block_forward.3} parent=47 // pred_check
        %p1861 = pneg %p135
      $region54: #{basic_block_forward.3} parent=47 // pred_check_branch
        %1863 = sbr.rel (%p1861) target = $region56
      $region55: #{basic_block_forward.3} parent=47 // pred_region
        %p1864 = scmp.lt.s32.totalorder %s18, 1
        %s1865 = scalar_select %p1864, %s18, 1
        %s1866 = smul.addr %s1865, 8
        %s1867 = smul.addr %s1866, 8
        %s1868 = scalar_lea.vmem %s4, %s1867
      $region56: #{basic_block_forward.3} parent=47 // pred_fallthru
        _
      // Predicated region
      $region57: #{basic_block_forward.3} parent=47 // pred_check
        %p1869 = pneg %p161
      $region58: #{basic_block_forward.3} parent=47 // pred_check_branch
        %1871 = sbr.rel (%p1869) target = $region60
      $region59: #{basic_block_forward.3} parent=47 // pred_region
        %p1872 = scmp.lt.s32.totalorder %s18, 1
        %s1873 = scalar_select %p1872, %s18, 1
        %s1874 = smul.addr %s1873, 4
        %s1875 = scalar_lea.vmem %s5, %s1874
      $region60: #{basic_block_forward.3} parent=47 // pred_fallthru
        _
    $region48: #{basic_block_forward.3} parent=5 // pred_fallthru
      _
  $region6: #{basic_block_forward.3} parent=0 // loop_footer
    %s16 = sadd.s32 1, %s12
  $region7: #{basic_block_forward.3} parent=0 // loop_footer_branch
    %11 = sbr.rel target = $region3
  $region8: #{basic_block_forward.3} parent=0 // loop_exit
    _

// kernel: basic_block_forward.4
$region0: #{basic_block_forward.4}
  #allocation0 [shape = 'u32[]', space=smem, size = 0x4, offset = 0x4, fixed_abs, tag = 'smem constant byte address 0x4 - core index']
  #allocation1 [shape = 'u32[144,128]{1,0:T(1,128)}', space=vmem, size = 0x12000, scoped, tag = 'internal scratch']
  #allocation2 [shape = 'f32[10,10,128]{2,1,0:T(8,128)}', space=vmem, size = 0x14000, scoped, tag = 'scratch operand']
  %s0 = inlined_call_operand.vmem [shape: f32[2,8,8,128], index: 0, kind: input, shape index: {}]
  %s1 = inlined_call_operand.vmem [shape: f32[2,128], index: 1, kind: input, shape index: {}]
  %s2 = inlined_call_operand.vmem [shape: bf16[9,128,128], index: 2, kind: input, shape index: {}]
  %s3 = inlined_call_operand.vmem [shape: f32[2,8,8,128], index: 3, kind: output, shape index: {0}]
  %s4 = inlined_call_operand.vmem [shape: f32[2,2,128], index: 4, kind: output, shape index: {1}]
  %5 = xla_tuple %s3, %s4
  %s6 = sld [smem:[#allocation0]]
  $region53: #{basic_block_forward.4} parent=0
    _
  %s8 = ssub.s32 1, %s6
  %s9 = scalar_select 0, %s8, %s6
  loop: start=0, step=1, limit=4
  $region2: #{basic_block_forward.4} parent=0 // loop_pre_header
    _
  $region3: #{basic_block_forward.4} parent=0 // loop_header
    %s11 = sphi 0, %s15
    %p12 = scmp.ge.s32.totalorder %s11, 4
    %s21 = sphi 0, %s23
    %s24 = sphi 0, %s21
    %s25 = sphi 0, %s24
    %s41 = sphi 0, %s25
    %s45 = sphi 0, %s45
    %s47 = sphi 0, %s45
    %s48 = sphi 0, %s47
    %s62 = sphi 0, %s48
    %s66 = sphi 0, %s66
    %s68 = sphi 0, %s66
    %s69 = sphi 0, %s68
    %s83 = sphi 0, %s69
    %s89 = sphi 0, %s91
    %s92 = sphi 0, %s89
    %s93 = sphi 0, %s92
    %s109 = sphi 0, %s93
    %s115 = sphi 0, %s117
    %s118 = sphi 0, %s115
    %s119 = sphi 0, %s118
    %s135 = sphi 0, %s119
  $region4: #{basic_block_forward.4} parent=0 // loop_header_branch
    %14 = sbr.rel (%p12) target = $region8
  $region5: #{basic_block_forward.4} parent=0 // loop_body
    %s16 = ssub.s32 %s11, 1
    %s17 = ssub.s32 %s11, 2
    %s18 = sadd.s32 %s11, 1
    %s19 = ssub.s32 %s11, %s18
    %p20 = scmp.eq.s32.totalorder %s19, 0
    %s22 = sadd.s32 %s21, 1
    %s23 = scalar_select %p20, %s21, %s22
    %p26 = pneg %p20
    %p27 = scmp.eq.s32.totalorder %s11, 1
    %p28 = por %p26, %p27
    %p29 = scmp.ne.s32.totalorder %s21, %s24
    %p30 = scmp.eq.s32.totalorder %s11, 0
    %p31 = por %p29, %p30
    %p32 = scmp.ne.s32.totalorder %s21, %s24
    %p33 = scmp.eq.s32.totalorder %s16, 1
    %p34 = por %p32, %p33
    %p35 = scmp.ne.s32.totalorder %s24, %s25
    %p36 = scmp.eq.s32.totalorder %s16, 0
    %p37 = por %p35, %p36
    %p38 = scmp.ne.s32.totalorder %s24, %s25
    %p39 = scmp.eq.s32.totalorder %s17, 1
    %p40 = por %p38, %p39
    %p42 = scmp.ne.s32.totalorder %s25, %s41
    %p43 = scmp.eq.s32.totalorder %s17, 0
    %p44 = por %p42, %p43
    %s46 = sadd.s32 %s45, 1
    %p49 = scmp.eq.s32.totalorder %s11, 1
    %p50 = scmp.ne.s32.totalorder %s45, %s47
    %p51 = scmp.eq.s32.totalorder %s11, 0
    %p52 = por %p50, %p51
    %p53 = scmp.ne.s32.totalorder %s45, %s47
    %p54 = scmp.eq.s32.totalorder %s16, 1
    %p55 = por %p53, %p54
    %p56 = scmp.ne.s32.totalorder %s47, %s48
    %p57 = scmp.eq.s32.totalorder %s16, 0
    %p58 = por %p56, %p57
    %p59 = scmp.ne.s32.totalorder %s47, %s48
    %p60 = scmp.eq.s32.totalorder %s17, 1
    %p61 = por %p59, %p60
    %p63 = scmp.ne.s32.totalorder %s48, %s62
    %p64 = scmp.eq.s32.totalorder %s17, 0
    %p65 = por %p63, %p64
    %s67 = sadd.s32 %s66, 1
    %p70 = scmp.eq.s32.totalorder %s11, 1
    %p71 = scmp.ne.s32.totalorder %s66, %s68
    %p72 = scmp.eq.s32.totalorder %s11, 0
    %p73 = por %p71, %p72
    %p74 = scmp.ne.s32.totalorder %s66, %s68
    %p75 = scmp.eq.s32.totalorder %s16, 1
    %p76 = por %p74, %p75
    %p77 = scmp.ne.s32.totalorder %s68, %s69
    %p78 = scmp.eq.s32.totalorder %s16, 0
    %p79 = por %p77, %p78
    %p80 = scmp.ne.s32.totalorder %s68, %s69
    %p81 = scmp.eq.s32.totalorder %s17, 1
    %p82 = por %p80, %p81
    %p84 = scmp.ne.s32.totalorder %s69, %s83
    %p85 = scmp.eq.s32.totalorder %s17, 0
    %p86 = por %p84, %p85
    %s87 = ssub.s32 %s11, %s18
    %p88 = scmp.eq.s32.totalorder %s87, 0
    %s90 = sadd.s32 %s89, 1
    %s91 = scalar_select %p88, %s89, %s90
    %p94 = pneg %p88
    %p95 = scmp.eq.s32.totalorder %s11, 1
    %p96 = por %p94, %p95
    %p97 = scmp.ne.s32.totalorder %s89, %s92
    %p98 = scmp.eq.s32.totalorder %s11, 0
    %p99 = por %p97, %p98
    %p100 = scmp.ne.s32.totalorder %s89, %s92
    %p101 = scmp.eq.s32.totalorder %s16, 1
    %p102 = por %p100, %p101
    %p103 = scmp.ne.s32.totalorder %s92, %s93
    %p104 = scmp.eq.s32.totalorder %s16, 0
    %p105 = por %p103, %p104
    %p106 = scmp.ne.s32.totalorder %s92, %s93
    %p107 = scmp.eq.s32.totalorder %s17, 1
    %p108 = por %p106, %p107
    %p110 = scmp.ne.s32.totalorder %s93, %s109
    %p111 = scmp.eq.s32.totalorder %s17, 0
    %p112 = por %p110, %p111
    %s113 = ssub.s32 %s11, %s18
    %p114 = scmp.eq.s32.totalorder %s113, 0
    %s116 = sadd.s32 %s115, 1
    %s117 = scalar_select %p114, %s115, %s116
    %p120 = pneg %p114
    %p121 = scmp.eq.s32.totalorder %s11, 1
    %p122 = por %p120, %p121
    %p123 = scmp.ne.s32.totalorder %s115, %s118
    %p124 = scmp.eq.s32.totalorder %s11, 0
    %p125 = por %p123, %p124
    %p126 = scmp.ne.s32.totalorder %s115, %s118
    %p127 = scmp.eq.s32.totalorder %s16, 1
    %p128 = por %p126, %p127
    %p129 = scmp.ne.s32.totalorder %s118, %s119
    %p130 = scmp.eq.s32.totalorder %s16, 0
    %p131 = por %p129, %p130
    %p132 = scmp.ne.s32.totalorder %s118, %s119
    %p133 = scmp.eq.s32.totalorder %s17, 1
    %p134 = por %p132, %p133
    %p136 = scmp.ne.s32.totalorder %s119, %s135
    %p137 = scmp.eq.s32.totalorder %s17, 0
    %p138 = por %p136, %p137
    %p139 = scmp.le.s32.totalorder 1, %s11
    %p140 = scmp.lt.s32.totalorder %s11, 3
    %p141 = pnand %p139, %p140
    %p142 = pneg %p141
    // Predicated region
    $region9: #{basic_block_forward.4} parent=5 // pred_check
      _
    $region10: #{basic_block_forward.4} parent=5 // pred_check_branch
      %144 = sbr.rel (%p141) target = $region12
    $region11: #{basic_block_forward.4} parent=5 // pred_region
      %s145 = ssub.s32 %s11, 1
      // Predicated region
      $region13: #{basic_block_forward.4} parent=11 // pred_check
        %p146 = pneg %p58
      $region14: #{basic_block_forward.4} parent=11 // pred_check_branch
        %148 = sbr.rel (%p146) target = $region16
      $region15: #{basic_block_forward.4} parent=11 // pred_region
        _
      $region16: #{basic_block_forward.4} parent=11 // pred_fallthru
        _
      // Predicated region
      $region17: #{basic_block_forward.4} parent=11 // pred_check
        %p149 = pneg %p79
      $region18: #{basic_block_forward.4} parent=11 // pred_check_branch
        %151 = sbr.rel (%p149) target = $region20
      $region19: #{basic_block_forward.4} parent=11 // pred_region
        _
      $region20: #{basic_block_forward.4} parent=11 // pred_fallthru
        _
    $region12: #{basic_block_forward.4} parent=5 // pred_fallthru
      _
    %p152 = scmp.lt.s32.totalorder %s11, 2
    // Predicated region
    $region21: #{basic_block_forward.4} parent=5 // pred_check
      %p153 = pneg %p152
    $region22: #{basic_block_forward.4} parent=5 // pred_check_branch
      %155 = sbr.rel (%p153) target = $region24
    $region23: #{basic_block_forward.4} parent=5 // pred_region
      // Predicated region
      $region25: #{basic_block_forward.4} parent=23 // pred_check
        %p156 = pneg %p31
      $region26: #{basic_block_forward.4} parent=23 // pred_check_branch
        %158 = sbr.rel (%p156) target = $region28
      $region27: #{basic_block_forward.4} parent=23 // pred_region
        %p159 = scmp.lt.s32.totalorder %s11, 1
        %s160 = scalar_select %p159, %s11, 1
        %s161 = smul.addr %s160, 8
        %s162 = smul.addr %s161, 8
        %s163 = scalar_lea.vmem %s0, %s162
      $region28: #{basic_block_forward.4} parent=23 // pred_fallthru
        _
    $region24: #{basic_block_forward.4} parent=5 // pred_fallthru
      _
    %p164 = scmp.le.s32.totalorder 1, %s11
    %p165 = scmp.lt.s32.totalorder %s11, 3
    %p166 = pnand %p164, %p165
    %p167 = pneg %p166
    // Predicated region
    $region29: #{basic_block_forward.4} parent=5 // pred_check
      _
    $region30: #{basic_block_forward.4} parent=5 // pred_check_branch
      %169 = sbr.rel (%p166) target = $region32
    $region31: #{basic_block_forward.4} parent=5 // pred_region
      %s170 = ssub.s32 %s11, 1
      %p171 = scmp.lt.s32.totalorder %s16, 1
      %s172 = scalar_select %p171, %s16, 1
      %s173 = smul.addr %s172, 8
      %s174 = smul.addr %s173, 8
      %s175 = scalar_lea.vmem %s0, %s174
      %p176 = pneg %p37
      %p177 = pneg %p34
      %p178 = pneg %p58
      %p179 = pneg %p55
      %p180 = pneg %p79
      %p181 = pneg %p76
      %p182 = pneg %p105
      %p183 = pneg %p102
      %p184 = scmp.lt.s32.totalorder %s16, 1
      %s185 = scalar_select %p184, %s16, 1
      %s186 = smul.addr %s185, 8
      %s187 = smul.addr %s186, 8
      %s188 = scalar_lea.vmem %s3, %s187
      %p189 = pneg %p131
      %p190 = pneg %p128
      %p191 = scmp.lt.s32.totalorder %s16, 1
      %s192 = scalar_select %p191, %s16, 1
      %s193 = smul.addr %s192, 2
      %s194 = scalar_lea.vmem %s4, %s193
      %p195 = scmp.lt.s32.totalorder %s16, 1
      %s196 = scalar_select %p195, %s16, 1
      %s197 = smul.addr %s196, 8
      %s198 = smul.addr %s197, 8
      %s199 = scalar_lea.vmem %s0, %s198
      %p200 = scmp.lt.s32.totalorder %s16, 1
      %s201 = scalar_select %p200, %s16, 1
      %s202 = smul.addr %s201, 8
      %s203 = smul.addr %s202, 8
      %s204 = scalar_lea.vmem %s3, %s203
      %p205 = scmp.lt.s32.totalorder %s16, 1
      %s206 = scalar_select %p205, %s16, 1
      %s207 = smul.addr %s206, 2
      %s208 = scalar_lea.vmem %s4, %s207
      %v210 = vld [vmem:[%s1] sm:$0x3]
      %v211 = vld [vmem:[%s199] sm:$0xff]
      %v212 = vld [vmem:[%s199 + $0x8] sm:$0xff]
      %v213 = vld [vmem:[%s199 + $0x10] sm:$0xff]
      %v214 = vld [vmem:[%s199 + $0x18] sm:$0xff]
      %v215 = vld [vmem:[%s199 + $0x20] sm:$0xff]
      %v216 = vld [vmem:[%s199 + $0x28] sm:$0xff]
      %v217 = vld [vmem:[%s199 + $0x30] sm:$0xff]
      %v218 = vld [vmem:[%s199 + $0x38] sm:$0xff]
      %v219 = vlaneseq
      %v220 = vshrl.u32 %v219, 7
      %v221 = vsub.s32 0, %v220
      %v222 = vrot.slane %v210, %v221
      %v223 = vmul.f32 %v211, %v222
      %v224 = vmul.f32 %v212, %v222
      %v225 = vmul.f32 %v213, %v222
      %v226 = vmul.f32 %v214, %v222
      %v227 = vmul.f32 %v215, %v222
      %v228 = vmul.f32 %v216, %v222
      %v229 = vmul.f32 %v217, %v222
      %v230 = vmul.f32 %v218, %v222
      %v231 = vlaneseq
      %v232 = vshrl.u32 %v231, 7
      %v233 = vsub.s32 1, %v232
      %v234 = vrot.slane %v210, %v233
      %v235 = vadd.f32 %v223, %v234
      %v236 = vadd.f32 %v224, %v234
      %v237 = vadd.f32 %v225, %v234
      %v238 = vadd.f32 %v226, %v234
      %v239 = vadd.f32 %v227, %v234
      %v240 = vadd.f32 %v228, %v234
      %v241 = vadd.f32 %v229, %v234
      %v242 = vadd.f32 %v230, %v234
      %v243 = vmax.f32 %v235, 0.0
      %v244 = vmax.f32 %v236, 0.0
      %v245 = vmax.f32 %v237, 0.0
      %v246 = vmax.f32 %v238, 0.0
      %v247 = vmax.f32 %v239, 0.0
      %v248 = vmax.f32 %v240, 0.0
      %v249 = vmax.f32 %v241, 0.0
      %v250 = vmax.f32 %v242, 0.0
      %251 = vst [vmem:[#allocation2] sm:$0xff] 0.0
      %252 = vst [vmem:[#allocation2 + $0x8] sm:$0x3] 0.0
      %253 = vst [vmem:[#allocation2 + $0x10] sm:$0xff] 0.0
      %254 = vst [vmem:[#allocation2 + $0x18] sm:$0x3] 0.0
      %255 = vst [vmem:[#allocation2 + $0x20] sm:$0xff] 0.0
      %256 = vst [vmem:[#allocation2 + $0x28] sm:$0x3] 0.0
      %257 = vst [vmem:[#allocation2 + $0x30] sm:$0xff] 0.0
      %258 = vst [vmem:[#allocation2 + $0x38] sm:$0x3] 0.0
      %259 = vst [vmem:[#allocation2 + $0x40] sm:$0xff] 0.0
      %260 = vst [vmem:[#allocation2 + $0x48] sm:$0x3] 0.0
      %261 = vst [vmem:[#allocation2 + $0x50] sm:$0xff] 0.0
      %262 = vst [vmem:[#allocation2 + $0x58] sm:$0x3] 0.0
      %263 = vst [vmem:[#allocation2 + $0x60] sm:$0xff] 0.0
      %264 = vst [vmem:[#allocation2 + $0x68] sm:$0x3] 0.0
      %265 = vst [vmem:[#allocation2 + $0x70] sm:$0xff] 0.0
      %266 = vst [vmem:[#allocation2 + $0x78] sm:$0x3] 0.0
      %267 = vst [vmem:[#allocation2 + $0x80] sm:$0xff] 0.0
      %268 = vst [vmem:[#allocation2 + $0x88] sm:$0x3] 0.0
      %269 = vst [vmem:[#allocation2 + $0x90] sm:$0xff] 0.0
      %270 = vst [vmem:[#allocation2 + $0x98] sm:$0x3] 0.0
      %s271 = scalar_lea.vmem [#allocation2], 16
      %272 = vst [vmem:[%s271 + $0x1] sm:$0xff] %v243
      %273 = vst [vmem:[%s271 + $0x11] sm:$0xff] %v244
      %274 = vst [vmem:[%s271 + $0x21] sm:$0xff] %v245
      %275 = vst [vmem:[%s271 + $0x31] sm:$0xff] %v246
      %276 = vst [vmem:[%s271 + $0x41] sm:$0xff] %v247
      %277 = vst [vmem:[%s271 + $0x51] sm:$0xff] %v248
      %278 = vst [vmem:[%s271 + $0x61] sm:$0xff] %v249
      %279 = vst [vmem:[%s271 + $0x71] sm:$0xff] %v250
      %v280 = vld [vmem:[#allocation2] sm:$0xff]
      %v281 = vld [vmem:[#allocation2 + $0x10] sm:$0xff]
      %v282 = vld [vmem:[#allocation2 + $0x20] sm:$0xff]
      %v283 = vld [vmem:[#allocation2 + $0x30] sm:$0xff]
      %v284 = vld [vmem:[#allocation2 + $0x40] sm:$0xff]
      %v285 = vld [vmem:[#allocation2 + $0x50] sm:$0xff]
      %v286 = vld [vmem:[#allocation2 + $0x60] sm:$0xff]
      %v287 = vld [vmem:[#allocation2 + $0x70] sm:$0xff]
      %v288 = vpack.c.bf16 %v281, %v280
      %v289 = vpack.c.bf16 %v283, %v282
      %v290 = vpack.c.bf16 %v285, %v284
      %v291 = vpack.c.bf16 %v287, %v286
      %v292 = vld [vmem:[%s2] sm:$0xf]
      %v293 = vld [vmem:[%s2 + $0x4] sm:$0xf]
      %v294 = vld [vmem:[%s2 + $0x8] sm:$0xf]
      %v295 = vld [vmem:[%s2 + $0xc] sm:$0xf]
      %v296 = vld [vmem:[%s2 + $0x10] sm:$0xf]
      %v297 = vld [vmem:[%s2 + $0x14] sm:$0xf]
      %v298 = vld [vmem:[%s2 + $0x18] sm:$0xf]
      %v299 = vld [vmem:[%s2 + $0x1c] sm:$0xf]
      %v300 = vld [vmem:[%s2 + $0x20] sm:$0xf]
      %v301 = vld [vmem:[%s2 + $0x24] sm:$0xf]
      %v302 = vld [vmem:[%s2 + $0x28] sm:$0xf]
      %v303 = vld [vmem:[%s2 + $0x2c] sm:$0xf]
      %v304 = vld [vmem:[%s2 + $0x30] sm:$0xf]
      %v305 = vld [vmem:[%s2 + $0x34] sm:$0xf]
      %v306 = vld [vmem:[%s2 + $0x38] sm:$0xf]
      %v307 = vld [vmem:[%s2 + $0x3c] sm:$0xf]
      %v308 = vld [vmem:[#allocation2 + $0x1] sm:$0xff]
      %v309 = vld [vmem:[#allocation2 + $0x11] sm:$0xff]
      %v310 = vld [vmem:[#allocation2 + $0x21] sm:$0xff]
      %v311 = vld [vmem:[#allocation2 + $0x31] sm:$0xff]
      %v312 = vld [vmem:[#allocation2 + $0x41] sm:$0xff]
      %v313 = vld [vmem:[#allocation2 + $0x51] sm:$0xff]
      %v314 = vld [vmem:[#allocation2 + $0x61] sm:$0xff]
      %v315 = vld [vmem:[#allocation2 + $0x71] sm:$0xff]
      %v316 = vpack.c.bf16 %v309, %v308
      %v317 = vpack.c.bf16 %v311, %v310
      %v318 = vpack.c.bf16 %v313, %v312
      %v319 = vpack.c.bf16 %v315, %v314
      %s320 = scalar_lea.vmem %s2, 64
      %v321 = vld [vmem:[%s320] sm:$0xf]
      %v322 = vld [vmem:[%s320 + $0x4] sm:$0xf]
      %v323 = vld [vmem:[%s320 + $0x8] sm:$0xf]
      %v324 = vld [vmem:[%s320 + $0xc] sm:$0xf]
      %v325 = vld [vmem:[%s320 + $0x10] sm:$0xf]
      %v326 = vld [vmem:[%s320 + $0x14] sm:$0xf]
      %v327 = vld [vmem:[%s320 + $0x18] sm:$0xf]
      %v328 = vld [vmem:[%s320 + $0x1c] sm:$0xf]
      %v329 = vld [vmem:[%s320 + $0x20] sm:$0xf]
      %v330 = vld [vmem:[%s320 + $0x24] sm:$0xf]
      %v331 = vld [vmem:[%s320 + $0x28] sm:$0xf]
      %v332 = vld [vmem:[%s320 + $0x2c] sm:$0xf]
      %v333 = vld [vmem:[%s320 + $0x30] sm:$0xf]
      %v334 = vld [vmem:[%s320 + $0x34] sm:$0xf]
      %v335 = vld [vmem:[%s320 + $0x38] sm:$0xf]
      %v336 = vld [vmem:[%s320 + $0x3c] sm:$0xf]
      %v353 = vunpack.c.l.b16 %v321
      %v354 = vunpack.c.l.b16 %v322
      %v355 = vunpack.c.l.b16 %v323
      %v356 = vunpack.c.l.b16 %v324
      %v357 = vunpack.c.l.b16 %v325
      %v358 = vunpack.c.l.b16 %v326
      %v359 = vunpack.c.l.b16 %v327
      %v360 = vunpack.c.l.b16 %v328
      %v361 = vunpack.c.l.b16 %v329
      %v362 = vunpack.c.l.b16 %v330
      %v363 = vunpack.c.l.b16 %v331
      %v364 = vunpack.c.l.b16 %v332
      %v365 = vunpack.c.l.b16 %v333
      %v366 = vunpack.c.l.b16 %v334
      %v367 = vunpack.c.l.b16 %v335
      %v368 = vunpack.c.l.b16 %v336
      %v369 = vpack.c.b16 %v354, %v353
      %v370 = vpack.c.b16 %v356, %v355
      %v371 = vpack.c.b16 %v358, %v357
      %v372 = vpack.c.b16 %v360, %v359
      %v373 = vpack.c.b16 %v362, %v361
      %v374 = vpack.c.b16 %v364, %v363
      %v375 = vpack.c.b16 %v366, %v365
      %v376 = vpack.c.b16 %v368, %v367
      %385 = vmatprep.subr.bf16.mxu0 0
      %386 = vmatpush1.bf16.msra.mxu0 %v369
      %387 = vmatprep.subr.bf16.mxu0 0
      %388 = vmatpush1.bf16.msra.mxu0 %v370
      %389 = vmatprep.subr.bf16.mxu0 0
      %390 = vmatpush1.bf16.msra.mxu0 %v371
      %391 = vmatprep.subr.bf16.mxu0 0
      %392 = vmatpush1.bf16.msra.mxu0 %v372
      %393 = vmatprep.subr.bf16.mxu0 0
      %394 = vmatpush1.bf16.msra.mxu0 %v373
      %395 = vmatprep.subr.bf16.mxu0 0
      %396 = vmatpush1.bf16.msra.mxu0 %v374
      %397 = vmatprep.subr.bf16.mxu0 0
      %398 = vmatpush1.bf16.msra.mxu0 %v375
      %399 = vmatprep.subr.bf16.mxu0 0
      %400 = vmatpush1.bf16.msra.mxu0 %v376
      %401 = vmatprep.subr.bf16.mxu0 0
      %402 = vmatpush1.bf16.msra.mxu0 0
      %403 = vmatprep.subr.bf16.mxu0 0
      %404 = vmatpush1.bf16.msra.mxu0 0
      %405 = vmatprep.subr.bf16.mxu0 0
      %406 = vmatpush1.bf16.msra.mxu0 0
      %407 = vmatprep.subr.bf16.mxu0 0
      %408 = vmatpush1.bf16.msra.mxu0 0
      %409 = vmatprep.subr.bf16.mxu0 0
      %410 = vmatpush1.bf16.msra.mxu0 0
      %411 = vmatprep.subr.bf16.mxu0 0
      %412 = vmatpush1.bf16.msra.mxu0 0
      %413 = vmatprep.subr.bf16.mxu0 0
      %414 = vmatpush1.bf16.msra.mxu0 0
      %415 = vmatprep.subr.bf16.mxu0 0
      %416 = vmatpush1.bf16.msra.mxu0 0
      %417 = vmatprep.mubr.bf16.mxu0 0
      %418 = vmatmul.mubr.bf16.gmra.mrb[0].mxu0 %v316
      %v419 = vpop.f32.mrb[0].mxu0
      %v420 = vadd.f32 0.0, %v419
      %v421 = vpop.f32.mrb[0].mxu0
      %v422 = vpop.f32.mrb[0].mxu0
      %v423 = vadd.f32 0.0, %v422
      %v424 = vpop.f32.mrb[0].mxu0
      %425 = vmatprep.mubr.bf16.mxu0 0
      %426 = vmatmul.mubr.bf16.gmra.mrb[0].mxu0 %v317
      %v427 = vpop.f32.mrb[0].mxu0
      %v428 = vadd.f32 0.0, %v427
      %v429 = vpop.f32.mrb[0].mxu0
      %v430 = vpop.f32.mrb[0].mxu0
      %v431 = vadd.f32 0.0, %v430
      %v432 = vpop.f32.mrb[0].mxu0
      %433 = vmatprep.mubr.bf16.mxu0 0
      %434 = vmatmul.mubr.bf16.gmra.mrb[0].mxu0 %v318
      %v435 = vpop.f32.mrb[0].mxu0
      %v436 = vadd.f32 0.0, %v435
      %v437 = vpop.f32.mrb[0].mxu0
      %v438 = vpop.f32.mrb[0].mxu0
      %v439 = vadd.f32 0.0, %v438
      %v440 = vpop.f32.mrb[0].mxu0
      %441 = vmatprep.mubr.bf16.mxu0 0
      %442 = vmatmul.mubr.bf16.gmra.mrb[0].mxu0 %v319
      %v443 = vpop.f32.mrb[0].mxu0
      %v444 = vadd.f32 0.0, %v443
      %v445 = vpop.f32.mrb[0].mxu0
      %v446 = vpop.f32.mrb[0].mxu0
      %v447 = vadd.f32 0.0, %v446
      %v448 = vpop.f32.mrb[0].mxu0
      %449 = vdwg.mxu0
      %v466 = vunpack.c.l.b16 %v292
      %v467 = vunpack.c.l.b16 %v293
      %v468 = vunpack.c.l.b16 %v294
      %v469 = vunpack.c.l.b16 %v295
      %v470 = vunpack.c.l.b16 %v296
      %v471 = vunpack.c.l.b16 %v297
      %v472 = vunpack.c.l.b16 %v298
      %v473 = vunpack.c.l.b16 %v299
      %v474 = vunpack.c.l.b16 %v300
      %v475 = vunpack.c.l.b16 %v301
      %v476 = vunpack.c.l.b16 %v302
      %v477 = vunpack.c.l.b16 %v303
      %v478 = vunpack.c.l.b16 %v304
      %v479 = vunpack.c.l.b16 %v305
      %v480 = vunpack.c.l.b16 %v306
      %v481 = vunpack.c.l.b16 %v307
      %v482 = vpack.c.b16 %v467, %v466
      %v483 = vpack.c.b16 %v469, %v468
      %v484 = vpack.c.b16 %v471, %v470
      %v485 = vpack.c.b16 %v473, %v472
      %v486 = vpack.c.b16 %v475, %v474
      %v487 = vpack.c.b16 %v477, %v476
      %v488 = vpack.c.b16 %v479, %v478
      %v489 = vpack.c.b16 %v481, %v480
      %498 = vmatprep.subr.bf16.mxu0 0
      %499 = vmatpush1.bf16.msra.mxu0 %v482
      %500 = vmatprep.subr.bf16.mxu0 0
      %501 = vmatpush1.bf16.msra.mxu0 %v483
      %502 = vmatprep.subr.bf16.mxu0 0
      %503 = vmatpush1.bf16.msra.mxu0 %v484
      %504 = vmatprep.subr.bf16.mxu0 0
      %505 = vmatpush1.bf16.msra.mxu0 %v485
      %506 = vmatprep.subr.bf16.mxu0 0
      %507 = vmatpush1.bf16.msra.mxu0 %v486
      %508 = vmatprep.subr.bf16.mxu0 0
      %509 = vmatpush1.bf16.msra.mxu0 %v487
      %510 = vmatprep.subr.bf16.mxu0 0
      %511 = vmatpush1.bf16.msra.mxu0 %v488
      %512 = vmatprep.subr.bf16.mxu0 0
      %513 = vmatpush1.bf16.msra.mxu0 %v489
      %514 = vmatprep.subr.bf16.mxu0 0
      %515 = vmatpush1.bf16.msra.mxu0 0
      %516 = vmatprep.subr.bf16.mxu0 0
      %517 = vmatpush1.bf16.msra.mxu0 0
      %518 = vmatprep.subr.bf16.mxu0 0
      %519 = vmatpush1.bf16.msra.mxu0 0
      %520 = vmatprep.subr.bf16.mxu0 0
      %521 = vmatpush1.bf16.msra.mxu0 0
      %522 = vmatprep.subr.bf16.mxu0 0
      %523 = vmatpush1.bf16.msra.mxu0 0
      %524 = vmatprep.subr.bf16.mxu0 0
      %525 = vmatpush1.bf16.msra.mxu0 0
      %526 = vmatprep.subr.bf16.mxu0 0
      %527 = vmatpush1.bf16.msra.mxu0 0
      %528 = vmatprep.subr.bf16.mxu0 0
      %529 = vmatpush1.bf16.msra.mxu0 0
      %530 = vmatprep.mubr.bf16.mxu0 0
      %531 = vmatmul.mubr.bf16.gmra.mrb[0].mxu0 %v288
      %v532 = vpop.f32.mrb[0].mxu0
      %v533 = vadd.f32 %v420, %v532
      %v534 = vpop.f32.mrb[0].mxu0
      %v535 = vpop.f32.mrb[0].mxu0
      %v536 = vadd.f32 %v423, %v535
      %v537 = vpop.f32.mrb[0].mxu0
      %538 = vmatprep.mubr.bf16.mxu0 0
      %539 = vmatmul.mubr.bf16.gmra.mrb[0].mxu0 %v289
      %v540 = vpop.f32.mrb[0].mxu0
      %v541 = vadd.f32 %v428, %v540
      %v542 = vpop.f32.mrb[0].mxu0
      %v543 = vpop.f32.mrb[0].mxu0
      %v544 = vadd.f32 %v431, %v543
      %v545 = vpop.f32.mrb[0].mxu0
      %546 = vmatprep.mubr.bf16.mxu0 0
      %547 = vmatmul.mubr.bf16.gmra.mrb[0].mxu0 %v290
      %v548 = vpop.f32.mrb[0].mxu0
      %v549 = vadd.f32 %v436, %v548
      %v550 = vpop.f32.mrb[0].mxu0
      %v551 = vpop.f32.mrb[0].mxu0
      %v552 = vadd.f32 %v439, %v551
      %v553 = vpop.f32.mrb[0].mxu0
      %554 = vmatprep.mubr.bf16.mxu0 0
      %555 = vmatmul.mubr.bf16.gmra.mrb[0].mxu0 %v291
      %v556 = vpop.f32.mrb[0].mxu0
      %v557 = vadd.f32 %v444, %v556
      %v558 = vpop.f32.mrb[0].mxu0
      %v559 = vpop.f32.mrb[0].mxu0
      %v560 = vadd.f32 %v447, %v559
      %v561 = vpop.f32.mrb[0].mxu0
      %562 = vdwg.mxu0
      %v563 = vld [vmem:[#allocation2 + $0x2] sm:$0xff]
      %v564 = vld [vmem:[#allocation2 + $0x12] sm:$0xff]
      %v565 = vld [vmem:[#allocation2 + $0x22] sm:$0xff]
      %v566 = vld [vmem:[#allocation2 + $0x32] sm:$0xff]
      %v567 = vld [vmem:[#allocation2 + $0x42] sm:$0xff]
      %v568 = vld [vmem:[#allocation2 + $0x52] sm:$0xff]
      %v569 = vld [vmem:[#allocation2 + $0x62] sm:$0xff]
      %v570 = vld [vmem:[#allocation2 + $0x72] sm:$0xff]
      %v571 = vpack.c.bf16 %v564, %v563
      %v572 = vpack.c.bf16 %v566, %v565
      %v573 = vpack.c.bf16 %v568, %v567
      %v574 = vpack.c.bf16 %v570, %v569
      %s575 = scalar_lea.vmem %s2, 128
      %v576 = vld [vmem:[%s575] sm:$0xf]
      %v577 = vld [vmem:[%s575 + $0x4] sm:$0xf]
      %v578 = vld [vmem:[%s575 + $0x8] sm:$0xf]
      %v579 = vld [vmem:[%s575 + $0xc] sm:$0xf]
      %v580 = vld [vmem:[%s575 + $0x10] sm:$0xf]
      %v581 = vld [vmem:[%s575 + $0x14] sm:$0xf]
      %v582 = vld [vmem:[%s575 + $0x18] sm:$0xf]
      %v583 = vld [vmem:[%s575 + $0x1c] sm:$0xf]
      %v584 = vld [vmem:[%s575 + $0x20] sm:$0xf]
      %v585 = vld [vmem:[%s575 + $0x24] sm:$0xf]
      %v586 = vld [vmem:[%s575 + $0x28] sm:$0xf]
      %v587 = vld [vmem:[%s575 + $0x2c] sm:$0xf]
      %v588 = vld [vmem:[%s575 + $0x30] sm:$0xf]
      %v589 = vld [vmem:[%s575 + $0x34] sm:$0xf]
      %v590 = vld [vmem:[%s575 + $0x38] sm:$0xf]
      %v591 = vld [vmem:[%s575 + $0x3c] sm:$0xf]
      %v608 = vunpack.c.l.b16 %v576
      %v609 = vunpack.c.l.b16 %v577
      %v610 = vunpack.c.l.b16 %v578
      %v611 = vunpack.c.l.b16 %v579
      %v612 = vunpack.c.l.b16 %v580
      %v613 = vunpack.c.l.b16 %v581
      %v614 = vunpack.c.l.b16 %v582
      %v615 = vunpack.c.l.b16 %v583
      %v616 = vunpack.c.l.b16 %v584
      %v617 = vunpack.c.l.b16 %v585
      %v618 = vunpack.c.l.b16 %v586
      %v619 = vunpack.c.l.b16 %v587
      %v620 = vunpack.c.l.b16 %v588
      %v621 = vunpack.c.l.b16 %v589
      %v622 = vunpack.c.l.b16 %v590
      %v623 = vunpack.c.l.b16 %v591
      %v624 = vpack.c.b16 %v609, %v608
      %v625 = vpack.c.b16 %v611, %v610
      %v626 = vpack.c.b16 %v613, %v612
      %v627 = vpack.c.b16 %v615, %v614
      %v628 = vpack.c.b16 %v617, %v616
      %v629 = vpack.c.b16 %v619, %v618
      %v630 = vpack.c.b16 %v621, %v620
      %v631 = vpack.c.b16 %v623, %v622
      %640 = vmatprep.subr.bf16.mxu0 0
      %641 = vmatpush1.bf16.msra.mxu0 %v624
      %642 = vmatprep.subr.bf16.mxu0 0
      %643 = vmatpush1.bf16.msra.mxu0 %v625
      %644 = vmatprep.subr.bf16.mxu0 0
      %645 = vmatpush1.bf16.msra.mxu0 %v626
      %646 = vmatprep.subr.bf16.mxu0 0
      %647 = vmatpush1.bf16.msra.mxu0 %v627
      %648 = vmatprep.subr.bf16.mxu0 0
      %649 = vmatpush1.bf16.msra.mxu0 %v628
      %650 = vmatprep.subr.bf16.mxu0 0
      %651 = vmatpush1.bf16.msra.mxu0 %v629
      %652 = vmatprep.subr.bf16.mxu0 0
      %653 = vmatpush1.bf16.msra.mxu0 %v630
      %654 = vmatprep.subr.bf16.mxu0 0
      %655 = vmatpush1.bf16.msra.mxu0 %v631
      %656 = vmatprep.subr.bf16.mxu0 0
      %657 = vmatpush1.bf16.msra.mxu0 0
      %658 = vmatprep.subr.bf16.mxu0 0
      %659 = vmatpush1.bf16.msra.mxu0 0
      %660 = vmatprep.subr.bf16.mxu0 0
      %661 = vmatpush1.bf16.msra.mxu0 0
      %662 = vmatprep.subr.bf16.mxu0 0
      %663 = vmatpush1.bf16.msra.mxu0 0
      %664 = vmatprep.subr.bf16.mxu0 0
      %665 = vmatpush1.bf16.msra.mxu0 0
      %666 = vmatprep.subr.bf16.mxu0 0
      %667 = vmatpush1.bf16.msra.mxu0 0
      %668 = vmatprep.subr.bf16.mxu0 0
      %669 = vmatpush1.bf16.msra.mxu0 0
      %670 = vmatprep.subr.bf16.mxu0 0
      %671 = vmatpush1.bf16.msra.mxu0 0
      %672 = vmatprep.mubr.bf16.mxu0 0
      %673 = vmatmul.mubr.bf16.gmra.mrb[0].mxu0 %v571
      %v674 = vpop.f32.mrb[0].mxu0
      %v675 = vadd.f32 0.0, %v674
      %v676 = vpop.f32.mrb[0].mxu0
      %v677 = vpop.f32.mrb[0].mxu0
      %v678 = vadd.f32 0.0, %v677
      %v679 = vpop.f32.mrb[0].mxu0
      %680 = vmatprep.mubr.bf16.mxu0 0
      %681 = vmatmul.mubr.bf16.gmra.mrb[0].mxu0 %v572
      %v682 = vpop.f32.mrb[0].mxu0
      %v683 = vadd.f32 0.0, %v682
      %v684 = vpop.f32.mrb[0].mxu0
      %v685 = vpop.f32.mrb[0].mxu0
      %v686 = vadd.f32 0.0, %v685
      %v687 = vpop.f32.mrb[0].mxu0
      %688 = vmatprep.mubr.bf16.mxu0 0
      %689 = vmatmul.mubr.bf16.gmra.mrb[0].mxu0 %v573
      %v690 = vpop.f32.mrb[0].mxu0
      %v691 = vadd.f32 0.0, %v690
      %v692 = vpop.f32.mrb[0].mxu0
      %v693 = vpop.f32.mrb[0].mxu0
      %v694 = vadd.f32 0.0, %v693
      %v695 = vpop.f32.mrb[0].mxu0
      %696 = vmatprep.mubr.bf16.mxu0 0
      %697 = vmatmul.mubr.bf16.gmra.mrb[0].mxu0 %v574
      %v698 = vpop.f32.mrb[0].mxu0
      %v699 = vadd.f32 0.0, %v698
      %v700 = vpop.f32.mrb[0].mxu0
      %v701 = vpop.f32.mrb[0].mxu0
      %v702 = vadd.f32 0.0, %v701
      %v703 = vpop.f32.mrb[0].mxu0
      %704 = vdwg.mxu0
      %v705 = vadd.f32 %v533, %v675
      %v706 = vadd.f32 %v536, %v678
      %v707 = vadd.f32 %v541, %v683
      %v708 = vadd.f32 %v544, %v686
      %v709 = vadd.f32 %v549, %v691
      %v710 = vadd.f32 %v552, %v694
      %v711 = vadd.f32 %v557, %v699
      %v712 = vadd.f32 %v560, %v702
      %v713 = vld [vmem:[%s271] sm:$0xff]
      %v714 = vld [vmem:[%s271 + $0x10] sm:$0xff]
      %v715 = vld [vmem:[%s271 + $0x20] sm:$0xff]
      %v716 = vld [vmem:[%s271 + $0x30] sm:$0xff]
      %v717 = vld [vmem:[%s271 + $0x40] sm:$0xff]
      %v718 = vld [vmem:[%s271 + $0x50] sm:$0xff]
      %v719 = vld [vmem:[%s271 + $0x60] sm:$0xff]
      %v720 = vld [vmem:[%s271 + $0x70] sm:$0xff]
      %v721 = vpack.c.bf16 %v714, %v713
      %v722 = vpack.c.bf16 %v716, %v715
      %v723 = vpack.c.bf16 %v718, %v717
      %v724 = vpack.c.bf16 %v720, %v719
      %s725 = scalar_lea.vmem %s2, 192
      %v726 = vld [vmem:[%s725] sm:$0xf]
      %v727 = vld [vmem:[%s725 + $0x4] sm:$0xf]
      %v728 = vld [vmem:[%s725 + $0x8] sm:$0xf]
      %v729 = vld [vmem:[%s725 + $0xc] sm:$0xf]
      %v730 = vld [vmem:[%s725 + $0x10] sm:$0xf]
      %v731 = vld [vmem:[%s725 + $0x14] sm:$0xf]
      %v732 = vld [vmem:[%s725 + $0x18] sm:$0xf]
      %v733 = vld [vmem:[%s725 + $0x1c] sm:$0xf]
      %v734 = vld [vmem:[%s725 + $0x20] sm:$0xf]
      %v735 = vld [vmem:[%s725 + $0x24] sm:$0xf]
      %v736 = vld [vmem:[%s725 + $0x28] sm:$0xf]
      %v737 = vld [vmem:[%s725 + $0x2c] sm:$0xf]
      %v738 = vld [vmem:[%s725 + $0x30] sm:$0xf]
      %v739 = vld [vmem:[%s725 + $0x34] sm:$0xf]
      %v740 = vld [vmem:[%s725 + $0x38] sm:$0xf]
      %v741 = vld [vmem:[%s725 + $0x3c] sm:$0xf]
      %v758 = vunpack.c.l.b16 %v726
      %v759 = vunpack.c.l.b16 %v727
      %v760 = vunpack.c.l.b16 %v728
      %v761 = vunpack.c.l.b16 %v729
      %v762 = vunpack.c.l.b16 %v730
      %v763 = vunpack.c.l.b16 %v731
      %v764 = vunpack.c.l.b16 %v732
      %v765 = vunpack.c.l.b16 %v733
      %v766 = vunpack.c.l.b16 %v734
      %v767 = vunpack.c.l.b16 %v735
      %v768 = vunpack.c.l.b16 %v736
      %v769 = vunpack.c.l.b16 %v737
      %v770 = vunpack.c.l.b16 %v738
      %v771 = vunpack.c.l.b16 %v739
      %v772 = vunpack.c.l.b16 %v740
      %v773 = vunpack.c.l.b16 %v741
      %v774 = vpack.c.b16 %v759, %v758
      %v775 = vpack.c.b16 %v761, %v760
      %v776 = vpack.c.b16 %v763, %v762
      %v777 = vpack.c.b16 %v765, %v764
      %v778 = vpack.c.b16 %v767, %v766
      %v779 = vpack.c.b16 %v769, %v768
      %v780 = vpack.c.b16 %v771, %v770
      %v781 = vpack.c.b16 %v773, %v772
      %790 = vmatprep.subr.bf16.mxu0 0
      %791 = vmatpush1.bf16.msra.mxu0 %v774
      %792 = vmatprep.subr.bf16.mxu0 0
      %793 = vmatpush1.bf16.msra.mxu0 %v775
      %794 = vmatprep.subr.bf16.mxu0 0
      %795 = vmatpush1.bf16.msra.mxu0 %v776
      %796 = vmatprep.subr.bf16.mxu0 0
      %797 = vmatpush1.bf16.msra.mxu0 %v777
      %798 = vmatprep.subr.bf16.mxu0 0
      %799 = vmatpush1.bf16.msra.mxu0 %v778
      %800 = vmatprep.subr.bf16.mxu0 0
      %801 = vmatpush1.bf16.msra.mxu0 %v779
      %802 = vmatprep.subr.bf16.mxu0 0
      %803 = vmatpush1.bf16.msra.mxu0 %v780
      %804 = vmatprep.subr.bf16.mxu0 0
      %805 = vmatpush1.bf16.msra.mxu0 %v781
      %806 = vmatprep.subr.bf16.mxu0 0
      %807 = vmatpush1.bf16.msra.mxu0 0
      %808 = vmatprep.subr.bf16.mxu0 0
      %809 = vmatpush1.bf16.msra.mxu0 0
      %810 = vmatprep.subr.bf16.mxu0 0
      %811 = vmatpush1.bf16.msra.mxu0 0
      %812 = vmatprep.subr.bf16.mxu0 0
      %813 = vmatpush1.bf16.msra.mxu0 0
      %814 = vmatprep.subr.bf16.mxu0 0
      %815 = vmatpush1.bf16.msra.mxu0 0
      %816 = vmatprep.subr.bf16.mxu0 0
      %817 = vmatpush1.bf16.msra.mxu0 0
      %818 = vmatprep.subr.bf16.mxu0 0
      %819 = vmatpush1.bf16.msra.mxu0 0
      %820 = vmatprep.subr.bf16.mxu0 0
      %821 = vmatpush1.bf16.msra.mxu0 0
      %822 = vmatprep.mubr.bf16.mxu0 0
      %823 = vmatmul.mubr.bf16.gmra.mrb[0].mxu0 %v721
      %v824 = vpop.f32.mrb[0].mxu0
      %v825 = vadd.f32 0.0, %v824
      %v826 = vpop.f32.mrb[0].mxu0
      %v827 = vpop.f32.mrb[0].mxu0
      %v828 = vadd.f32 0.0, %v827
      %v829 = vpop.f32.mrb[0].mxu0
      %830 = vmatprep.mubr.bf16.mxu0 0
      %831 = vmatmul.mubr.bf16.gmra.mrb[0].mxu0 %v722
      %v832 = vpop.f32.mrb[0].mxu0
      %v833 = vadd.f32 0.0, %v832
      %v834 = vpop.f32.mrb[0].mxu0
      %v835 = vpop.f32.mrb[0].mxu0
      %v836 = vadd.f32 0.0, %v835
      %v837 = vpop.f32.mrb[0].mxu0
      %838 = vmatprep.mubr.bf16.mxu0 0
      %839 = vmatmul.mubr.bf16.gmra.mrb[0].mxu0 %v723
      %v840 = vpop.f32.mrb[0].mxu0
      %v841 = vadd.f32 0.0, %v840
      %v842 = vpop.f32.mrb[0].mxu0
      %v843 = vpop.f32.mrb[0].mxu0
      %v844 = vadd.f32 0.0, %v843
      %v845 = vpop.f32.mrb[0].mxu0
      %846 = vmatprep.mubr.bf16.mxu0 0
      %847 = vmatmul.mubr.bf16.gmra.mrb[0].mxu0 %v724
      %v848 = vpop.f32.mrb[0].mxu0
      %v849 = vadd.f32 0.0, %v848
      %v850 = vpop.f32.mrb[0].mxu0
      %v851 = vpop.f32.mrb[0].mxu0
      %v852 = vadd.f32 0.0, %v851
      %v853 = vpop.f32.mrb[0].mxu0
      %854 = vdwg.mxu0
      %v855 = vadd.f32 %v705, %v825
      %v856 = vadd.f32 %v706, %v828
      %v857 = vadd.f32 %v707, %v833
      %v858 = vadd.f32 %v708, %v836
      %v859 = vadd.f32 %v709, %v841
      %v860 = vadd.f32 %v710, %v844
      %v861 = vadd.f32 %v711, %v849
      %v862 = vadd.f32 %v712, %v852
      %v863 = vld [vmem:[%s271 + $0x1] sm:$0xff]
      %v864 = vld [vmem:[%s271 + $0x11] sm:$0xff]
      %v865 = vld [vmem:[%s271 + $0x21] sm:$0xff]
      %v866 = vld [vmem:[%s271 + $0x31] sm:$0xff]
      %v867 = vld [vmem:[%s271 + $0x41] sm:$0xff]
      %v868 = vld [vmem:[%s271 + $0x51] sm:$0xff]
      %v869 = vld [vmem:[%s271 + $0x61] sm:$0xff]
      %v870 = vld [vmem:[%s271 + $0x71] sm:$0xff]
      %v871 = vpack.c.bf16 %v864, %v863
      %v872 = vpack.c.bf16 %v866, %v865
      %v873 = vpack.c.bf16 %v868, %v867
      %v874 = vpack.c.bf16 %v870, %v869
      %s875 = scalar_lea.vmem %s2, 256
      %v876 = vld [vmem:[%s875] sm:$0xf]
      %v877 = vld [vmem:[%s875 + $0x4] sm:$0xf]
      %v878 = vld [vmem:[%s875 + $0x8] sm:$0xf]
      %v879 = vld [vmem:[%s875 + $0xc] sm:$0xf]
      %v880 = vld [vmem:[%s875 + $0x10] sm:$0xf]
      %v881 = vld [vmem:[%s875 + $0x14] sm:$0xf]
      %v882 = vld [vmem:[%s875 + $0x18] sm:$0xf]
      %v883 = vld [vmem:[%s875 + $0x1c] sm:$0xf]
      %v884 = vld [vmem:[%s875 + $0x20] sm:$0xf]
      %v885 = vld [vmem:[%s875 + $0x24] sm:$0xf]
      %v886 = vld [vmem:[%s875 + $0x28] sm:$0xf]
      %v887 = vld [vmem:[%s875 + $0x2c] sm:$0xf]
      %v888 = vld [vmem:[%s875 + $0x30] sm:$0xf]
      %v889 = vld [vmem:[%s875 + $0x34] sm:$0xf]
      %v890 = vld [vmem:[%s875 + $0x38] sm:$0xf]
      %v891 = vld [vmem:[%s875 + $0x3c] sm:$0xf]
      %v908 = vunpack.c.l.b16 %v876
      %v909 = vunpack.c.l.b16 %v877
      %v910 = vunpack.c.l.b16 %v878
      %v911 = vunpack.c.l.b16 %v879
      %v912 = vunpack.c.l.b16 %v880
      %v913 = vunpack.c.l.b16 %v881
      %v914 = vunpack.c.l.b16 %v882
      %v915 = vunpack.c.l.b16 %v883
      %v916 = vunpack.c.l.b16 %v884
      %v917 = vunpack.c.l.b16 %v885
      %v918 = vunpack.c.l.b16 %v886
      %v919 = vunpack.c.l.b16 %v887
      %v920 = vunpack.c.l.b16 %v888
      %v921 = vunpack.c.l.b16 %v889
      %v922 = vunpack.c.l.b16 %v890
      %v923 = vunpack.c.l.b16 %v891
      %v924 = vpack.c.b16 %v909, %v908
      %v925 = vpack.c.b16 %v911, %v910
      %v926 = vpack.c.b16 %v913, %v912
      %v927 = vpack.c.b16 %v915, %v914
      %v928 = vpack.c.b16 %v917, %v916
      %v929 = vpack.c.b16 %v919, %v918
      %v930 = vpack.c.b16 %v921, %v920
      %v931 = vpack.c.b16 %v923, %v922
      %940 = vmatprep.subr.bf16.mxu0 0
      %941 = vmatpush1.bf16.msra.mxu0 %v924
      %942 = vmatprep.subr.bf16.mxu0 0
      %943 = vmatpush1.bf16.msra.mxu0 %v925
      %944 = vmatprep.subr.bf16.mxu0 0
      %945 = vmatpush1.bf16.msra.mxu0 %v926
      %946 = vmatprep.subr.bf16.mxu0 0
      %947 = vmatpush1.bf16.msra.mxu0 %v927
      %948 = vmatprep.subr.bf16.mxu0 0
      %949 = vmatpush1.bf16.msra.mxu0 %v928
      %950 = vmatprep.subr.bf16.mxu0 0
      %951 = vmatpush1.bf16.msra.mxu0 %v929
      %952 = vmatprep.subr.bf16.mxu0 0
      %953 = vmatpush1.bf16.msra.mxu0 %v930
      %954 = vmatprep.subr.bf16.mxu0 0
      %955 = vmatpush1.bf16.msra.mxu0 %v931
      %956 = vmatprep.subr.bf16.mxu0 0
      %957 = vmatpush1.bf16.msra.mxu0 0
      %958 = vmatprep.subr.bf16.mxu0 0
      %959 = vmatpush1.bf16.msra.mxu0 0
      %960 = vmatprep.subr.bf16.mxu0 0
      %961 = vmatpush1.bf16.msra.mxu0 0
      %962 = vmatprep.subr.bf16.mxu0 0
      %963 = vmatpush1.bf16.msra.mxu0 0
      %964 = vmatprep.subr.bf16.mxu0 0
      %965 = vmatpush1.bf16.msra.mxu0 0
      %966 = vmatprep.subr.bf16.mxu0 0
      %967 = vmatpush1.bf16.msra.mxu0 0
      %968 = vmatprep.subr.bf16.mxu0 0
      %969 = vmatpush1.bf16.msra.mxu0 0
      %970 = vmatprep.subr.bf16.mxu0 0
      %971 = vmatpush1.bf16.msra.mxu0 0
      %972 = vmatprep.mubr.bf16.mxu0 0
      %973 = vmatmul.mubr.bf16.gmra.mrb[0].mxu0 %v871
      %v974 = vpop.f32.mrb[0].mxu0
      %v975 = vadd.f32 0.0, %v974
      %v976 = vpop.f32.mrb[0].mxu0
      %v977 = vpop.f32.mrb[0].mxu0
      %v978 = vadd.f32 0.0, %v977
      %v979 = vpop.f32.mrb[0].mxu0
      %980 = vmatprep.mubr.bf16.mxu0 0
      %981 = vmatmul.mubr.bf16.gmra.mrb[0].mxu0 %v872
      %v982 = vpop.f32.mrb[0].mxu0
      %v983 = vadd.f32 0.0, %v982
      %v984 = vpop.f32.mrb[0].mxu0
      %v985 = vpop.f32.mrb[0].mxu0
      %v986 = vadd.f32 0.0, %v985
      %v987 = vpop.f32.mrb[0].mxu0
      %988 = vmatprep.mubr.bf16.mxu0 0
      %989 = vmatmul.mubr.bf16.gmra.mrb[0].mxu0 %v873
      %v990 = vpop.f32.mrb[0].mxu0
      %v991 = vadd.f32 0.0, %v990
      %v992 = vpop.f32.mrb[0].mxu0
      %v993 = vpop.f32.mrb[0].mxu0
      %v994 = vadd.f32 0.0, %v993
      %v995 = vpop.f32.mrb[0].mxu0
      %996 = vmatprep.mubr.bf16.mxu0 0
      %997 = vmatmul.mubr.bf16.gmra.mrb[0].mxu0 %v874
      %v998 = vpop.f32.mrb[0].mxu0
      %v999 = vadd.f32 0.0, %v998
      %v1000 = vpop.f32.mrb[0].mxu0
      %v1001 = vpop.f32.mrb[0].mxu0
      %v1002 = vadd.f32 0.0, %v1001
      %v1003 = vpop.f32.mrb[0].mxu0
      %1004 = vdwg.mxu0
      %v1005 = vadd.f32 %v855, %v975
      %v1006 = vadd.f32 %v856, %v978
      %v1007 = vadd.f32 %v857, %v983
      %v1008 = vadd.f32 %v858, %v986
      %v1009 = vadd.f32 %v859, %v991
      %v1010 = vadd.f32 %v860, %v994
      %v1011 = vadd.f32 %v861, %v999
      %v1012 = vadd.f32 %v862, %v1002
      %v1013 = vld [vmem:[%s271 + $0x2] sm:$0xff]
      %v1014 = vld [vmem:[%s271 + $0x12] sm:$0xff]
      %v1015 = vld [vmem:[%s271 + $0x22] sm:$0xff]
      %v1016 = vld [vmem:[%s271 + $0x32] sm:$0xff]
      %v1017 = vld [vmem:[%s271 + $0x42] sm:$0xff]
      %v1018 = vld [vmem:[%s271 + $0x52] sm:$0xff]
      %v1019 = vld [vmem:[%s271 + $0x62] sm:$0xff]
      %v1020 = vld [vmem:[%s271 + $0x72] sm:$0xff]
      %v1021 = vpack.c.bf16 %v1014, %v1013
      %v1022 = vpack.c.bf16 %v1016, %v1015
      %v1023 = vpack.c.bf16 %v1018, %v1017
      %v1024 = vpack.c.bf16 %v1020, %v1019
      %s1025 = scalar_lea.vmem %s2, 320
      %v1026 = vld [vmem:[%s1025] sm:$0xf]
      %v1027 = vld [vmem:[%s1025 + $0x4] sm:$0xf]
      %v1028 = vld [vmem:[%s1025 + $0x8] sm:$0xf]
      %v1029 = vld [vmem:[%s1025 + $0xc] sm:$0xf]
      %v1030 = vld [vmem:[%s1025 + $0x10] sm:$0xf]
      %v1031 = vld [vmem:[%s1025 + $0x14] sm:$0xf]
      %v1032 = vld [vmem:[%s1025 + $0x18] sm:$0xf]
      %v1033 = vld [vmem:[%s1025 + $0x1c] sm:$0xf]
      %v1034 = vld [vmem:[%s1025 + $0x20] sm:$0xf]
      %v1035 = vld [vmem:[%s1025 + $0x24] sm:$0xf]
      %v1036 = vld [vmem:[%s1025 + $0x28] sm:$0xf]
      %v1037 = vld [vmem:[%s1025 + $0x2c] sm:$0xf]
      %v1038 = vld [vmem:[%s1025 + $0x30] sm:$0xf]
      %v1039 = vld [vmem:[%s1025 + $0x34] sm:$0xf]
      %v1040 = vld [vmem:[%s1025 + $0x38] sm:$0xf]
      %v1041 = vld [vmem:[%s1025 + $0x3c] sm:$0xf]
      %v1058 = vunpack.c.l.b16 %v1026
      %v1059 = vunpack.c.l.b16 %v1027
      %v1060 = vunpack.c.l.b16 %v1028
      %v1061 = vunpack.c.l.b16 %v1029
      %v1062 = vunpack.c.l.b16 %v1030
      %v1063 = vunpack.c.l.b16 %v1031
      %v1064 = vunpack.c.l.b16 %v1032
      %v1065 = vunpack.c.l.b16 %v1033
      %v1066 = vunpack.c.l.b16 %v1034
      %v1067 = vunpack.c.l.b16 %v1035
      %v1068 = vunpack.c.l.b16 %v1036
      %v1069 = vunpack.c.l.b16 %v1037
      %v1070 = vunpack.c.l.b16 %v1038
      %v1071 = vunpack.c.l.b16 %v1039
      %v1072 = vunpack.c.l.b16 %v1040
      %v1073 = vunpack.c.l.b16 %v1041
      %v1074 = vpack.c.b16 %v1059, %v1058
      %v1075 = vpack.c.b16 %v1061, %v1060
      %v1076 = vpack.c.b16 %v1063, %v1062
      %v1077 = vpack.c.b16 %v1065, %v1064
      %v1078 = vpack.c.b16 %v1067, %v1066
      %v1079 = vpack.c.b16 %v1069, %v1068
      %v1080 = vpack.c.b16 %v1071, %v1070
      %v1081 = vpack.c.b16 %v1073, %v1072
      %1090 = vmatprep.subr.bf16.mxu0 0
      %1091 = vmatpush1.bf16.msra.mxu0 %v1074
      %1092 = vmatprep.subr.bf16.mxu0 0
      %1093 = vmatpush1.bf16.msra.mxu0 %v1075
      %1094 = vmatprep.subr.bf16.mxu0 0
      %1095 = vmatpush1.bf16.msra.mxu0 %v1076
      %1096 = vmatprep.subr.bf16.mxu0 0
      %1097 = vmatpush1.bf16.msra.mxu0 %v1077
      %1098 = vmatprep.subr.bf16.mxu0 0
      %1099 = vmatpush1.bf16.msra.mxu0 %v1078
      %1100 = vmatprep.subr.bf16.mxu0 0
      %1101 = vmatpush1.bf16.msra.mxu0 %v1079
      %1102 = vmatprep.subr.bf16.mxu0 0
      %1103 = vmatpush1.bf16.msra.mxu0 %v1080
      %1104 = vmatprep.subr.bf16.mxu0 0
      %1105 = vmatpush1.bf16.msra.mxu0 %v1081
      %1106 = vmatprep.subr.bf16.mxu0 0
      %1107 = vmatpush1.bf16.msra.mxu0 0
      %1108 = vmatprep.subr.bf16.mxu0 0
      %1109 = vmatpush1.bf16.msra.mxu0 0
      %1110 = vmatprep.subr.bf16.mxu0 0
      %1111 = vmatpush1.bf16.msra.mxu0 0
      %1112 = vmatprep.subr.bf16.mxu0 0
      %1113 = vmatpush1.bf16.msra.mxu0 0
      %1114 = vmatprep.subr.bf16.mxu0 0
      %1115 = vmatpush1.bf16.msra.mxu0 0
      %1116 = vmatprep.subr.bf16.mxu0 0
      %1117 = vmatpush1.bf16.msra.mxu0 0
      %1118 = vmatprep.subr.bf16.mxu0 0
      %1119 = vmatpush1.bf16.msra.mxu0 0
      %1120 = vmatprep.subr.bf16.mxu0 0
      %1121 = vmatpush1.bf16.msra.mxu0 0
      %1122 = vmatprep.mubr.bf16.mxu0 0
      %1123 = vmatmul.mubr.bf16.gmra.mrb[0].mxu0 %v1021
      %v1124 = vpop.f32.mrb[0].mxu0
      %v1125 = vadd.f32 0.0, %v1124
      %v1126 = vpop.f32.mrb[0].mxu0
      %v1127 = vpop.f32.mrb[0].mxu0
      %v1128 = vadd.f32 0.0, %v1127
      %v1129 = vpop.f32.mrb[0].mxu0
      %1130 = vmatprep.mubr.bf16.mxu0 0
      %1131 = vmatmul.mubr.bf16.gmra.mrb[0].mxu0 %v1022
      %v1132 = vpop.f32.mrb[0].mxu0
      %v1133 = vadd.f32 0.0, %v1132
      %v1134 = vpop.f32.mrb[0].mxu0
      %v1135 = vpop.f32.mrb[0].mxu0
      %v1136 = vadd.f32 0.0, %v1135
      %v1137 = vpop.f32.mrb[0].mxu0
      %1138 = vmatprep.mubr.bf16.mxu0 0
      %1139 = vmatmul.mubr.bf16.gmra.mrb[0].mxu0 %v1023
      %v1140 = vpop.f32.mrb[0].mxu0
      %v1141 = vadd.f32 0.0, %v1140
      %v1142 = vpop.f32.mrb[0].mxu0
      %v1143 = vpop.f32.mrb[0].mxu0
      %v1144 = vadd.f32 0.0, %v1143
      %v1145 = vpop.f32.mrb[0].mxu0
      %1146 = vmatprep.mubr.bf16.mxu0 0
      %1147 = vmatmul.mubr.bf16.gmra.mrb[0].mxu0 %v1024
      %v1148 = vpop.f32.mrb[0].mxu0
      %v1149 = vadd.f32 0.0, %v1148
      %v1150 = vpop.f32.mrb[0].mxu0
      %v1151 = vpop.f32.mrb[0].mxu0
      %v1152 = vadd.f32 0.0, %v1151
      %v1153 = vpop.f32.mrb[0].mxu0
      %1154 = vdwg.mxu0
      %v1155 = vadd.f32 %v1005, %v1125
      %v1156 = vadd.f32 %v1006, %v1128
      %v1157 = vadd.f32 %v1007, %v1133
      %v1158 = vadd.f32 %v1008, %v1136
      %v1159 = vadd.f32 %v1009, %v1141
      %v1160 = vadd.f32 %v1010, %v1144
      %v1161 = vadd.f32 %v1011, %v1149
      %v1162 = vadd.f32 %v1012, %v1152
      %s1163 = scalar_lea.vmem [#allocation2], 32
      %v1164 = vld [vmem:[%s1163] sm:$0xff]
      %v1165 = vld [vmem:[%s1163 + $0x10] sm:$0xff]
      %v1166 = vld [vmem:[%s1163 + $0x20] sm:$0xff]
      %v1167 = vld [vmem:[%s1163 + $0x30] sm:$0xff]
      %v1168 = vld [vmem:[%s1163 + $0x40] sm:$0xff]
      %v1169 = vld [vmem:[%s1163 + $0x50] sm:$0xff]
      %v1170 = vld [vmem:[%s1163 + $0x60] sm:$0xff]
      %v1171 = vld [vmem:[%s1163 + $0x70] sm:$0xff]
      %v1172 = vpack.c.bf16 %v1165, %v1164
      %v1173 = vpack.c.bf16 %v1167, %v1166
      %v1174 = vpack.c.bf16 %v1169, %v1168
      %v1175 = vpack.c.bf16 %v1171, %v1170
      %s1176 = scalar_lea.vmem %s2, 384
      %v1177 = vld [vmem:[%s1176] sm:$0xf]
      %v1178 = vld [vmem:[%s1176 + $0x4] sm:$0xf]
      %v1179 = vld [vmem:[%s1176 + $0x8] sm:$0xf]
      %v1180 = vld [vmem:[%s1176 + $0xc] sm:$0xf]
      %v1181 = vld [vmem:[%s1176 + $0x10] sm:$0xf]
      %v1182 = vld [vmem:[%s1176 + $0x14] sm:$0xf]
      %v1183 = vld [vmem:[%s1176 + $0x18] sm:$0xf]
      %v1184 = vld [vmem:[%s1176 + $0x1c] sm:$0xf]
      %v1185 = vld [vmem:[%s1176 + $0x20] sm:$0xf]
      %v1186 = vld [vmem:[%s1176 + $0x24] sm:$0xf]
      %v1187 = vld [vmem:[%s1176 + $0x28] sm:$0xf]
      %v1188 = vld [vmem:[%s1176 + $0x2c] sm:$0xf]
      %v1189 = vld [vmem:[%s1176 + $0x30] sm:$0xf]
      %v1190 = vld [vmem:[%s1176 + $0x34] sm:$0xf]
      %v1191 = vld [vmem:[%s1176 + $0x38] sm:$0xf]
      %v1192 = vld [vmem:[%s1176 + $0x3c] sm:$0xf]
      %v1209 = vunpack.c.l.b16 %v1177
      %v1210 = vunpack.c.l.b16 %v1178
      %v1211 = vunpack.c.l.b16 %v1179
      %v1212 = vunpack.c.l.b16 %v1180
      %v1213 = vunpack.c.l.b16 %v1181
      %v1214 = vunpack.c.l.b16 %v1182
      %v1215 = vunpack.c.l.b16 %v1183
      %v1216 = vunpack.c.l.b16 %v1184
      %v1217 = vunpack.c.l.b16 %v1185
      %v1218 = vunpack.c.l.b16 %v1186
      %v1219 = vunpack.c.l.b16 %v1187
      %v1220 = vunpack.c.l.b16 %v1188
      %v1221 = vunpack.c.l.b16 %v1189
      %v1222 = vunpack.c.l.b16 %v1190
      %v1223 = vunpack.c.l.b16 %v1191
      %v1224 = vunpack.c.l.b16 %v1192
      %v1225 = vpack.c.b16 %v1210, %v1209
      %v1226 = vpack.c.b16 %v1212, %v1211
      %v1227 = vpack.c.b16 %v1214, %v1213
      %v1228 = vpack.c.b16 %v1216, %v1215
      %v1229 = vpack.c.b16 %v1218, %v1217
      %v1230 = vpack.c.b16 %v1220, %v1219
      %v1231 = vpack.c.b16 %v1222, %v1221
      %v1232 = vpack.c.b16 %v1224, %v1223
      %1241 = vmatprep.subr.bf16.mxu0 0
      %1242 = vmatpush1.bf16.msra.mxu0 %v1225
      %1243 = vmatprep.subr.bf16.mxu0 0
      %1244 = vmatpush1.bf16.msra.mxu0 %v1226
      %1245 = vmatprep.subr.bf16.mxu0 0
      %1246 = vmatpush1.bf16.msra.mxu0 %v1227
      %1247 = vmatprep.subr.bf16.mxu0 0
      %1248 = vmatpush1.bf16.msra.mxu0 %v1228
      %1249 = vmatprep.subr.bf16.mxu0 0
      %1250 = vmatpush1.bf16.msra.mxu0 %v1229
      %1251 = vmatprep.subr.bf16.mxu0 0
      %1252 = vmatpush1.bf16.msra.mxu0 %v1230
      %1253 = vmatprep.subr.bf16.mxu0 0
      %1254 = vmatpush1.bf16.msra.mxu0 %v1231
      %1255 = vmatprep.subr.bf16.mxu0 0
      %1256 = vmatpush1.bf16.msra.mxu0 %v1232
      %1257 = vmatprep.subr.bf16.mxu0 0
      %1258 = vmatpush1.bf16.msra.mxu0 0
      %1259 = vmatprep.subr.bf16.mxu0 0
      %1260 = vmatpush1.bf16.msra.mxu0 0
      %1261 = vmatprep.subr.bf16.mxu0 0
      %1262 = vmatpush1.bf16.msra.mxu0 0
      %1263 = vmatprep.subr.bf16.mxu0 0
      %1264 = vmatpush1.bf16.msra.mxu0 0
      %1265 = vmatprep.subr.bf16.mxu0 0
      %1266 = vmatpush1.bf16.msra.mxu0 0
      %1267 = vmatprep.subr.bf16.mxu0 0
      %1268 = vmatpush1.bf16.msra.mxu0 0
      %1269 = vmatprep.subr.bf16.mxu0 0
      %1270 = vmatpush1.bf16.msra.mxu0 0
      %1271 = vmatprep.subr.bf16.mxu0 0
      %1272 = vmatpush1.bf16.msra.mxu0 0
      %1273 = vmatprep.mubr.bf16.mxu0 0
      %1274 = vmatmul.mubr.bf16.gmra.mrb[0].mxu0 %v1172
      %v1275 = vpop.f32.mrb[0].mxu0
      %v1276 = vadd.f32 0.0, %v1275
      %v1277 = vpop.f32.mrb[0].mxu0
      %v1278 = vpop.f32.mrb[0].mxu0
      %v1279 = vadd.f32 0.0, %v1278
      %v1280 = vpop.f32.mrb[0].mxu0
      %1281 = vmatprep.mubr.bf16.mxu0 0
      %1282 = vmatmul.mubr.bf16.gmra.mrb[0].mxu0 %v1173
      %v1283 = vpop.f32.mrb[0].mxu0
      %v1284 = vadd.f32 0.0, %v1283
      %v1285 = vpop.f32.mrb[0].mxu0
      %v1286 = vpop.f32.mrb[0].mxu0
      %v1287 = vadd.f32 0.0, %v1286
      %v1288 = vpop.f32.mrb[0].mxu0
      %1289 = vmatprep.mubr.bf16.mxu0 0
      %1290 = vmatmul.mubr.bf16.gmra.mrb[0].mxu0 %v1174
      %v1291 = vpop.f32.mrb[0].mxu0
      %v1292 = vadd.f32 0.0, %v1291
      %v1293 = vpop.f32.mrb[0].mxu0
      %v1294 = vpop.f32.mrb[0].mxu0
      %v1295 = vadd.f32 0.0, %v1294
      %v1296 = vpop.f32.mrb[0].mxu0
      %1297 = vmatprep.mubr.bf16.mxu0 0
      %1298 = vmatmul.mubr.bf16.gmra.mrb[0].mxu0 %v1175
      %v1299 = vpop.f32.mrb[0].mxu0
      %v1300 = vadd.f32 0.0, %v1299
      %v1301 = vpop.f32.mrb[0].mxu0
      %v1302 = vpop.f32.mrb[0].mxu0
      %v1303 = vadd.f32 0.0, %v1302
      %v1304 = vpop.f32.mrb[0].mxu0
      %1305 = vdwg.mxu0
      %v1306 = vadd.f32 %v1155, %v1276
      %v1307 = vadd.f32 %v1156, %v1279
      %v1308 = vadd.f32 %v1157, %v1284
      %v1309 = vadd.f32 %v1158, %v1287
      %v1310 = vadd.f32 %v1159, %v1292
      %v1311 = vadd.f32 %v1160, %v1295
      %v1312 = vadd.f32 %v1161, %v1300
      %v1313 = vadd.f32 %v1162, %v1303
      %v1314 = vld [vmem:[%s1163 + $0x1] sm:$0xff]
      %v1315 = vld [vmem:[%s1163 + $0x11] sm:$0xff]
      %v1316 = vld [vmem:[%s1163 + $0x21] sm:$0xff]
      %v1317 = vld [vmem:[%s1163 + $0x31] sm:$0xff]
      %v1318 = vld [vmem:[%s1163 + $0x41] sm:$0xff]
      %v1319 = vld [vmem:[%s1163 + $0x51] sm:$0xff]
      %v1320 = vld [vmem:[%s1163 + $0x61] sm:$0xff]
      %v1321 = vld [vmem:[%s1163 + $0x71] sm:$0xff]
      %v1322 = vpack.c.bf16 %v1315, %v1314
      %v1323 = vpack.c.bf16 %v1317, %v1316
      %v1324 = vpack.c.bf16 %v1319, %v1318
      %v1325 = vpack.c.bf16 %v1321, %v1320
      %s1326 = scalar_lea.vmem %s2, 448
      %v1327 = vld [vmem:[%s1326] sm:$0xf]
      %v1328 = vld [vmem:[%s1326 + $0x4] sm:$0xf]
      %v1329 = vld [vmem:[%s1326 + $0x8] sm:$0xf]
      %v1330 = vld [vmem:[%s1326 + $0xc] sm:$0xf]
      %v1331 = vld [vmem:[%s1326 + $0x10] sm:$0xf]
      %v1332 = vld [vmem:[%s1326 + $0x14] sm:$0xf]
      %v1333 = vld [vmem:[%s1326 + $0x18] sm:$0xf]
      %v1334 = vld [vmem:[%s1326 + $0x1c] sm:$0xf]
      %v1335 = vld [vmem:[%s1326 + $0x20] sm:$0xf]
      %v1336 = vld [vmem:[%s1326 + $0x24] sm:$0xf]
      %v1337 = vld [vmem:[%s1326 + $0x28] sm:$0xf]
      %v1338 = vld [vmem:[%s1326 + $0x2c] sm:$0xf]
      %v1339 = vld [vmem:[%s1326 + $0x30] sm:$0xf]
      %v1340 = vld [vmem:[%s1326 + $0x34] sm:$0xf]
      %v1341 = vld [vmem:[%s1326 + $0x38] sm:$0xf]
      %v1342 = vld [vmem:[%s1326 + $0x3c] sm:$0xf]
      %v1359 = vunpack.c.l.b16 %v1327
      %v1360 = vunpack.c.l.b16 %v1328
      %v1361 = vunpack.c.l.b16 %v1329
      %v1362 = vunpack.c.l.b16 %v1330
      %v1363 = vunpack.c.l.b16 %v1331
      %v1364 = vunpack.c.l.b16 %v1332
      %v1365 = vunpack.c.l.b16 %v1333
      %v1366 = vunpack.c.l.b16 %v1334
      %v1367 = vunpack.c.l.b16 %v1335
      %v1368 = vunpack.c.l.b16 %v1336
      %v1369 = vunpack.c.l.b16 %v1337
      %v1370 = vunpack.c.l.b16 %v1338
      %v1371 = vunpack.c.l.b16 %v1339
      %v1372 = vunpack.c.l.b16 %v1340
      %v1373 = vunpack.c.l.b16 %v1341
      %v1374 = vunpack.c.l.b16 %v1342
      %v1375 = vpack.c.b16 %v1360, %v1359
      %v1376 = vpack.c.b16 %v1362, %v1361
      %v1377 = vpack.c.b16 %v1364, %v1363
      %v1378 = vpack.c.b16 %v1366, %v1365
      %v1379 = vpack.c.b16 %v1368, %v1367
      %v1380 = vpack.c.b16 %v1370, %v1369
      %v1381 = vpack.c.b16 %v1372, %v1371
      %v1382 = vpack.c.b16 %v1374, %v1373
      %1391 = vmatprep.subr.bf16.mxu0 0
      %1392 = vmatpush1.bf16.msra.mxu0 %v1375
      %1393 = vmatprep.subr.bf16.mxu0 0
      %1394 = vmatpush1.bf16.msra.mxu0 %v1376
      %1395 = vmatprep.subr.bf16.mxu0 0
      %1396 = vmatpush1.bf16.msra.mxu0 %v1377
      %1397 = vmatprep.subr.bf16.mxu0 0
      %1398 = vmatpush1.bf16.msra.mxu0 %v1378
      %1399 = vmatprep.subr.bf16.mxu0 0
      %1400 = vmatpush1.bf16.msra.mxu0 %v1379
      %1401 = vmatprep.subr.bf16.mxu0 0
      %1402 = vmatpush1.bf16.msra.mxu0 %v1380
      %1403 = vmatprep.subr.bf16.mxu0 0
      %1404 = vmatpush1.bf16.msra.mxu0 %v1381
      %1405 = vmatprep.subr.bf16.mxu0 0
      %1406 = vmatpush1.bf16.msra.mxu0 %v1382
      %1407 = vmatprep.subr.bf16.mxu0 0
      %1408 = vmatpush1.bf16.msra.mxu0 0
      %1409 = vmatprep.subr.bf16.mxu0 0
      %1410 = vmatpush1.bf16.msra.mxu0 0
      %1411 = vmatprep.subr.bf16.mxu0 0
      %1412 = vmatpush1.bf16.msra.mxu0 0
      %1413 = vmatprep.subr.bf16.mxu0 0
      %1414 = vmatpush1.bf16.msra.mxu0 0
      %1415 = vmatprep.subr.bf16.mxu0 0
      %1416 = vmatpush1.bf16.msra.mxu0 0
      %1417 = vmatprep.subr.bf16.mxu0 0
      %1418 = vmatpush1.bf16.msra.mxu0 0
      %1419 = vmatprep.subr.bf16.mxu0 0
      %1420 = vmatpush1.bf16.msra.mxu0 0
      %1421 = vmatprep.subr.bf16.mxu0 0
      %1422 = vmatpush1.bf16.msra.mxu0 0
      %1423 = vmatprep.mubr.bf16.mxu0 0
      %1424 = vmatmul.mubr.bf16.gmra.mrb[0].mxu0 %v1322
      %v1425 = vpop.f32.mrb[0].mxu0
      %v1426 = vadd.f32 0.0, %v1425
      %v1427 = vpop.f32.mrb[0].mxu0
      %v1428 = vpop.f32.mrb[0].mxu0
      %v1429 = vadd.f32 0.0, %v1428
      %v1430 = vpop.f32.mrb[0].mxu0
      %1431 = vmatprep.mubr.bf16.mxu0 0
      %1432 = vmatmul.mubr.bf16.gmra.mrb[0].mxu0 %v1323
      %v1433 = vpop.f32.mrb[0].mxu0
      %v1434 = vadd.f32 0.0, %v1433
      %v1435 = vpop.f32.mrb[0].mxu0
      %v1436 = vpop.f32.mrb[0].mxu0
      %v1437 = vadd.f32 0.0, %v1436
      %v1438 = vpop.f32.mrb[0].mxu0
      %1439 = vmatprep.mubr.bf16.mxu0 0
      %1440 = vmatmul.mubr.bf16.gmra.mrb[0].mxu0 %v1324
      %v1441 = vpop.f32.mrb[0].mxu0
      %v1442 = vadd.f32 0.0, %v1441
      %v1443 = vpop.f32.mrb[0].mxu0
      %v1444 = vpop.f32.mrb[0].mxu0
      %v1445 = vadd.f32 0.0, %v1444
      %v1446 = vpop.f32.mrb[0].mxu0
      %1447 = vmatprep.mubr.bf16.mxu0 0
      %1448 = vmatmul.mubr.bf16.gmra.mrb[0].mxu0 %v1325
      %v1449 = vpop.f32.mrb[0].mxu0
      %v1450 = vadd.f32 0.0, %v1449
      %v1451 = vpop.f32.mrb[0].mxu0
      %v1452 = vpop.f32.mrb[0].mxu0
      %v1453 = vadd.f32 0.0, %v1452
      %v1454 = vpop.f32.mrb[0].mxu0
      %1455 = vdwg.mxu0
      %v1456 = vadd.f32 %v1306, %v1426
      %v1457 = vadd.f32 %v1307, %v1429
      %v1458 = vadd.f32 %v1308, %v1434
      %v1459 = vadd.f32 %v1309, %v1437
      %v1460 = vadd.f32 %v1310, %v1442
      %v1461 = vadd.f32 %v1311, %v1445
      %v1462 = vadd.f32 %v1312, %v1450
      %v1463 = vadd.f32 %v1313, %v1453
      %v1464 = vld [vmem:[%s1163 + $0x2] sm:$0xff]
      %v1465 = vld [vmem:[%s1163 + $0x12] sm:$0xff]
      %v1466 = vld [vmem:[%s1163 + $0x22] sm:$0xff]
      %v1467 = vld [vmem:[%s1163 + $0x32] sm:$0xff]
      %v1468 = vld [vmem:[%s1163 + $0x42] sm:$0xff]
      %v1469 = vld [vmem:[%s1163 + $0x52] sm:$0xff]
      %v1470 = vld [vmem:[%s1163 + $0x62] sm:$0xff]
      %v1471 = vld [vmem:[%s1163 + $0x72] sm:$0xff]
      %v1472 = vpack.c.bf16 %v1465, %v1464
      %v1473 = vpack.c.bf16 %v1467, %v1466
      %v1474 = vpack.c.bf16 %v1469, %v1468
      %v1475 = vpack.c.bf16 %v1471, %v1470
      %s1476 = scalar_lea.vmem %s2, 512
      %v1477 = vld [vmem:[%s1476] sm:$0xf]
      %v1478 = vld [vmem:[%s1476 + $0x4] sm:$0xf]
      %v1479 = vld [vmem:[%s1476 + $0x8] sm:$0xf]
      %v1480 = vld [vmem:[%s1476 + $0xc] sm:$0xf]
      %v1481 = vld [vmem:[%s1476 + $0x10] sm:$0xf]
      %v1482 = vld [vmem:[%s1476 + $0x14] sm:$0xf]
      %v1483 = vld [vmem:[%s1476 + $0x18] sm:$0xf]
      %v1484 = vld [vmem:[%s1476 + $0x1c] sm:$0xf]
      %v1485 = vld [vmem:[%s1476 + $0x20] sm:$0xf]
      %v1486 = vld [vmem:[%s1476 + $0x24] sm:$0xf]
      %v1487 = vld [vmem:[%s1476 + $0x28] sm:$0xf]
      %v1488 = vld [vmem:[%s1476 + $0x2c] sm:$0xf]
      %v1489 = vld [vmem:[%s1476 + $0x30] sm:$0xf]
      %v1490 = vld [vmem:[%s1476 + $0x34] sm:$0xf]
      %v1491 = vld [vmem:[%s1476 + $0x38] sm:$0xf]
      %v1492 = vld [vmem:[%s1476 + $0x3c] sm:$0xf]
      %v1509 = vunpack.c.l.b16 %v1477
      %v1510 = vunpack.c.l.b16 %v1478
      %v1511 = vunpack.c.l.b16 %v1479
      %v1512 = vunpack.c.l.b16 %v1480
      %v1513 = vunpack.c.l.b16 %v1481
      %v1514 = vunpack.c.l.b16 %v1482
      %v1515 = vunpack.c.l.b16 %v1483
      %v1516 = vunpack.c.l.b16 %v1484
      %v1517 = vunpack.c.l.b16 %v1485
      %v1518 = vunpack.c.l.b16 %v1486
      %v1519 = vunpack.c.l.b16 %v1487
      %v1520 = vunpack.c.l.b16 %v1488
      %v1521 = vunpack.c.l.b16 %v1489
      %v1522 = vunpack.c.l.b16 %v1490
      %v1523 = vunpack.c.l.b16 %v1491
      %v1524 = vunpack.c.l.b16 %v1492
      %v1525 = vpack.c.b16 %v1510, %v1509
      %v1526 = vpack.c.b16 %v1512, %v1511
      %v1527 = vpack.c.b16 %v1514, %v1513
      %v1528 = vpack.c.b16 %v1516, %v1515
      %v1529 = vpack.c.b16 %v1518, %v1517
      %v1530 = vpack.c.b16 %v1520, %v1519
      %v1531 = vpack.c.b16 %v1522, %v1521
      %v1532 = vpack.c.b16 %v1524, %v1523
      %1541 = vmatprep.subr.bf16.mxu0 0
      %1542 = vmatpush1.bf16.msra.mxu0 %v1525
      %1543 = vmatprep.subr.bf16.mxu0 0
      %1544 = vmatpush1.bf16.msra.mxu0 %v1526
      %1545 = vmatprep.subr.bf16.mxu0 0
      %1546 = vmatpush1.bf16.msra.mxu0 %v1527
      %1547 = vmatprep.subr.bf16.mxu0 0
      %1548 = vmatpush1.bf16.msra.mxu0 %v1528
      %1549 = vmatprep.subr.bf16.mxu0 0
      %1550 = vmatpush1.bf16.msra.mxu0 %v1529
      %1551 = vmatprep.subr.bf16.mxu0 0
      %1552 = vmatpush1.bf16.msra.mxu0 %v1530
      %1553 = vmatprep.subr.bf16.mxu0 0
      %1554 = vmatpush1.bf16.msra.mxu0 %v1531
      %1555 = vmatprep.subr.bf16.mxu0 0
      %1556 = vmatpush1.bf16.msra.mxu0 %v1532
      %1557 = vmatprep.subr.bf16.mxu0 0
      %1558 = vmatpush1.bf16.msra.mxu0 0
      %1559 = vmatprep.subr.bf16.mxu0 0
      %1560 = vmatpush1.bf16.msra.mxu0 0
      %1561 = vmatprep.subr.bf16.mxu0 0
      %1562 = vmatpush1.bf16.msra.mxu0 0
      %1563 = vmatprep.subr.bf16.mxu0 0
      %1564 = vmatpush1.bf16.msra.mxu0 0
      %1565 = vmatprep.subr.bf16.mxu0 0
      %1566 = vmatpush1.bf16.msra.mxu0 0
      %1567 = vmatprep.subr.bf16.mxu0 0
      %1568 = vmatpush1.bf16.msra.mxu0 0
      %1569 = vmatprep.subr.bf16.mxu0 0
      %1570 = vmatpush1.bf16.msra.mxu0 0
      %1571 = vmatprep.subr.bf16.mxu0 0
      %1572 = vmatpush1.bf16.msra.mxu0 0
      %1573 = vmatprep.mubr.bf16.mxu0 0
      %1574 = vmatmul.mubr.bf16.gmra.mrb[0].mxu0 %v1472
      %v1575 = vpop.f32.mrb[0].mxu0
      %v1576 = vadd.f32 0.0, %v1575
      %v1577 = vpop.f32.mrb[0].mxu0
      %v1578 = vpop.f32.mrb[0].mxu0
      %v1579 = vadd.f32 0.0, %v1578
      %v1580 = vpop.f32.mrb[0].mxu0
      %1581 = vmatprep.mubr.bf16.mxu0 0
      %1582 = vmatmul.mubr.bf16.gmra.mrb[0].mxu0 %v1473
      %v1583 = vpop.f32.mrb[0].mxu0
      %v1584 = vadd.f32 0.0, %v1583
      %v1585 = vpop.f32.mrb[0].mxu0
      %v1586 = vpop.f32.mrb[0].mxu0
      %v1587 = vadd.f32 0.0, %v1586
      %v1588 = vpop.f32.mrb[0].mxu0
      %1589 = vmatprep.mubr.bf16.mxu0 0
      %1590 = vmatmul.mubr.bf16.gmra.mrb[0].mxu0 %v1474
      %v1591 = vpop.f32.mrb[0].mxu0
      %v1592 = vadd.f32 0.0, %v1591
      %v1593 = vpop.f32.mrb[0].mxu0
      %v1594 = vpop.f32.mrb[0].mxu0
      %v1595 = vadd.f32 0.0, %v1594
      %v1596 = vpop.f32.mrb[0].mxu0
      %1597 = vmatprep.mubr.bf16.mxu0 0
      %1598 = vmatmul.mubr.bf16.gmra.mrb[0].mxu0 %v1475
      %v1599 = vpop.f32.mrb[0].mxu0
      %v1600 = vadd.f32 0.0, %v1599
      %v1601 = vpop.f32.mrb[0].mxu0
      %v1602 = vpop.f32.mrb[0].mxu0
      %v1603 = vadd.f32 0.0, %v1602
      %v1604 = vpop.f32.mrb[0].mxu0
      %1605 = vdwg.mxu0
      %v1606 = vadd.f32 %v1456, %v1576
      %v1607 = vadd.f32 %v1457, %v1579
      %v1608 = vadd.f32 %v1458, %v1584
      %v1609 = vadd.f32 %v1459, %v1587
      %v1610 = vadd.f32 %v1460, %v1592
      %v1611 = vadd.f32 %v1461, %v1595
      %v1612 = vadd.f32 %v1462, %v1600
      %v1613 = vadd.f32 %v1463, %v1603
      %1614 = vst [vmem:[%s204] sm:$0xff] %v1606
      %1615 = vst [vmem:[%s204 + $0x8] sm:$0xff] %v1607
      %1616 = vst [vmem:[%s204 + $0x10] sm:$0xff] %v1608
      %1617 = vst [vmem:[%s204 + $0x18] sm:$0xff] %v1609
      %1618 = vst [vmem:[%s204 + $0x20] sm:$0xff] %v1610
      %1619 = vst [vmem:[%s204 + $0x28] sm:$0xff] %v1611
      %1620 = vst [vmem:[%s204 + $0x30] sm:$0xff] %v1612
      %1621 = vst [vmem:[%s204 + $0x38] sm:$0xff] %v1613
      %v1622 = vadd.f32 %v1606, %v1607
      %v1623 = vadd.f32 %v1622, %v1608
      %v1624 = vadd.f32 %v1623, %v1609
      %v1625 = vadd.f32 %v1624, %v1610
      %v1626 = vadd.f32 %v1625, %v1611
      %v1627 = vadd.f32 %v1626, %v1612
      %v1628 = vadd.f32 %v1627, %v1613
      %v1629 = vrot.slane %v1628, 4
      %v1630 = vadd.f32 %v1628, %v1629
      %v1631 = vrot.slane %v1630, 2
      %v1632 = vadd.f32 %v1630, %v1631
      %v1633 = vrot.slane %v1632, 1
      %v1634 = vadd.f32 %v1632, %v1633
      %v1635 = vmul.f32 %v1634, 0.015625
      %v1636 = vsub.f32 %v1606, %v1635
      %v1637 = vsub.f32 %v1607, %v1635
      %v1638 = vsub.f32 %v1608, %v1635
      %v1639 = vsub.f32 %v1609, %v1635
      %v1640 = vsub.f32 %v1610, %v1635
      %v1641 = vsub.f32 %v1611, %v1635
      %v1642 = vsub.f32 %v1612, %v1635
      %v1643 = vsub.f32 %v1613, %v1635
      %v1644 = vmul.f32 %v1636, %v1636
      %v1645 = vmul.f32 %v1637, %v1637
      %v1646 = vmul.f32 %v1638, %v1638
      %v1647 = vmul.f32 %v1639, %v1639
      %v1648 = vmul.f32 %v1640, %v1640
      %v1649 = vmul.f32 %v1641, %v1641
      %v1650 = vmul.f32 %v1642, %v1642
      %v1651 = vmul.f32 %v1643, %v1643
      %v1652 = vadd.f32 %v1644, %v1645
      %v1653 = vadd.f32 %v1652, %v1646
      %v1654 = vadd.f32 %v1653, %v1647
      %v1655 = vadd.f32 %v1654, %v1648
      %v1656 = vadd.f32 %v1655, %v1649
      %v1657 = vadd.f32 %v1656, %v1650
      %v1658 = vadd.f32 %v1657, %v1651
      %v1659 = vrot.slane %v1658, 4
      %v1660 = vadd.f32 %v1658, %v1659
      %v1661 = vrot.slane %v1660, 2
      %v1662 = vadd.f32 %v1660, %v1661
      %v1663 = vrot.slane %v1662, 1
      %v1664 = vadd.f32 %v1662, %v1663
      %vm1665 = vcmask 1040384
      %v1666 = vsel %vm1665, %v1634, %v1664
      %1667 = vst [vmem:[%s208] sm:$0x3] %v1666
      %p1668 = scmp.lt.s32.totalorder %s16, 1
      %s1669 = scalar_select %p1668, %s16, 1
      %s1670 = smul.addr %s1669, 8
      %s1671 = smul.addr %s1670, 8
      %s1672 = scalar_lea.vmem %s3, %s1671
      %p1673 = scmp.lt.s32.totalorder %s16, 1
      %s1674 = scalar_select %p1673, %s16, 1
      %s1675 = smul.addr %s1674, 2
      %s1676 = scalar_lea.vmem %s4, %s1675
      // Predicated region
      $region33: #{basic_block_forward.4} parent=31 // pred_check
        %p1677 = pneg %p102
      $region34: #{basic_block_forward.4} parent=31 // pred_check_branch
        %1679 = sbr.rel (%p1677) target = $region36
      $region35: #{basic_block_forward.4} parent=31 // pred_region
        _
      $region36: #{basic_block_forward.4} parent=31 // pred_fallthru
        _
      // Predicated region
      $region37: #{basic_block_forward.4} parent=31 // pred_check
        %p1680 = pneg %p128
      $region38: #{basic_block_forward.4} parent=31 // pred_check_branch
        %1682 = sbr.rel (%p1680) target = $region40
      $region39: #{basic_block_forward.4} parent=31 // pred_region
        _
      $region40: #{basic_block_forward.4} parent=31 // pred_fallthru
        _
    $region32: #{basic_block_forward.4} parent=5 // pred_fallthru
      _
    %p1683 = scmp.le.s32.totalorder 2, %s11
    // Predicated region
    $region41: #{basic_block_forward.4} parent=5 // pred_check
      %p1684 = pneg %p1683
    $region42: #{basic_block_forward.4} parent=5 // pred_check_branch
      %1686 = sbr.rel (%p1684) target = $region44
    $region43: #{basic_block_forward.4} parent=5 // pred_region
      %s1687 = ssub.s32 %s11, 2
      // Predicated region
      $region45: #{basic_block_forward.4} parent=43 // pred_check
        %p1688 = pneg %p108
      $region46: #{basic_block_forward.4} parent=43 // pred_check_branch
        %1690 = sbr.rel (%p1688) target = $region48
      $region47: #{basic_block_forward.4} parent=43 // pred_region
        %p1691 = scmp.lt.s32.totalorder %s17, 1
        %s1692 = scalar_select %p1691, %s17, 1
        %s1693 = smul.addr %s1692, 8
        %s1694 = smul.addr %s1693, 8
        %s1695 = scalar_lea.vmem %s3, %s1694
      $region48: #{basic_block_forward.4} parent=43 // pred_fallthru
        _
      // Predicated region
      $region49: #{basic_block_forward.4} parent=43 // pred_check
        %p1696 = pneg %p134
      $region50: #{basic_block_forward.4} parent=43 // pred_check_branch
        %1698 = sbr.rel (%p1696) target = $region52
      $region51: #{basic_block_forward.4} parent=43 // pred_region
        %p1699 = scmp.lt.s32.totalorder %s17, 1
        %s1700 = scalar_select %p1699, %s17, 1
        %s1701 = smul.addr %s1700, 2
        %s1702 = scalar_lea.vmem %s4, %s1701
      $region52: #{basic_block_forward.4} parent=43 // pred_fallthru
        _
    $region44: #{basic_block_forward.4} parent=5 // pred_fallthru
      _
  $region6: #{basic_block_forward.4} parent=0 // loop_footer
    %s15 = sadd.s32 1, %s11
  $region7: #{basic_block_forward.4} parent=0 // loop_footer_branch
    %10 = sbr.rel target = $region3
  $region8: #{basic_block_forward.4} parent=0 // loop_exit
    _

</llo_original>
